<compile_context>
chip_gen: v5e
topology: v5e:2x2
jax: 0.10.0
libtpu: 0.0.40
codegen_flags: <defaults>
</compile_context>

<pallas_src>
import jax
import jax.numpy as jnp
from jax import lax
from jax.experimental import pallas as pl
from jax.experimental.pallas import tpu as pltpu

VOCAB = 4


def _sigmoid(x):
    # Single EUP tanh instead of exp + divide; exact identity.
    return 0.5 * jnp.tanh(0.5 * x) + 0.5


def gru_kernel(ids_ref,      # (T*Bp, 1) int32, t-major, batch padded to Bp
               tab_ref,      # (VOCAB, 3*Hp) f32   emb folded into W_ih0^T (gate-padded)
               b0cat_ref,    # (1, 3*Hp)    f32   bih0 (+ bhh0 r/z folded in)
               whh0p_ref,    # (Hp, 3*Hp)   bf16  layer-0 recurrent weights
               b0n_ref,      # (1, Hp)      f32   bhh0 n-gate bias (stays inside r*(.))
               w1cat_ref,    # (2*Hp, 4*Hp) bf16  layer-1 [rz fused | n_in | n_hid]
               b1cat_ref,    # (1, 4*Hp)    f32   layer-1 fused biases
               wfcp_ref,     # (Hp, Cp)     bf16  FC weights, transposed + padded
               bfcp_ref,     # (1, Cp)      f32
               out_ref,      # (Bp, Cp)     f32
               xh_ref):      # (Bp, 2*Hp)   bf16  persistent [h0 | h1] scratch
    TBp = ids_ref.shape[0]
    Bp = out_ref.shape[0]
    T = TBp // Bp
    Hp = whh0p_ref.shape[0]

    # ---- hoisted prologue: full layer-0 input path for all timesteps (1 MXU push) ----
    onehot = (ids_ref[...] ==
              lax.broadcasted_iota(jnp.int32, (TBp, VOCAB), 1)).astype(jnp.float32)
    gi0_all = jnp.dot(onehot, tab_ref[...],
                      preferred_element_type=jnp.float32) + b0cat_ref[...]   # (TBp, 3Hp)

    whh0p = whh0p_ref[...]        # bf16
    w1cat = w1cat_ref[...]        # bf16
    # broadcasts hoisted out of the loop (JAX does not CSE broadcast_in_dim)
    b0n = jnp.broadcast_to(b0n_ref[...], (Bp, Hp))
    b1cat = jnp.broadcast_to(b1cat_ref[...], (Bp, 4 * Hp))

    h0 = jnp.zeros((Bp, Hp), jnp.float32)
    h1 = jnp.zeros((Bp, Hp), jnp.float32)
    acc = jnp.zeros((Bp, Hp), jnp.float32)
    xh_ref[...] = jnp.zeros_like(xh_ref)

    # h0 starts at zero, so the step-0 recurrent contribution is exactly zero.
    gh0 = jnp.zeros((Bp, 3 * Hp), jnp.float32)

    # ---- recurrence: fully unrolled (small static T), skewed MXU schedule ----
    for t in range(T):
        gi0 = gi0_all[t * Bp:(t + 1) * Bp, :]          # sublane-aligned (Bp multiple of 8)
        r0 = _sigmoid(gi0[:, 0:Hp] + gh0[:, 0:Hp])
        z0 = _sigmoid(gi0[:, Hp:2 * Hp] + gh0[:, Hp:2 * Hp])
        n0 = jnp.tanh(gi0[:, 2 * Hp:3 * Hp] + r0 * (gh0[:, 2 * Hp:3 * Hp] + b0n))
        h0 = (1.0 - z0) * n0 + z0 * h0

        h0b = h0.astype(jnp.bfloat16)
        xh_ref[:, 0:Hp] = h0b                          # 128-aligned lane half, in place
        # skew: issue next step's layer-0 recurrent push right after h0(t) is formed,
        # so it overlaps the layer-1 g1(t) push below instead of serializing behind it.
        if t + 1 < T:
            gh0 = jnp.dot(h0b, whh0p, preferred_element_type=jnp.float32)

        # layer 1: single fused push; rz columns already hold i_rz + h_rz.
        g1 = jnp.dot(xh_ref[...], w1cat, preferred_element_type=jnp.float32) + b1cat
        r1 = _sigmoid(g1[:, 0:Hp])
        z1 = _sigmoid(g1[:, Hp:2 * Hp])
        n1 = jnp.tanh(g1[:, 2 * Hp:3 * Hp] + r1 * g1[:, 3 * Hp:4 * Hp])
        h1 = (1.0 - z1) * n1 + z1 * h1
        xh_ref[:, Hp:2 * Hp] = h1.astype(jnp.bfloat16)
        acc = acc + h1

    # ---- epilogue: mean over time + FC ----
    mean = (acc * (1.0 / T)).astype(jnp.bfloat16)
    out_ref[...] = jnp.dot(mean, wfcp_ref[...],
                           preferred_element_type=jnp.float32) + bfcp_ref[...]


def _round_up(x, m):
    return ((x + m - 1) // m) * m


def _pad_gates_T(w, in_pad, Hp):
    """(3H, In) torch-layout weight -> (in_pad, 3*Hp) transposed, gates lane-tile aligned."""
    three_h, in_dim = w.shape
    H = three_h // 3
    wt = w.T.astype(jnp.float32)
    out = jnp.zeros((in_pad, 3 * Hp), jnp.float32)
    for g in range(3):
        out = out.at[:in_dim, g * Hp:g * Hp + H].set(wt[:, g * H:(g + 1) * H])
    return out


def _pad_gate_vec(b, Hp):
    """(3H,) bias -> (3*Hp,) with each gate segment at a 128-lane-aligned offset."""
    H = b.shape[0] // 3
    out = jnp.zeros((3 * Hp,), jnp.float32)
    for g in range(3):
        out = out.at[g * Hp:g * Hp + H].set(b[g * H:(g + 1) * H].astype(jnp.float32))
    return out


def gru_forward(ids, p):
    B, T = ids.shape
    E = p["emb"].shape[1]
    H = p["whh0"].shape[1]
    C = p["wfc"].shape[0]
    Hp = _round_up(H, 128)
    Cp = _round_up(C, 128)
    Bp = _round_up(B, 8)

    # ---- weight/bias layout prep (pure layout work, done once outside the kernel) ----
    # Layer 0: fold embedding into the input weights -> (VOCAB, 3Hp) lookup-by-matmul table.
    wih0p = _pad_gates_T(p["wih0"], E, Hp)                        # (E, 3Hp)
    tab = jnp.dot(p["emb"].astype(jnp.float32), wih0p)            # (VOCAB, 3Hp), f32
    whh0p = _pad_gates_T(p["whh0"], Hp, Hp).astype(jnp.bfloat16)  # (Hp, 3Hp)
    bih0p = _pad_gate_vec(p["bih0"], Hp)
    bhh0p = _pad_gate_vec(p["bhh0"], Hp)
    b0cat = bih0p.at[:2 * Hp].add(bhh0p[:2 * Hp])                 # fold hidden r/z biases
    b0n = bhh0p[2 * Hp:3 * Hp]                                    # hidden n bias stays in r*(.)

    # Layer 1: (2Hp, 4Hp) = [rz (input rows stacked over hidden rows, fused) | n_in | n_hid].
    wih1t = _pad_gates_T(p["wih1"], Hp, Hp)                       # (Hp, 3Hp)
    whh1t = _pad_gates_T(p["whh1"], Hp, Hp)                       # (Hp, 3Hp)
    w1cat = jnp.zeros((2 * Hp, 4 * Hp), jnp.float32)
    w1cat = w1cat.at[:Hp, 0:2 * Hp].set(wih1t[:, 0:2 * Hp])       # r,z input columns
    w1cat = w1cat.at[Hp:, 0:2 * Hp].set(whh1t[:, 0:2 * Hp])       # r,z hidden columns (fused)
    w1cat = w1cat.at[:Hp, 2 * Hp:3 * Hp].set(wih1t[:, 2 * Hp:3 * Hp])   # n input
    w1cat = w1cat.at[Hp:, 3 * Hp:4 * Hp].set(whh1t[:, 2 * Hp:3 * Hp])   # n hidden
    w1cat = w1cat.astype(jnp.bfloat16)

    bih1p = _pad_gate_vec(p["bih1"], Hp)
    bhh1p = _pad_gate_vec(p["bhh1"], Hp)
    b1cat = jnp.zeros((4 * Hp,), jnp.float32)
    b1cat = b1cat.at[:2 * Hp].set(bih1p[:2 * Hp] + bhh1p[:2 * Hp])   # r,z biases folded
    b1cat = b1cat.at[2 * Hp:3 * Hp].set(bih1p[2 * Hp:3 * Hp])        # input n bias
    b1cat = b1cat.at[3 * Hp:4 * Hp].set(bhh1p[2 * Hp:3 * Hp])        # hidden n bias

    wfcp = (jnp.zeros((Hp, Cp), jnp.float32)
            .at[:H, :C].set(p["wfc"].T.astype(jnp.float32))
            .astype(jnp.bfloat16))
    bfcp = jnp.zeros((Cp,), jnp.float32).at[:C].set(p["bfc"].astype(jnp.float32))

    # Token ids: t-major, batch padded to Bp (8-sublane aligned per-step slices).
    ids_p = jnp.zeros((T, Bp), jnp.int32).at[:, :B].set(ids.astype(jnp.int32).T)
    ids_flat = ids_p.reshape(T * Bp, 1)

    vmem = pl.BlockSpec(memory_space=pltpu.MemorySpace.VMEM)
    args = (ids_flat, tab, b0cat.reshape(1, -1), whh0p, b0n.reshape(1, -1),
            w1cat, b1cat.reshape(1, -1), wfcp, bfcp.reshape(1, -1))

    out = pl.pallas_call(
        gru_kernel,
        out_shape=jax.ShapeDtypeStruct((Bp, Cp), jnp.float32),
        in_specs=[vmem] * len(args),
        out_specs=vmem,
        scratch_shapes=[pltpu.VMEM((Bp, 2 * Hp), jnp.bfloat16)],
    )(*args)
    return out[:B, :C]


def ref_forward(ids, p):
    # Pure-JAX reference (same math as torch: Embedding -> 2-layer GRU -> mean -> Linear).
    emb = p["emb"][ids]  # (B, T, E)
    B, T = ids.shape
    H = p["whh0"].shape[1]

    def cell(x_t, h, wih, whh, bih, bhh):
        gi = x_t @ wih.T + bih
        gh = h @ whh.T + bhh
        i_r, i_z, i_n = jnp.split(gi, 3, axis=1)
        h_r, h_z, h_n = jnp.split(gh, 3, axis=1)
        r = jax.nn.sigmoid(i_r + h_r)
        z = jax.nn.sigmoid(i_z + h_z)
        n = jnp.tanh(i_n + r * h_n)
        return (1 - z) * n + z * h

    h0 = jnp.zeros((B, H), jnp.float32)
    h1 = jnp.zeros((B, H), jnp.float32)
    acc = jnp.zeros((B, H), jnp.float32)
    for t in range(T):
        x_t = emb[:, t, :]
        h0 = cell(x_t, h0, p["wih0"], p["whh0"], p["bih0"], p["bhh0"])
        h1 = cell(h0, h1, p["wih1"], p["whh1"], p["bih1"], p["bhh1"])
        acc = acc + h1
    return (acc / T) @ p["wfc"].T + p["bfc"]


def make_params(key, E, H, C):
    ks = jax.random.split(key, 11)
    s = 0.1

    def rnd(k, shape):
        return (s * jax.random.normal(k, shape)).astype(jnp.float32)

    return {
        "emb":  rnd(ks[0], (VOCAB, E)),
        "wih0": rnd(ks[1], (3 * H, E)),
        "whh0": rnd(ks[2], (3 * H, H)),
        "bih0": rnd(ks[3], (3 * H,)),
        "bhh0": rnd(ks[4], (3 * H,)),
        "wih1": rnd(ks[5], (3 * H, H)),
        "whh1": rnd(ks[6], (3 * H, H)),
        "bih1": rnd(ks[7], (3 * H,)),
        "bhh1": rnd(ks[8], (3 * H,)),
        "wfc":  rnd(ks[9], (C, H)),
        "bfc":  rnd(ks[10], (C,)),
    }


if __name__ == "__main__":
    B, T, E, H, C = 2, 8, 16, 32, 3
    key = jax.random.PRNGKey(0)
    k_ids, k_par = jax.random.split(key)
    ids = jax.random.randint(k_ids, (B, T), 0, VOCAB, dtype=jnp.int32)
    params = make_params(k_par, E, H, C)

    out = gru_forward(ids, params)
    jax.block_until_ready(out)

    ref = ref_forward(ids, params)
    assert out.shape == (B, C)
    # bf16 MXU operands -> relaxed tolerance vs the f32 reference.
    assert jnp.allclose(out, ref, rtol=2e-2, atol=5e-3), (out, ref)
    print("KERNEL_OK")
</pallas_src>

<mosaic_0001>
module attributes {stable_mosaic.version = 11 : i64} {
  func.func @gru_kernel(%arg0: memref<64x1xi32, #tpu.memory_space<vmem>>, %arg1: memref<4x384xf32, #tpu.memory_space<vmem>>, %arg2: memref<1x384xf32, #tpu.memory_space<vmem>>, %arg3: memref<128x384xbf16, #tpu.memory_space<vmem>>, %arg4: memref<1x128xf32, #tpu.memory_space<vmem>>, %arg5: memref<256x512xbf16, #tpu.memory_space<vmem>>, %arg6: memref<1x512xf32, #tpu.memory_space<vmem>>, %arg7: memref<128x128xbf16, #tpu.memory_space<vmem>>, %arg8: memref<1x128xf32, #tpu.memory_space<vmem>>, %arg9: memref<8x128xf32, #tpu.memory_space<vmem>>, %arg10: memref<8x256xbf16, #tpu.memory_space<vmem>>) attributes {dimension_semantics = [], scalar_prefetch = 0 : i64, scratch_operands = 1 : i64, tpu.core_type = #tpu.core_type<tc>} {
    %c0 = arith.constant 0 : index
    %c0_0 = arith.constant 0 : index
    %0 = vector.load %arg0[%c0, %c0_0] : memref<64x1xi32, #tpu.memory_space<vmem>>, vector<64x1xi32>
    %1 = tpu.iota {dimensions = array<i32: 1>} : vector<64x4xi32>
    %2 = vector.broadcast %0 : vector<64x1xi32> to vector<64x4xi32>
    %3 = arith.cmpi eq, %2, %1 : vector<64x4xi32>
    %4 = arith.extui %3 : vector<64x4xi1> to vector<64x4xi32>
    %5 = arith.sitofp %4 : vector<64x4xi32> to vector<64x4xf32>
    %c0_1 = arith.constant 0 : index
    %c0_2 = arith.constant 0 : index
    %6 = vector.load %arg1[%c0_1, %c0_2] : memref<4x384xf32, #tpu.memory_space<vmem>>, vector<4x384xf32>
    %cst = arith.constant dense<0.000000e+00> : vector<64x384xf32>
    %7 = tpu.matmul %5, %6, %cst {dimension_numbers = #tpu.dot_dimension_numbers<[1], [0], [0], [1], [0, 0, 1, 1], [], []>} : vector<64x4xf32>, vector<4x384xf32>, vector<64x384xf32> -> vector<64x384xf32>
    %c0_3 = arith.constant 0 : index
    %c0_4 = arith.constant 0 : index
    %8 = vector.load %arg2[%c0_3, %c0_4] : memref<1x384xf32, #tpu.memory_space<vmem>>, vector<1x384xf32>
    %9 = vector.broadcast %8 : vector<1x384xf32> to vector<64x384xf32>
    %10 = arith.addf %7, %9 : vector<64x384xf32>
    %c0_5 = arith.constant 0 : index
    %c0_6 = arith.constant 0 : index
    %11 = vector.load %arg3[%c0_5, %c0_6] : memref<128x384xbf16, #tpu.memory_space<vmem>>, vector<128x384xbf16>
    %c0_7 = arith.constant 0 : index
    %c0_8 = arith.constant 0 : index
    %12 = vector.load %arg5[%c0_7, %c0_8] : memref<256x512xbf16, #tpu.memory_space<vmem>>, vector<256x512xbf16>
    %c0_9 = arith.constant 0 : index
    %c0_10 = arith.constant 0 : index
    %13 = vector.load %arg4[%c0_9, %c0_10] : memref<1x128xf32, #tpu.memory_space<vmem>>, vector<1x128xf32>
    %14 = vector.shape_cast %13 : vector<1x128xf32> to vector<1x128xf32>
    %15 = vector.broadcast %14 : vector<1x128xf32> to vector<8x128xf32>
    %c0_11 = arith.constant 0 : index
    %c0_12 = arith.constant 0 : index
    %16 = vector.load %arg6[%c0_11, %c0_12] : memref<1x512xf32, #tpu.memory_space<vmem>>, vector<1x512xf32>
    %17 = vector.shape_cast %16 : vector<1x512xf32> to vector<1x512xf32>
    %18 = vector.broadcast %17 : vector<1x512xf32> to vector<8x512xf32>
    %cst_13 = arith.constant 0.000000e+00 : f32
    %19 = vector.broadcast %cst_13 : f32 to vector<8x128xf32>
    %cst_14 = arith.constant 0.000000e+00 : f32
    %20 = vector.broadcast %cst_14 : f32 to vector<8x128xf32>
    %cst_15 = arith.constant 0.000000e+00 : f32
    %21 = vector.broadcast %cst_15 : f32 to vector<8x128xf32>
    %cst_16 = arith.constant 0.000000e+00 : bf16
    %22 = vector.broadcast %cst_16 : bf16 to vector<8x256xbf16>
    %c0_17 = arith.constant 0 : index
    %c0_18 = arith.constant 0 : index
    %23 = vector.load %arg10[%c0_17, %c0_18] : memref<8x256xbf16, #tpu.memory_space<vmem>>, vector<8x256xbf16>
    tpu.vector_store %arg10[%c0_17, %c0_18], %22 {strides = array<i32>} : memref<8x256xbf16, #tpu.memory_space<vmem>>, vector<8x256xbf16>,
    %cst_19 = arith.constant 0.000000e+00 : f32
    %24 = vector.broadcast %cst_19 : f32 to vector<8x384xf32>
    %25 = vector.extract_strided_slice %10 {offsets = [0, 0], sizes = [8, 384], strides = [1, 1]} : vector<64x384xf32> to vector<8x384xf32>
    %26 = vector.extract_strided_slice %25 {offsets = [0, 0], sizes = [8, 128], strides = [1, 1]} : vector<8x384xf32> to vector<8x128xf32>
    %27 = vector.extract_strided_slice %24 {offsets = [0, 0], sizes = [8, 128], strides = [1, 1]} : vector<8x384xf32> to vector<8x128xf32>
    %28 = arith.addf %26, %27 : vector<8x128xf32>
    %cst_20 = arith.constant 5.000000e-01 : f32
    %29 = vector.broadcast %cst_20 : f32 to vector<8x128xf32>
    %30 = arith.mulf %29, %28 : vector<8x128xf32>
    %31 = math.tanh %30 : vector<8x128xf32>
    %cst_21 = arith.constant 5.000000e-01 : f32
    %32 = vector.broadcast %cst_21 : f32 to vector<8x128xf32>
    %33 = arith.mulf %32, %31 : vector<8x128xf32>
    %cst_22 = arith.constant 5.000000e-01 : f32
    %34 = vector.broadcast %cst_22 : f32 to vector<8x128xf32>
    %35 = arith.addf %33, %34 : vector<8x128xf32>
    %36 = vector.extract_strided_slice %25 {offsets = [0, 128], sizes = [8, 128], strides = [1, 1]} : vector<8x384xf32> to vector<8x128xf32>
    %37 = vector.extract_strided_slice %24 {offsets = [0, 128], sizes = [8, 128], strides = [1, 1]} : vector<8x384xf32> to vector<8x128xf32>
    %38 = arith.addf %36, %37 : vector<8x128xf32>
    %cst_23 = arith.constant 5.000000e-01 : f32
    %39 = vector.broadcast %cst_23 : f32 to vector<8x128xf32>
    %40 = arith.mulf %39, %38 : vector<8x128xf32>
    %41 = math.tanh %40 : vector<8x128xf32>
    %cst_24 = arith.constant 5.000000e-01 : f32
    %42 = vector.broadcast %cst_24 : f32 to vector<8x128xf32>
    %43 = arith.mulf %42, %41 : vector<8x128xf32>
    %cst_25 = arith.constant 5.000000e-01 : f32
    %44 = vector.broadcast %cst_25 : f32 to vector<8x128xf32>
    %45 = arith.addf %43, %44 : vector<8x128xf32>
    %46 = vector.extract_strided_slice %25 {offsets = [0, 256], sizes = [8, 128], strides = [1, 1]} : vector<8x384xf32> to vector<8x128xf32>
    %47 = vector.extract_strided_slice %24 {offsets = [0, 256], sizes = [8, 128], strides = [1, 1]} : vector<8x384xf32> to vector<8x128xf32>
    %48 = arith.addf %47, %15 : vector<8x128xf32>
    %49 = arith.mulf %35, %48 : vector<8x128xf32>
    %50 = arith.addf %46, %49 : vector<8x128xf32>
    %51 = math.tanh %50 : vector<8x128xf32>
    %cst_26 = arith.constant 1.000000e+00 : f32
    %52 = vector.broadcast %cst_26 : f32 to vector<8x128xf32>
    %53 = arith.subf %52, %45 : vector<8x128xf32>
    %54 = arith.mulf %53, %51 : vector<8x128xf32>
    %55 = arith.mulf %45, %19 : vector<8x128xf32>
    %56 = arith.addf %54, %55 : vector<8x128xf32>
    %57 = arith.truncf %56 : vector<8x128xf32> to vector<8x128xbf16>
    %c0_27 = arith.constant 0 : index
    %c0_28 = arith.constant 0 : index
    %58 = vector.load %arg10[%c0_27, %c0_28] : memref<8x256xbf16, #tpu.memory_space<vmem>>, vector<8x128xbf16>
    tpu.vector_store %arg10[%c0_27, %c0_28], %57 {strides = array<i32>} : memref<8x256xbf16, #tpu.memory_space<vmem>>, vector<8x128xbf16>,
    %cst_29 = arith.constant dense<0.000000e+00> : vector<8x384xf32>
    %59 = tpu.matmul %57, %11, %cst_29 {dimension_numbers = #tpu.dot_dimension_numbers<[1], [0], [0], [1], [0, 0, 1, 1], [], []>} : vector<8x128xbf16>, vector<128x384xbf16>, vector<8x384xf32> -> vector<8x384xf32>
    %c0_30 = arith.constant 0 : index
    %c0_31 = arith.constant 0 : index
    %60 = vector.load %arg10[%c0_30, %c0_31] : memref<8x256xbf16, #tpu.memory_space<vmem>>, vector<8x256xbf16>
    %cst_32 = arith.constant dense<0.000000e+00> : vector<8x512xf32>
    %61 = tpu.matmul %60, %12, %cst_32 {dimension_numbers = #tpu.dot_dimension_numbers<[1], [0], [0], [1], [0, 0, 1, 1], [], []>} : vector<8x256xbf16>, vector<256x512xbf16>, vector<8x512xf32> -> vector<8x512xf32>
    %62 = arith.addf %61, %18 : vector<8x512xf32>
    %63 = vector.extract_strided_slice %62 {offsets = [0, 0], sizes = [8, 128], strides = [1, 1]} : vector<8x512xf32> to vector<8x128xf32>
    %cst_33 = arith.constant 5.000000e-01 : f32
    %64 = vector.broadcast %cst_33 : f32 to vector<8x128xf32>
    %65 = arith.mulf %64, %63 : vector<8x128xf32>
    %66 = math.tanh %65 : vector<8x128xf32>
    %cst_34 = arith.constant 5.000000e-01 : f32
    %67 = vector.broadcast %cst_34 : f32 to vector<8x128xf32>
    %68 = arith.mulf %67, %66 : vector<8x128xf32>
    %cst_35 = arith.constant 5.000000e-01 : f32
    %69 = vector.broadcast %cst_35 : f32 to vector<8x128xf32>
    %70 = arith.addf %68, %69 : vector<8x128xf32>
    %71 = vector.extract_strided_slice %62 {offsets = [0, 128], sizes = [8, 128], strides = [1, 1]} : vector<8x512xf32> to vector<8x128xf32>
    %cst_36 = arith.constant 5.000000e-01 : f32
    %72 = vector.broadcast %cst_36 : f32 to vector<8x128xf32>
    %73 = arith.mulf %72, %71 : vector<8x128xf32>
    %74 = math.tanh %73 : vector<8x128xf32>
    %cst_37 = arith.constant 5.000000e-01 : f32
    %75 = vector.broadcast %cst_37 : f32 to vector<8x128xf32>
    %76 = arith.mulf %75, %74 : vector<8x128xf32>
    %cst_38 = arith.constant 5.000000e-01 : f32
    %77 = vector.broadcast %cst_38 : f32 to vector<8x128xf32>
    %78 = arith.addf %76, %77 : vector<8x128xf32>
    %79 = vector.extract_strided_slice %62 {offsets = [0, 256], sizes = [8, 128], strides = [1, 1]} : vector<8x512xf32> to vector<8x128xf32>
    %80 = vector.extract_strided_slice %62 {offsets = [0, 384], sizes = [8, 128], strides = [1, 1]} : vector<8x512xf32> to vector<8x128xf32>
    %81 = arith.mulf %70, %80 : vector<8x128xf32>
    %82 = arith.addf %79, %81 : vector<8x128xf32>
    %83 = math.tanh %82 : vector<8x128xf32>
    %cst_39 = arith.constant 1.000000e+00 : f32
    %84 = vector.broadcast %cst_39 : f32 to vector<8x128xf32>
    %85 = arith.subf %84, %78 : vector<8x128xf32>
    %86 = arith.mulf %85, %83 : vector<8x128xf32>
    %87 = arith.mulf %78, %20 : vector<8x128xf32>
    %88 = arith.addf %86, %87 : vector<8x128xf32>
    %89 = arith.truncf %88 : vector<8x128xf32> to vector<8x128xbf16>
    %c0_40 = arith.constant 0 : index
    %c128 = arith.constant 128 : index
    %90 = vector.load %arg10[%c0_40, %c128] : memref<8x256xbf16, #tpu.memory_space<vmem>>, vector<8x128xbf16>
    tpu.vector_store %arg10[%c0_40, %c128], %89 {strides = array<i32>} : memref<8x256xbf16, #tpu.memory_space<vmem>>, vector<8x128xbf16>,
    %91 = arith.addf %21, %88 : vector<8x128xf32>
    %92 = vector.extract_strided_slice %10 {offsets = [8, 0], sizes = [8, 384], strides = [1, 1]} : vector<64x384xf32> to vector<8x384xf32>
    %93 = vector.extract_strided_slice %92 {offsets = [0, 0], sizes = [8, 128], strides = [1, 1]} : vector<8x384xf32> to vector<8x128xf32>
    %94 = vector.extract_strided_slice %59 {offsets = [0, 0], sizes = [8, 128], strides = [1, 1]} : vector<8x384xf32> to vector<8x128xf32>
    %95 = arith.addf %93, %94 : vector<8x128xf32>
    %cst_41 = arith.constant 5.000000e-01 : f32
    %96 = vector.broadcast %cst_41 : f32 to vector<8x128xf32>
    %97 = arith.mulf %96, %95 : vector<8x128xf32>
    %98 = math.tanh %97 : vector<8x128xf32>
    %cst_42 = arith.constant 5.000000e-01 : f32
    %99 = vector.broadcast %cst_42 : f32 to vector<8x128xf32>
    %100 = arith.mulf %99, %98 : vector<8x128xf32>
    %cst_43 = arith.constant 5.000000e-01 : f32
    %101 = vector.broadcast %cst_43 : f32 to vector<8x128xf32>
    %102 = arith.addf %100, %101 : vector<8x128xf32>
    %103 = vector.extract_strided_slice %92 {offsets = [0, 128], sizes = [8, 128], strides = [1, 1]} : vector<8x384xf32> to vector<8x128xf32>
    %104 = vector.extract_strided_slice %59 {offsets = [0, 128], sizes = [8, 128], strides = [1, 1]} : vector<8x384xf32> to vector<8x128xf32>
    %105 = arith.addf %103, %104 : vector<8x128xf32>
    %cst_44 = arith.constant 5.000000e-01 : f32
    %106 = vector.broadcast %cst_44 : f32 to vector<8x128xf32>
    %107 = arith.mulf %106, %105 : vector<8x128xf32>
    %108 = math.tanh %107 : vector<8x128xf32>
    %cst_45 = arith.constant 5.000000e-01 : f32
    %109 = vector.broadcast %cst_45 : f32 to vector<8x128xf32>
    %110 = arith.mulf %109, %108 : vector<8x128xf32>
    %cst_46 = arith.constant 5.000000e-01 : f32
    %111 = vector.broadcast %cst_46 : f32 to vector<8x128xf32>
    %112 = arith.addf %110, %111 : vector<8x128xf32>
    %113 = vector.extract_strided_slice %92 {offsets = [0, 256], sizes = [8, 128], strides = [1, 1]} : vector<8x384xf32> to vector<8x128xf32>
    %114 = vector.extract_strided_slice %59 {offsets = [0, 256], sizes = [8, 128], strides = [1, 1]} : vector<8x384xf32> to vector<8x128xf32>
    %115 = arith.addf %114, %15 : vector<8x128xf32>
    %116 = arith.mulf %102, %115 : vector<8x128xf32>
    %117 = arith.addf %113, %116 : vector<8x128xf32>
    %118 = math.tanh %117 : vector<8x128xf32>
    %cst_47 = arith.constant 1.000000e+00 : f32
    %119 = vector.broadcast %cst_47 : f32 to vector<8x128xf32>
    %120 = arith.subf %119, %112 : vector<8x128xf32>
    %121 = arith.mulf %120, %118 : vector<8x128xf32>
    %122 = arith.mulf %112, %56 : vector<8x128xf32>
    %123 = arith.addf %121, %122 : vector<8x128xf32>
    %124 = arith.truncf %123 : vector<8x128xf32> to vector<8x128xbf16>
    %c0_48 = arith.constant 0 : index
    %c0_49 = arith.constant 0 : index
    %125 = vector.load %arg10[%c0_48, %c0_49] : memref<8x256xbf16, #tpu.memory_space<vmem>>, vector<8x128xbf16>
    tpu.vector_store %arg10[%c0_48, %c0_49], %124 {strides = array<i32>} : memref<8x256xbf16, #tpu.memory_space<vmem>>, vector<8x128xbf16>,
    %cst_50 = arith.constant dense<0.000000e+00> : vector<8x384xf32>
    %126 = tpu.matmul %124, %11, %cst_50 {dimension_numbers = #tpu.dot_dimension_numbers<[1], [0], [0], [1], [0, 0, 1, 1], [], []>} : vector<8x128xbf16>, vector<128x384xbf16>, vector<8x384xf32> -> vector<8x384xf32>
    %c0_51 = arith.constant 0 : index
    %c0_52 = arith.constant 0 : index
    %127 = vector.load %arg10[%c0_51, %c0_52] : memref<8x256xbf16, #tpu.memory_space<vmem>>, vector<8x256xbf16>
    %cst_53 = arith.constant dense<0.000000e+00> : vector<8x512xf32>
    %128 = tpu.matmul %127, %12, %cst_53 {dimension_numbers = #tpu.dot_dimension_numbers<[1], [0], [0], [1], [0, 0, 1, 1], [], []>} : vector<8x256xbf16>, vector<256x512xbf16>, vector<8x512xf32> -> vector<8x512xf32>
    %129 = arith.addf %128, %18 : vector<8x512xf32>
    %130 = vector.extract_strided_slice %129 {offsets = [0, 0], sizes = [8, 128], strides = [1, 1]} : vector<8x512xf32> to vector<8x128xf32>
    %cst_54 = arith.constant 5.000000e-01 : f32
    %131 = vector.broadcast %cst_54 : f32 to vector<8x128xf32>
    %132 = arith.mulf %131, %130 : vector<8x128xf32>
    %133 = math.tanh %132 : vector<8x128xf32>
    %cst_55 = arith.constant 5.000000e-01 : f32
    %134 = vector.broadcast %cst_55 : f32 to vector<8x128xf32>
    %135 = arith.mulf %134, %133 : vector<8x128xf32>
    %cst_56 = arith.constant 5.000000e-01 : f32
    %136 = vector.broadcast %cst_56 : f32 to vector<8x128xf32>
    %137 = arith.addf %135, %136 : vector<8x128xf32>
    %138 = vector.extract_strided_slice %129 {offsets = [0, 128], sizes = [8, 128], strides = [1, 1]} : vector<8x512xf32> to vector<8x128xf32>
    %cst_57 = arith.constant 5.000000e-01 : f32
    %139 = vector.broadcast %cst_57 : f32 to vector<8x128xf32>
    %140 = arith.mulf %139, %138 : vector<8x128xf32>
    %141 = math.tanh %140 : vector<8x128xf32>
    %cst_58 = arith.constant 5.000000e-01 : f32
    %142 = vector.broadcast %cst_58 : f32 to vector<8x128xf32>
    %143 = arith.mulf %142, %141 : vector<8x128xf32>
    %cst_59 = arith.constant 5.000000e-01 : f32
    %144 = vector.broadcast %cst_59 : f32 to vector<8x128xf32>
    %145 = arith.addf %143, %144 : vector<8x128xf32>
    %146 = vector.extract_strided_slice %129 {offsets = [0, 256], sizes = [8, 128], strides = [1, 1]} : vector<8x512xf32> to vector<8x128xf32>
    %147 = vector.extract_strided_slice %129 {offsets = [0, 384], sizes = [8, 128], strides = [1, 1]} : vector<8x512xf32> to vector<8x128xf32>
    %148 = arith.mulf %137, %147 : vector<8x128xf32>
    %149 = arith.addf %146, %148 : vector<8x128xf32>
    %150 = math.tanh %149 : vector<8x128xf32>
    %cst_60 = arith.constant 1.000000e+00 : f32
    %151 = vector.broadcast %cst_60 : f32 to vector<8x128xf32>
    %152 = arith.subf %151, %145 : vector<8x128xf32>
    %153 = arith.mulf %152, %150 : vector<8x128xf32>
    %154 = arith.mulf %145, %88 : vector<8x128xf32>
    %155 = arith.addf %153, %154 : vector<8x128xf32>
    %156 = arith.truncf %155 : vector<8x128xf32> to vector<8x128xbf16>
    %c0_61 = arith.constant 0 : index
    %c128_62 = arith.constant 128 : index
    %157 = vector.load %arg10[%c0_61, %c128_62] : memref<8x256xbf16, #tpu.memory_space<vmem>>, vector<8x128xbf16>
    tpu.vector_store %arg10[%c0_61, %c128_62], %156 {strides = array<i32>} : memref<8x256xbf16, #tpu.memory_space<vmem>>, vector<8x128xbf16>,
    %158 = arith.addf %91, %155 : vector<8x128xf32>
    %159 = vector.extract_strided_slice %10 {offsets = [16, 0], sizes = [8, 384], strides = [1, 1]} : vector<64x384xf32> to vector<8x384xf32>
    %160 = vector.extract_strided_slice %159 {offsets = [0, 0], sizes = [8, 128], strides = [1, 1]} : vector<8x384xf32> to vector<8x128xf32>
    %161 = vector.extract_strided_slice %126 {offsets = [0, 0], sizes = [8, 128], strides = [1, 1]} : vector<8x384xf32> to vector<8x128xf32>
    %162 = arith.addf %160, %161 : vector<8x128xf32>
    %cst_63 = arith.constant 5.000000e-01 : f32
    %163 = vector.broadcast %cst_63 : f32 to vector<8x128xf32>
    %164 = arith.mulf %163, %162 : vector<8x128xf32>
    %165 = math.tanh %164 : vector<8x128xf32>
    %cst_64 = arith.constant 5.000000e-01 : f32
    %166 = vector.broadcast %cst_64 : f32 to vector<8x128xf32>
    %167 = arith.mulf %166, %165 : vector<8x128xf32>
    %cst_65 = arith.constant 5.000000e-01 : f32
    %168 = vector.broadcast %cst_65 : f32 to vector<8x128xf32>
    %169 = arith.addf %167, %168 : vector<8x128xf32>
    %170 = vector.extract_strided_slice %159 {offsets = [0, 128], sizes = [8, 128], strides = [1, 1]} : vector<8x384xf32> to vector<8x128xf32>
    %171 = vector.extract_strided_slice %126 {offsets = [0, 128], sizes = [8, 128], strides = [1, 1]} : vector<8x384xf32> to vector<8x128xf32>
    %172 = arith.addf %170, %171 : vector<8x128xf32>
    %cst_66 = arith.constant 5.000000e-01 : f32
    %173 = vector.broadcast %cst_66 : f32 to vector<8x128xf32>
    %174 = arith.mulf %173, %172 : vector<8x128xf32>
    %175 = math.tanh %174 : vector<8x128xf32>
    %cst_67 = arith.constant 5.000000e-01 : f32
    %176 = vector.broadcast %cst_67 : f32 to vector<8x128xf32>
    %177 = arith.mulf %176, %175 : vector<8x128xf32>
    %cst_68 = arith.constant 5.000000e-01 : f32
    %178 = vector.broadcast %cst_68 : f32 to vector<8x128xf32>
    %179 = arith.addf %177, %178 : vector<8x128xf32>
    %180 = vector.extract_strided_slice %159 {offsets = [0, 256], sizes = [8, 128], strides = [1, 1]} : vector<8x384xf32> to vector<8x128xf32>
    %181 = vector.extract_strided_slice %126 {offsets = [0, 256], sizes = [8, 128], strides = [1, 1]} : vector<8x384xf32> to vector<8x128xf32>
    %182 = arith.addf %181, %15 : vector<8x128xf32>
    %183 = arith.mulf %169, %182 : vector<8x128xf32>
    %184 = arith.addf %180, %183 : vector<8x128xf32>
    %185 = math.tanh %184 : vector<8x128xf32>
    %cst_69 = arith.constant 1.000000e+00 : f32
    %186 = vector.broadcast %cst_69 : f32 to vector<8x128xf32>
    %187 = arith.subf %186, %179 : vector<8x128xf32>
    %188 = arith.mulf %187, %185 : vector<8x128xf32>
    %189 = arith.mulf %179, %123 : vector<8x128xf32>
    %190 = arith.addf %188, %189 : vector<8x128xf32>
    %191 = arith.truncf %190 : vector<8x128xf32> to vector<8x128xbf16>
    %c0_70 = arith.constant 0 : index
    %c0_71 = arith.constant 0 : index
    %192 = vector.load %arg10[%c0_70, %c0_71] : memref<8x256xbf16, #tpu.memory_space<vmem>>, vector<8x128xbf16>
    tpu.vector_store %arg10[%c0_70, %c0_71], %191 {strides = array<i32>} : memref<8x256xbf16, #tpu.memory_space<vmem>>, vector<8x128xbf16>,
    %cst_72 = arith.constant dense<0.000000e+00> : vector<8x384xf32>
    %193 = tpu.matmul %191, %11, %cst_72 {dimension_numbers = #tpu.dot_dimension_numbers<[1], [0], [0], [1], [0, 0, 1, 1], [], []>} : vector<8x128xbf16>, vector<128x384xbf16>, vector<8x384xf32> -> vector<8x384xf32>
    %c0_73 = arith.constant 0 : index
    %c0_74 = arith.constant 0 : index
    %194 = vector.load %arg10[%c0_73, %c0_74] : memref<8x256xbf16, #tpu.memory_space<vmem>>, vector<8x256xbf16>
    %cst_75 = arith.constant dense<0.000000e+00> : vector<8x512xf32>
    %195 = tpu.matmul %194, %12, %cst_75 {dimension_numbers = #tpu.dot_dimension_numbers<[1], [0], [0], [1], [0, 0, 1, 1], [], []>} : vector<8x256xbf16>, vector<256x512xbf16>, vector<8x512xf32> -> vector<8x512xf32>
    %196 = arith.addf %195, %18 : vector<8x512xf32>
    %197 = vector.extract_strided_slice %196 {offsets = [0, 0], sizes = [8, 128], strides = [1, 1]} : vector<8x512xf32> to vector<8x128xf32>
    %cst_76 = arith.constant 5.000000e-01 : f32
    %198 = vector.broadcast %cst_76 : f32 to vector<8x128xf32>
    %199 = arith.mulf %198, %197 : vector<8x128xf32>
    %200 = math.tanh %199 : vector<8x128xf32>
    %cst_77 = arith.constant 5.000000e-01 : f32
    %201 = vector.broadcast %cst_77 : f32 to vector<8x128xf32>
    %202 = arith.mulf %201, %200 : vector<8x128xf32>
    %cst_78 = arith.constant 5.000000e-01 : f32
    %203 = vector.broadcast %cst_78 : f32 to vector<8x128xf32>
    %204 = arith.addf %202, %203 : vector<8x128xf32>
    %205 = vector.extract_strided_slice %196 {offsets = [0, 128], sizes = [8, 128], strides = [1, 1]} : vector<8x512xf32> to vector<8x128xf32>
    %cst_79 = arith.constant 5.000000e-01 : f32
    %206 = vector.broadcast %cst_79 : f32 to vector<8x128xf32>
    %207 = arith.mulf %206, %205 : vector<8x128xf32>
    %208 = math.tanh %207 : vector<8x128xf32>
    %cst_80 = arith.constant 5.000000e-01 : f32
    %209 = vector.broadcast %cst_80 : f32 to vector<8x128xf32>
    %210 = arith.mulf %209, %208 : vector<8x128xf32>
    %cst_81 = arith.constant 5.000000e-01 : f32
    %211 = vector.broadcast %cst_81 : f32 to vector<8x128xf32>
    %212 = arith.addf %210, %211 : vector<8x128xf32>
    %213 = vector.extract_strided_slice %196 {offsets = [0, 256], sizes = [8, 128], strides = [1, 1]} : vector<8x512xf32> to vector<8x128xf32>
    %214 = vector.extract_strided_slice %196 {offsets = [0, 384], sizes = [8, 128], strides = [1, 1]} : vector<8x512xf32> to vector<8x128xf32>
    %215 = arith.mulf %204, %214 : vector<8x128xf32>
    %216 = arith.addf %213, %215 : vector<8x128xf32>
    %217 = math.tanh %216 : vector<8x128xf32>
    %cst_82 = arith.constant 1.000000e+00 : f32
    %218 = vector.broadcast %cst_82 : f32 to vector<8x128xf32>
    %219 = arith.subf %218, %212 : vector<8x128xf32>
    %220 = arith.mulf %219, %217 : vector<8x128xf32>
    %221 = arith.mulf %212, %155 : vector<8x128xf32>
    %222 = arith.addf %220, %221 : vector<8x128xf32>
    %223 = arith.truncf %222 : vector<8x128xf32> to vector<8x128xbf16>
    %c0_83 = arith.constant 0 : index
    %c128_84 = arith.constant 128 : index
    %224 = vector.load %arg10[%c0_83, %c128_84] : memref<8x256xbf16, #tpu.memory_space<vmem>>, vector<8x128xbf16>
    tpu.vector_store %arg10[%c0_83, %c128_84], %223 {strides = array<i32>} : memref<8x256xbf16, #tpu.memory_space<vmem>>, vector<8x128xbf16>,
    %225 = arith.addf %158, %222 : vector<8x128xf32>
    %226 = vector.extract_strided_slice %10 {offsets = [24, 0], sizes = [8, 384], strides = [1, 1]} : vector<64x384xf32> to vector<8x384xf32>
    %227 = vector.extract_strided_slice %226 {offsets = [0, 0], sizes = [8, 128], strides = [1, 1]} : vector<8x384xf32> to vector<8x128xf32>
    %228 = vector.extract_strided_slice %193 {offsets = [0, 0], sizes = [8, 128], strides = [1, 1]} : vector<8x384xf32> to vector<8x128xf32>
    %229 = arith.addf %227, %228 : vector<8x128xf32>
    %cst_85 = arith.constant 5.000000e-01 : f32
    %230 = vector.broadcast %cst_85 : f32 to vector<8x128xf32>
    %231 = arith.mulf %230, %229 : vector<8x128xf32>
    %232 = math.tanh %231 : vector<8x128xf32>
    %cst_86 = arith.constant 5.000000e-01 : f32
    %233 = vector.broadcast %cst_86 : f32 to vector<8x128xf32>
    %234 = arith.mulf %233, %232 : vector<8x128xf32>
    %cst_87 = arith.constant 5.000000e-01 : f32
    %235 = vector.broadcast %cst_87 : f32 to vector<8x128xf32>
    %236 = arith.addf %234, %235 : vector<8x128xf32>
    %237 = vector.extract_strided_slice %226 {offsets = [0, 128], sizes = [8, 128], strides = [1, 1]} : vector<8x384xf32> to vector<8x128xf32>
    %238 = vector.extract_strided_slice %193 {offsets = [0, 128], sizes = [8, 128], strides = [1, 1]} : vector<8x384xf32> to vector<8x128xf32>
    %239 = arith.addf %237, %238 : vector<8x128xf32>
    %cst_88 = arith.constant 5.000000e-01 : f32
    %240 = vector.broadcast %cst_88 : f32 to vector<8x128xf32>
    %241 = arith.mulf %240, %239 : vector<8x128xf32>
    %242 = math.tanh %241 : vector<8x128xf32>
    %cst_89 = arith.constant 5.000000e-01 : f32
    %243 = vector.broadcast %cst_89 : f32 to vector<8x128xf32>
    %244 = arith.mulf %243, %242 : vector<8x128xf32>
    %cst_90 = arith.constant 5.000000e-01 : f32
    %245 = vector.broadcast %cst_90 : f32 to vector<8x128xf32>
    %246 = arith.addf %244, %245 : vector<8x128xf32>
    %247 = vector.extract_strided_slice %226 {offsets = [0, 256], sizes = [8, 128], strides = [1, 1]} : vector<8x384xf32> to vector<8x128xf32>
    %248 = vector.extract_strided_slice %193 {offsets = [0, 256], sizes = [8, 128], strides = [1, 1]} : vector<8x384xf32> to vector<8x128xf32>
    %249 = arith.addf %248, %15 : vector<8x128xf32>
    %250 = arith.mulf %236, %249 : vector<8x128xf32>
    %251 = arith.addf %247, %250 : vector<8x128xf32>
    %252 = math.tanh %251 : vector<8x128xf32>
    %cst_91 = arith.constant 1.000000e+00 : f32
    %253 = vector.broadcast %cst_91 : f32 to vector<8x128xf32>
    %254 = arith.subf %253, %246 : vector<8x128xf32>
    %255 = arith.mulf %254, %252 : vector<8x128xf32>
    %256 = arith.mulf %246, %190 : vector<8x128xf32>
    %257 = arith.addf %255, %256 : vector<8x128xf32>
    %258 = arith.truncf %257 : vector<8x128xf32> to vector<8x128xbf16>
    %c0_92 = arith.constant 0 : index
    %c0_93 = arith.constant 0 : index
    %259 = vector.load %arg10[%c0_92, %c0_93] : memref<8x256xbf16, #tpu.memory_space<vmem>>, vector<8x128xbf16>
    tpu.vector_store %arg10[%c0_92, %c0_93], %258 {strides = array<i32>} : memref<8x256xbf16, #tpu.memory_space<vmem>>, vector<8x128xbf16>,
    %cst_94 = arith.constant dense<0.000000e+00> : vector<8x384xf32>
    %260 = tpu.matmul %258, %11, %cst_94 {dimension_numbers = #tpu.dot_dimension_numbers<[1], [0], [0], [1], [0, 0, 1, 1], [], []>} : vector<8x128xbf16>, vector<128x384xbf16>, vector<8x384xf32> -> vector<8x384xf32>
    %c0_95 = arith.constant 0 : index
    %c0_96 = arith.constant 0 : index
    %261 = vector.load %arg10[%c0_95, %c0_96] : memref<8x256xbf16, #tpu.memory_space<vmem>>, vector<8x256xbf16>
    %cst_97 = arith.constant dense<0.000000e+00> : vector<8x512xf32>
    %262 = tpu.matmul %261, %12, %cst_97 {dimension_numbers = #tpu.dot_dimension_numbers<[1], [0], [0], [1], [0, 0, 1, 1], [], []>} : vector<8x256xbf16>, vector<256x512xbf16>, vector<8x512xf32> -> vector<8x512xf32>
    %263 = arith.addf %262, %18 : vector<8x512xf32>
    %264 = vector.extract_strided_slice %263 {offsets = [0, 0], sizes = [8, 128], strides = [1, 1]} : vector<8x512xf32> to vector<8x128xf32>
    %cst_98 = arith.constant 5.000000e-01 : f32
    %265 = vector.broadcast %cst_98 : f32 to vector<8x128xf32>
    %266 = arith.mulf %265, %264 : vector<8x128xf32>
    %267 = math.tanh %266 : vector<8x128xf32>
    %cst_99 = arith.constant 5.000000e-01 : f32
    %268 = vector.broadcast %cst_99 : f32 to vector<8x128xf32>
    %269 = arith.mulf %268, %267 : vector<8x128xf32>
    %cst_100 = arith.constant 5.000000e-01 : f32
    %270 = vector.broadcast %cst_100 : f32 to vector<8x128xf32>
    %271 = arith.addf %269, %270 : vector<8x128xf32>
    %272 = vector.extract_strided_slice %263 {offsets = [0, 128], sizes = [8, 128], strides = [1, 1]} : vector<8x512xf32> to vector<8x128xf32>
    %cst_101 = arith.constant 5.000000e-01 : f32
    %273 = vector.broadcast %cst_101 : f32 to vector<8x128xf32>
    %274 = arith.mulf %273, %272 : vector<8x128xf32>
    %275 = math.tanh %274 : vector<8x128xf32>
    %cst_102 = arith.constant 5.000000e-01 : f32
    %276 = vector.broadcast %cst_102 : f32 to vector<8x128xf32>
    %277 = arith.mulf %276, %275 : vector<8x128xf32>
    %cst_103 = arith.constant 5.000000e-01 : f32
    %278 = vector.broadcast %cst_103 : f32 to vector<8x128xf32>
    %279 = arith.addf %277, %278 : vector<8x128xf32>
    %280 = vector.extract_strided_slice %263 {offsets = [0, 256], sizes = [8, 128], strides = [1, 1]} : vector<8x512xf32> to vector<8x128xf32>
    %281 = vector.extract_strided_slice %263 {offsets = [0, 384], sizes = [8, 128], strides = [1, 1]} : vector<8x512xf32> to vector<8x128xf32>
    %282 = arith.mulf %271, %281 : vector<8x128xf32>
    %283 = arith.addf %280, %282 : vector<8x128xf32>
    %284 = math.tanh %283 : vector<8x128xf32>
    %cst_104 = arith.constant 1.000000e+00 : f32
    %285 = vector.broadcast %cst_104 : f32 to vector<8x128xf32>
    %286 = arith.subf %285, %279 : vector<8x128xf32>
    %287 = arith.mulf %286, %284 : vector<8x128xf32>
    %288 = arith.mulf %279, %222 : vector<8x128xf32>
    %289 = arith.addf %287, %288 : vector<8x128xf32>
    %290 = arith.truncf %289 : vector<8x128xf32> to vector<8x128xbf16>
    %c0_105 = arith.constant 0 : index
    %c128_106 = arith.constant 128 : index
    %291 = vector.load %arg10[%c0_105, %c128_106] : memref<8x256xbf16, #tpu.memory_space<vmem>>, vector<8x128xbf16>
    tpu.vector_store %arg10[%c0_105, %c128_106], %290 {strides = array<i32>} : memref<8x256xbf16, #tpu.memory_space<vmem>>, vector<8x128xbf16>,
    %292 = arith.addf %225, %289 : vector<8x128xf32>
    %293 = vector.extract_strided_slice %10 {offsets = [32, 0], sizes = [8, 384], strides = [1, 1]} : vector<64x384xf32> to vector<8x384xf32>
    %294 = vector.extract_strided_slice %293 {offsets = [0, 0], sizes = [8, 128], strides = [1, 1]} : vector<8x384xf32> to vector<8x128xf32>
    %295 = vector.extract_strided_slice %260 {offsets = [0, 0], sizes = [8, 128], strides = [1, 1]} : vector<8x384xf32> to vector<8x128xf32>
    %296 = arith.addf %294, %295 : vector<8x128xf32>
    %cst_107 = arith.constant 5.000000e-01 : f32
    %297 = vector.broadcast %cst_107 : f32 to vector<8x128xf32>
    %298 = arith.mulf %297, %296 : vector<8x128xf32>
    %299 = math.tanh %298 : vector<8x128xf32>
    %cst_108 = arith.constant 5.000000e-01 : f32
    %300 = vector.broadcast %cst_108 : f32 to vector<8x128xf32>
    %301 = arith.mulf %300, %299 : vector<8x128xf32>
    %cst_109 = arith.constant 5.000000e-01 : f32
    %302 = vector.broadcast %cst_109 : f32 to vector<8x128xf32>
    %303 = arith.addf %301, %302 : vector<8x128xf32>
    %304 = vector.extract_strided_slice %293 {offsets = [0, 128], sizes = [8, 128], strides = [1, 1]} : vector<8x384xf32> to vector<8x128xf32>
    %305 = vector.extract_strided_slice %260 {offsets = [0, 128], sizes = [8, 128], strides = [1, 1]} : vector<8x384xf32> to vector<8x128xf32>
    %306 = arith.addf %304, %305 : vector<8x128xf32>
    %cst_110 = arith.constant 5.000000e-01 : f32
    %307 = vector.broadcast %cst_110 : f32 to vector<8x128xf32>
    %308 = arith.mulf %307, %306 : vector<8x128xf32>
    %309 = math.tanh %308 : vector<8x128xf32>
    %cst_111 = arith.constant 5.000000e-01 : f32
    %310 = vector.broadcast %cst_111 : f32 to vector<8x128xf32>
    %311 = arith.mulf %310, %309 : vector<8x128xf32>
    %cst_112 = arith.constant 5.000000e-01 : f32
    %312 = vector.broadcast %cst_112 : f32 to vector<8x128xf32>
    %313 = arith.addf %311, %312 : vector<8x128xf32>
    %314 = vector.extract_strided_slice %293 {offsets = [0, 256], sizes = [8, 128], strides = [1, 1]} : vector<8x384xf32> to vector<8x128xf32>
    %315 = vector.extract_strided_slice %260 {offsets = [0, 256], sizes = [8, 128], strides = [1, 1]} : vector<8x384xf32> to vector<8x128xf32>
    %316 = arith.addf %315, %15 : vector<8x128xf32>
    %317 = arith.mulf %303, %316 : vector<8x128xf32>
    %318 = arith.addf %314, %317 : vector<8x128xf32>
    %319 = math.tanh %318 : vector<8x128xf32>
    %cst_113 = arith.constant 1.000000e+00 : f32
    %320 = vector.broadcast %cst_113 : f32 to vector<8x128xf32>
    %321 = arith.subf %320, %313 : vector<8x128xf32>
    %322 = arith.mulf %321, %319 : vector<8x128xf32>
    %323 = arith.mulf %313, %257 : vector<8x128xf32>
    %324 = arith.addf %322, %323 : vector<8x128xf32>
    %325 = arith.truncf %324 : vector<8x128xf32> to vector<8x128xbf16>
    %c0_114 = arith.constant 0 : index
    %c0_115 = arith.constant 0 : index
    %326 = vector.load %arg10[%c0_114, %c0_115] : memref<8x256xbf16, #tpu.memory_space<vmem>>, vector<8x128xbf16>
    tpu.vector_store %arg10[%c0_114, %c0_115], %325 {strides = array<i32>} : memref<8x256xbf16, #tpu.memory_space<vmem>>, vector<8x128xbf16>,
    %cst_116 = arith.constant dense<0.000000e+00> : vector<8x384xf32>
    %327 = tpu.matmul %325, %11, %cst_116 {dimension_numbers = #tpu.dot_dimension_numbers<[1], [0], [0], [1], [0, 0, 1, 1], [], []>} : vector<8x128xbf16>, vector<128x384xbf16>, vector<8x384xf32> -> vector<8x384xf32>
    %c0_117 = arith.constant 0 : index
    %c0_118 = arith.constant 0 : index
    %328 = vector.load %arg10[%c0_117, %c0_118] : memref<8x256xbf16, #tpu.memory_space<vmem>>, vector<8x256xbf16>
    %cst_119 = arith.constant dense<0.000000e+00> : vector<8x512xf32>
    %329 = tpu.matmul %328, %12, %cst_119 {dimension_numbers = #tpu.dot_dimension_numbers<[1], [0], [0], [1], [0, 0, 1, 1], [], []>} : vector<8x256xbf16>, vector<256x512xbf16>, vector<8x512xf32> -> vector<8x512xf32>
    %330 = arith.addf %329, %18 : vector<8x512xf32>
    %331 = vector.extract_strided_slice %330 {offsets = [0, 0], sizes = [8, 128], strides = [1, 1]} : vector<8x512xf32> to vector<8x128xf32>
    %cst_120 = arith.constant 5.000000e-01 : f32
    %332 = vector.broadcast %cst_120 : f32 to vector<8x128xf32>
    %333 = arith.mulf %332, %331 : vector<8x128xf32>
    %334 = math.tanh %333 : vector<8x128xf32>
    %cst_121 = arith.constant 5.000000e-01 : f32
    %335 = vector.broadcast %cst_121 : f32 to vector<8x128xf32>
    %336 = arith.mulf %335, %334 : vector<8x128xf32>
    %cst_122 = arith.constant 5.000000e-01 : f32
    %337 = vector.broadcast %cst_122 : f32 to vector<8x128xf32>
    %338 = arith.addf %336, %337 : vector<8x128xf32>
    %339 = vector.extract_strided_slice %330 {offsets = [0, 128], sizes = [8, 128], strides = [1, 1]} : vector<8x512xf32> to vector<8x128xf32>
    %cst_123 = arith.constant 5.000000e-01 : f32
    %340 = vector.broadcast %cst_123 : f32 to vector<8x128xf32>
    %341 = arith.mulf %340, %339 : vector<8x128xf32>
    %342 = math.tanh %341 : vector<8x128xf32>
    %cst_124 = arith.constant 5.000000e-01 : f32
    %343 = vector.broadcast %cst_124 : f32 to vector<8x128xf32>
    %344 = arith.mulf %343, %342 : vector<8x128xf32>
    %cst_125 = arith.constant 5.000000e-01 : f32
    %345 = vector.broadcast %cst_125 : f32 to vector<8x128xf32>
    %346 = arith.addf %344, %345 : vector<8x128xf32>
    %347 = vector.extract_strided_slice %330 {offsets = [0, 256], sizes = [8, 128], strides = [1, 1]} : vector<8x512xf32> to vector<8x128xf32>
    %348 = vector.extract_strided_slice %330 {offsets = [0, 384], sizes = [8, 128], strides = [1, 1]} : vector<8x512xf32> to vector<8x128xf32>
    %349 = arith.mulf %338, %348 : vector<8x128xf32>
    %350 = arith.addf %347, %349 : vector<8x128xf32>
    %351 = math.tanh %350 : vector<8x128xf32>
    %cst_126 = arith.constant 1.000000e+00 : f32
    %352 = vector.broadcast %cst_126 : f32 to vector<8x128xf32>
    %353 = arith.subf %352, %346 : vector<8x128xf32>
    %354 = arith.mulf %353, %351 : vector<8x128xf32>
    %355 = arith.mulf %346, %289 : vector<8x128xf32>
    %356 = arith.addf %354, %355 : vector<8x128xf32>
    %357 = arith.truncf %356 : vector<8x128xf32> to vector<8x128xbf16>
    %c0_127 = arith.constant 0 : index
    %c128_128 = arith.constant 128 : index
    %358 = vector.load %arg10[%c0_127, %c128_128] : memref<8x256xbf16, #tpu.memory_space<vmem>>, vector<8x128xbf16>
    tpu.vector_store %arg10[%c0_127, %c128_128], %357 {strides = array<i32>} : memref<8x256xbf16, #tpu.memory_space<vmem>>, vector<8x128xbf16>,
    %359 = arith.addf %292, %356 : vector<8x128xf32>
    %360 = vector.extract_strided_slice %10 {offsets = [40, 0], sizes = [8, 384], strides = [1, 1]} : vector<64x384xf32> to vector<8x384xf32>
    %361 = vector.extract_strided_slice %360 {offsets = [0, 0], sizes = [8, 128], strides = [1, 1]} : vector<8x384xf32> to vector<8x128xf32>
    %362 = vector.extract_strided_slice %327 {offsets = [0, 0], sizes = [8, 128], strides = [1, 1]} : vector<8x384xf32> to vector<8x128xf32>
    %363 = arith.addf %361, %362 : vector<8x128xf32>
    %cst_129 = arith.constant 5.000000e-01 : f32
    %364 = vector.broadcast %cst_129 : f32 to vector<8x128xf32>
    %365 = arith.mulf %364, %363 : vector<8x128xf32>
    %366 = math.tanh %365 : vector<8x128xf32>
    %cst_130 = arith.constant 5.000000e-01 : f32
    %367 = vector.broadcast %cst_130 : f32 to vector<8x128xf32>
    %368 = arith.mulf %367, %366 : vector<8x128xf32>
    %cst_131 = arith.constant 5.000000e-01 : f32
    %369 = vector.broadcast %cst_131 : f32 to vector<8x128xf32>
    %370 = arith.addf %368, %369 : vector<8x128xf32>
    %371 = vector.extract_strided_slice %360 {offsets = [0, 128], sizes = [8, 128], strides = [1, 1]} : vector<8x384xf32> to vector<8x128xf32>
    %372 = vector.extract_strided_slice %327 {offsets = [0, 128], sizes = [8, 128], strides = [1, 1]} : vector<8x384xf32> to vector<8x128xf32>
    %373 = arith.addf %371, %372 : vector<8x128xf32>
    %cst_132 = arith.constant 5.000000e-01 : f32
    %374 = vector.broadcast %cst_132 : f32 to vector<8x128xf32>
    %375 = arith.mulf %374, %373 : vector<8x128xf32>
    %376 = math.tanh %375 : vector<8x128xf32>
    %cst_133 = arith.constant 5.000000e-01 : f32
    %377 = vector.broadcast %cst_133 : f32 to vector<8x128xf32>
    %378 = arith.mulf %377, %376 : vector<8x128xf32>
    %cst_134 = arith.constant 5.000000e-01 : f32
    %379 = vector.broadcast %cst_134 : f32 to vector<8x128xf32>
    %380 = arith.addf %378, %379 : vector<8x128xf32>
    %381 = vector.extract_strided_slice %360 {offsets = [0, 256], sizes = [8, 128], strides = [1, 1]} : vector<8x384xf32> to vector<8x128xf32>
    %382 = vector.extract_strided_slice %327 {offsets = [0, 256], sizes = [8, 128], strides = [1, 1]} : vector<8x384xf32> to vector<8x128xf32>
    %383 = arith.addf %382, %15 : vector<8x128xf32>
    %384 = arith.mulf %370, %383 : vector<8x128xf32>
    %385 = arith.addf %381, %384 : vector<8x128xf32>
    %386 = math.tanh %385 : vector<8x128xf32>
    %cst_135 = arith.constant 1.000000e+00 : f32
    %387 = vector.broadcast %cst_135 : f32 to vector<8x128xf32>
    %388 = arith.subf %387, %380 : vector<8x128xf32>
    %389 = arith.mulf %388, %386 : vector<8x128xf32>
    %390 = arith.mulf %380, %324 : vector<8x128xf32>
    %391 = arith.addf %389, %390 : vector<8x128xf32>
    %392 = arith.truncf %391 : vector<8x128xf32> to vector<8x128xbf16>
    %c0_136 = arith.constant 0 : index
    %c0_137 = arith.constant 0 : index
    %393 = vector.load %arg10[%c0_136, %c0_137] : memref<8x256xbf16, #tpu.memory_space<vmem>>, vector<8x128xbf16>
    tpu.vector_store %arg10[%c0_136, %c0_137], %392 {strides = array<i32>} : memref<8x256xbf16, #tpu.memory_space<vmem>>, vector<8x128xbf16>,
    %cst_138 = arith.constant dense<0.000000e+00> : vector<8x384xf32>
    %394 = tpu.matmul %392, %11, %cst_138 {dimension_numbers = #tpu.dot_dimension_numbers<[1], [0], [0], [1], [0, 0, 1, 1], [], []>} : vector<8x128xbf16>, vector<128x384xbf16>, vector<8x384xf32> -> vector<8x384xf32>
    %c0_139 = arith.constant 0 : index
    %c0_140 = arith.constant 0 : index
    %395 = vector.load %arg10[%c0_139, %c0_140] : memref<8x256xbf16, #tpu.memory_space<vmem>>, vector<8x256xbf16>
    %cst_141 = arith.constant dense<0.000000e+00> : vector<8x512xf32>
    %396 = tpu.matmul %395, %12, %cst_141 {dimension_numbers = #tpu.dot_dimension_numbers<[1], [0], [0], [1], [0, 0, 1, 1], [], []>} : vector<8x256xbf16>, vector<256x512xbf16>, vector<8x512xf32> -> vector<8x512xf32>
    %397 = arith.addf %396, %18 : vector<8x512xf32>
    %398 = vector.extract_strided_slice %397 {offsets = [0, 0], sizes = [8, 128], strides = [1, 1]} : vector<8x512xf32> to vector<8x128xf32>
    %cst_142 = arith.constant 5.000000e-01 : f32
    %399 = vector.broadcast %cst_142 : f32 to vector<8x128xf32>
    %400 = arith.mulf %399, %398 : vector<8x128xf32>
    %401 = math.tanh %400 : vector<8x128xf32>
    %cst_143 = arith.constant 5.000000e-01 : f32
    %402 = vector.broadcast %cst_143 : f32 to vector<8x128xf32>
    %403 = arith.mulf %402, %401 : vector<8x128xf32>
    %cst_144 = arith.constant 5.000000e-01 : f32
    %404 = vector.broadcast %cst_144 : f32 to vector<8x128xf32>
    %405 = arith.addf %403, %404 : vector<8x128xf32>
    %406 = vector.extract_strided_slice %397 {offsets = [0, 128], sizes = [8, 128], strides = [1, 1]} : vector<8x512xf32> to vector<8x128xf32>
    %cst_145 = arith.constant 5.000000e-01 : f32
    %407 = vector.broadcast %cst_145 : f32 to vector<8x128xf32>
    %408 = arith.mulf %407, %406 : vector<8x128xf32>
    %409 = math.tanh %408 : vector<8x128xf32>
    %cst_146 = arith.constant 5.000000e-01 : f32
    %410 = vector.broadcast %cst_146 : f32 to vector<8x128xf32>
    %411 = arith.mulf %410, %409 : vector<8x128xf32>
    %cst_147 = arith.constant 5.000000e-01 : f32
    %412 = vector.broadcast %cst_147 : f32 to vector<8x128xf32>
    %413 = arith.addf %411, %412 : vector<8x128xf32>
    %414 = vector.extract_strided_slice %397 {offsets = [0, 256], sizes = [8, 128], strides = [1, 1]} : vector<8x512xf32> to vector<8x128xf32>
    %415 = vector.extract_strided_slice %397 {offsets = [0, 384], sizes = [8, 128], strides = [1, 1]} : vector<8x512xf32> to vector<8x128xf32>
    %416 = arith.mulf %405, %415 : vector<8x128xf32>
    %417 = arith.addf %414, %416 : vector<8x128xf32>
    %418 = math.tanh %417 : vector<8x128xf32>
    %cst_148 = arith.constant 1.000000e+00 : f32
    %419 = vector.broadcast %cst_148 : f32 to vector<8x128xf32>
    %420 = arith.subf %419, %413 : vector<8x128xf32>
    %421 = arith.mulf %420, %418 : vector<8x128xf32>
    %422 = arith.mulf %413, %356 : vector<8x128xf32>
    %423 = arith.addf %421, %422 : vector<8x128xf32>
    %424 = arith.truncf %423 : vector<8x128xf32> to vector<8x128xbf16>
    %c0_149 = arith.constant 0 : index
    %c128_150 = arith.constant 128 : index
    %425 = vector.load %arg10[%c0_149, %c128_150] : memref<8x256xbf16, #tpu.memory_space<vmem>>, vector<8x128xbf16>
    tpu.vector_store %arg10[%c0_149, %c128_150], %424 {strides = array<i32>} : memref<8x256xbf16, #tpu.memory_space<vmem>>, vector<8x128xbf16>,
    %426 = arith.addf %359, %423 : vector<8x128xf32>
    %427 = vector.extract_strided_slice %10 {offsets = [48, 0], sizes = [8, 384], strides = [1, 1]} : vector<64x384xf32> to vector<8x384xf32>
    %428 = vector.extract_strided_slice %427 {offsets = [0, 0], sizes = [8, 128], strides = [1, 1]} : vector<8x384xf32> to vector<8x128xf32>
    %429 = vector.extract_strided_slice %394 {offsets = [0, 0], sizes = [8, 128], strides = [1, 1]} : vector<8x384xf32> to vector<8x128xf32>
    %430 = arith.addf %428, %429 : vector<8x128xf32>
    %cst_151 = arith.constant 5.000000e-01 : f32
    %431 = vector.broadcast %cst_151 : f32 to vector<8x128xf32>
    %432 = arith.mulf %431, %430 : vector<8x128xf32>
    %433 = math.tanh %432 : vector<8x128xf32>
    %cst_152 = arith.constant 5.000000e-01 : f32
    %434 = vector.broadcast %cst_152 : f32 to vector<8x128xf32>
    %435 = arith.mulf %434, %433 : vector<8x128xf32>
    %cst_153 = arith.constant 5.000000e-01 : f32
    %436 = vector.broadcast %cst_153 : f32 to vector<8x128xf32>
    %437 = arith.addf %435, %436 : vector<8x128xf32>
    %438 = vector.extract_strided_slice %427 {offsets = [0, 128], sizes = [8, 128], strides = [1, 1]} : vector<8x384xf32> to vector<8x128xf32>
    %439 = vector.extract_strided_slice %394 {offsets = [0, 128], sizes = [8, 128], strides = [1, 1]} : vector<8x384xf32> to vector<8x128xf32>
    %440 = arith.addf %438, %439 : vector<8x128xf32>
    %cst_154 = arith.constant 5.000000e-01 : f32
    %441 = vector.broadcast %cst_154 : f32 to vector<8x128xf32>
    %442 = arith.mulf %441, %440 : vector<8x128xf32>
    %443 = math.tanh %442 : vector<8x128xf32>
    %cst_155 = arith.constant 5.000000e-01 : f32
    %444 = vector.broadcast %cst_155 : f32 to vector<8x128xf32>
    %445 = arith.mulf %444, %443 : vector<8x128xf32>
    %cst_156 = arith.constant 5.000000e-01 : f32
    %446 = vector.broadcast %cst_156 : f32 to vector<8x128xf32>
    %447 = arith.addf %445, %446 : vector<8x128xf32>
    %448 = vector.extract_strided_slice %427 {offsets = [0, 256], sizes = [8, 128], strides = [1, 1]} : vector<8x384xf32> to vector<8x128xf32>
    %449 = vector.extract_strided_slice %394 {offsets = [0, 256], sizes = [8, 128], strides = [1, 1]} : vector<8x384xf32> to vector<8x128xf32>
    %450 = arith.addf %449, %15 : vector<8x128xf32>
    %451 = arith.mulf %437, %450 : vector<8x128xf32>
    %452 = arith.addf %448, %451 : vector<8x128xf32>
    %453 = math.tanh %452 : vector<8x128xf32>
    %cst_157 = arith.constant 1.000000e+00 : f32
    %454 = vector.broadcast %cst_157 : f32 to vector<8x128xf32>
    %455 = arith.subf %454, %447 : vector<8x128xf32>
    %456 = arith.mulf %455, %453 : vector<8x128xf32>
    %457 = arith.mulf %447, %391 : vector<8x128xf32>
    %458 = arith.addf %456, %457 : vector<8x128xf32>
    %459 = arith.truncf %458 : vector<8x128xf32> to vector<8x128xbf16>
    %c0_158 = arith.constant 0 : index
    %c0_159 = arith.constant 0 : index
    %460 = vector.load %arg10[%c0_158, %c0_159] : memref<8x256xbf16, #tpu.memory_space<vmem>>, vector<8x128xbf16>
    tpu.vector_store %arg10[%c0_158, %c0_159], %459 {strides = array<i32>} : memref<8x256xbf16, #tpu.memory_space<vmem>>, vector<8x128xbf16>,
    %cst_160 = arith.constant dense<0.000000e+00> : vector<8x384xf32>
    %461 = tpu.matmul %459, %11, %cst_160 {dimension_numbers = #tpu.dot_dimension_numbers<[1], [0], [0], [1], [0, 0, 1, 1], [], []>} : vector<8x128xbf16>, vector<128x384xbf16>, vector<8x384xf32> -> vector<8x384xf32>
    %c0_161 = arith.constant 0 : index
    %c0_162 = arith.constant 0 : index
    %462 = vector.load %arg10[%c0_161, %c0_162] : memref<8x256xbf16, #tpu.memory_space<vmem>>, vector<8x256xbf16>
    %cst_163 = arith.constant dense<0.000000e+00> : vector<8x512xf32>
    %463 = tpu.matmul %462, %12, %cst_163 {dimension_numbers = #tpu.dot_dimension_numbers<[1], [0], [0], [1], [0, 0, 1, 1], [], []>} : vector<8x256xbf16>, vector<256x512xbf16>, vector<8x512xf32> -> vector<8x512xf32>
    %464 = arith.addf %463, %18 : vector<8x512xf32>
    %465 = vector.extract_strided_slice %464 {offsets = [0, 0], sizes = [8, 128], strides = [1, 1]} : vector<8x512xf32> to vector<8x128xf32>
    %cst_164 = arith.constant 5.000000e-01 : f32
    %466 = vector.broadcast %cst_164 : f32 to vector<8x128xf32>
    %467 = arith.mulf %466, %465 : vector<8x128xf32>
    %468 = math.tanh %467 : vector<8x128xf32>
    %cst_165 = arith.constant 5.000000e-01 : f32
    %469 = vector.broadcast %cst_165 : f32 to vector<8x128xf32>
    %470 = arith.mulf %469, %468 : vector<8x128xf32>
    %cst_166 = arith.constant 5.000000e-01 : f32
    %471 = vector.broadcast %cst_166 : f32 to vector<8x128xf32>
    %472 = arith.addf %470, %471 : vector<8x128xf32>
    %473 = vector.extract_strided_slice %464 {offsets = [0, 128], sizes = [8, 128], strides = [1, 1]} : vector<8x512xf32> to vector<8x128xf32>
    %cst_167 = arith.constant 5.000000e-01 : f32
    %474 = vector.broadcast %cst_167 : f32 to vector<8x128xf32>
    %475 = arith.mulf %474, %473 : vector<8x128xf32>
    %476 = math.tanh %475 : vector<8x128xf32>
    %cst_168 = arith.constant 5.000000e-01 : f32
    %477 = vector.broadcast %cst_168 : f32 to vector<8x128xf32>
    %478 = arith.mulf %477, %476 : vector<8x128xf32>
    %cst_169 = arith.constant 5.000000e-01 : f32
    %479 = vector.broadcast %cst_169 : f32 to vector<8x128xf32>
    %480 = arith.addf %478, %479 : vector<8x128xf32>
    %481 = vector.extract_strided_slice %464 {offsets = [0, 256], sizes = [8, 128], strides = [1, 1]} : vector<8x512xf32> to vector<8x128xf32>
    %482 = vector.extract_strided_slice %464 {offsets = [0, 384], sizes = [8, 128], strides = [1, 1]} : vector<8x512xf32> to vector<8x128xf32>
    %483 = arith.mulf %472, %482 : vector<8x128xf32>
    %484 = arith.addf %481, %483 : vector<8x128xf32>
    %485 = math.tanh %484 : vector<8x128xf32>
    %cst_170 = arith.constant 1.000000e+00 : f32
    %486 = vector.broadcast %cst_170 : f32 to vector<8x128xf32>
    %487 = arith.subf %486, %480 : vector<8x128xf32>
    %488 = arith.mulf %487, %485 : vector<8x128xf32>
    %489 = arith.mulf %480, %423 : vector<8x128xf32>
    %490 = arith.addf %488, %489 : vector<8x128xf32>
    %491 = arith.truncf %490 : vector<8x128xf32> to vector<8x128xbf16>
    %c0_171 = arith.constant 0 : index
    %c128_172 = arith.constant 128 : index
    %492 = vector.load %arg10[%c0_171, %c128_172] : memref<8x256xbf16, #tpu.memory_space<vmem>>, vector<8x128xbf16>
    tpu.vector_store %arg10[%c0_171, %c128_172], %491 {strides = array<i32>} : memref<8x256xbf16, #tpu.memory_space<vmem>>, vector<8x128xbf16>,
    %493 = arith.addf %426, %490 : vector<8x128xf32>
    %494 = vector.extract_strided_slice %10 {offsets = [56, 0], sizes = [8, 384], strides = [1, 1]} : vector<64x384xf32> to vector<8x384xf32>
    %495 = vector.extract_strided_slice %494 {offsets = [0, 0], sizes = [8, 128], strides = [1, 1]} : vector<8x384xf32> to vector<8x128xf32>
    %496 = vector.extract_strided_slice %461 {offsets = [0, 0], sizes = [8, 128], strides = [1, 1]} : vector<8x384xf32> to vector<8x128xf32>
    %497 = arith.addf %495, %496 : vector<8x128xf32>
    %cst_173 = arith.constant 5.000000e-01 : f32
    %498 = vector.broadcast %cst_173 : f32 to vector<8x128xf32>
    %499 = arith.mulf %498, %497 : vector<8x128xf32>
    %500 = math.tanh %499 : vector<8x128xf32>
    %cst_174 = arith.constant 5.000000e-01 : f32
    %501 = vector.broadcast %cst_174 : f32 to vector<8x128xf32>
    %502 = arith.mulf %501, %500 : vector<8x128xf32>
    %cst_175 = arith.constant 5.000000e-01 : f32
    %503 = vector.broadcast %cst_175 : f32 to vector<8x128xf32>
    %504 = arith.addf %502, %503 : vector<8x128xf32>
    %505 = vector.extract_strided_slice %494 {offsets = [0, 128], sizes = [8, 128], strides = [1, 1]} : vector<8x384xf32> to vector<8x128xf32>
    %506 = vector.extract_strided_slice %461 {offsets = [0, 128], sizes = [8, 128], strides = [1, 1]} : vector<8x384xf32> to vector<8x128xf32>
    %507 = arith.addf %505, %506 : vector<8x128xf32>
    %cst_176 = arith.constant 5.000000e-01 : f32
    %508 = vector.broadcast %cst_176 : f32 to vector<8x128xf32>
    %509 = arith.mulf %508, %507 : vector<8x128xf32>
    %510 = math.tanh %509 : vector<8x128xf32>
    %cst_177 = arith.constant 5.000000e-01 : f32
    %511 = vector.broadcast %cst_177 : f32 to vector<8x128xf32>
    %512 = arith.mulf %511, %510 : vector<8x128xf32>
    %cst_178 = arith.constant 5.000000e-01 : f32
    %513 = vector.broadcast %cst_178 : f32 to vector<8x128xf32>
    %514 = arith.addf %512, %513 : vector<8x128xf32>
    %515 = vector.extract_strided_slice %494 {offsets = [0, 256], sizes = [8, 128], strides = [1, 1]} : vector<8x384xf32> to vector<8x128xf32>
    %516 = vector.extract_strided_slice %461 {offsets = [0, 256], sizes = [8, 128], strides = [1, 1]} : vector<8x384xf32> to vector<8x128xf32>
    %517 = arith.addf %516, %15 : vector<8x128xf32>
    %518 = arith.mulf %504, %517 : vector<8x128xf32>
    %519 = arith.addf %515, %518 : vector<8x128xf32>
    %520 = math.tanh %519 : vector<8x128xf32>
    %cst_179 = arith.constant 1.000000e+00 : f32
    %521 = vector.broadcast %cst_179 : f32 to vector<8x128xf32>
    %522 = arith.subf %521, %514 : vector<8x128xf32>
    %523 = arith.mulf %522, %520 : vector<8x128xf32>
    %524 = arith.mulf %514, %458 : vector<8x128xf32>
    %525 = arith.addf %523, %524 : vector<8x128xf32>
    %526 = arith.truncf %525 : vector<8x128xf32> to vector<8x128xbf16>
    %c0_180 = arith.constant 0 : index
    %c0_181 = arith.constant 0 : index
    %527 = vector.load %arg10[%c0_180, %c0_181] : memref<8x256xbf16, #tpu.memory_space<vmem>>, vector<8x128xbf16>
    tpu.vector_store %arg10[%c0_180, %c0_181], %526 {strides = array<i32>} : memref<8x256xbf16, #tpu.memory_space<vmem>>, vector<8x128xbf16>,
    %c0_182 = arith.constant 0 : index
    %c0_183 = arith.constant 0 : index
    %528 = vector.load %arg10[%c0_182, %c0_183] : memref<8x256xbf16, #tpu.memory_space<vmem>>, vector<8x256xbf16>
    %cst_184 = arith.constant dense<0.000000e+00> : vector<8x512xf32>
    %529 = tpu.matmul %528, %12, %cst_184 {dimension_numbers = #tpu.dot_dimension_numbers<[1], [0], [0], [1], [0, 0, 1, 1], [], []>} : vector<8x256xbf16>, vector<256x512xbf16>, vector<8x512xf32> -> vector<8x512xf32>
    %530 = arith.addf %529, %18 : vector<8x512xf32>
    %531 = vector.extract_strided_slice %530 {offsets = [0, 0], sizes = [8, 128], strides = [1, 1]} : vector<8x512xf32> to vector<8x128xf32>
    %cst_185 = arith.constant 5.000000e-01 : f32
    %532 = vector.broadcast %cst_185 : f32 to vector<8x128xf32>
    %533 = arith.mulf %532, %531 : vector<8x128xf32>
    %534 = math.tanh %533 : vector<8x128xf32>
    %cst_186 = arith.constant 5.000000e-01 : f32
    %535 = vector.broadcast %cst_186 : f32 to vector<8x128xf32>
    %536 = arith.mulf %535, %534 : vector<8x128xf32>
    %cst_187 = arith.constant 5.000000e-01 : f32
    %537 = vector.broadcast %cst_187 : f32 to vector<8x128xf32>
    %538 = arith.addf %536, %537 : vector<8x128xf32>
    %539 = vector.extract_strided_slice %530 {offsets = [0, 128], sizes = [8, 128], strides = [1, 1]} : vector<8x512xf32> to vector<8x128xf32>
    %cst_188 = arith.constant 5.000000e-01 : f32
    %540 = vector.broadcast %cst_188 : f32 to vector<8x128xf32>
    %541 = arith.mulf %540, %539 : vector<8x128xf32>
    %542 = math.tanh %541 : vector<8x128xf32>
    %cst_189 = arith.constant 5.000000e-01 : f32
    %543 = vector.broadcast %cst_189 : f32 to vector<8x128xf32>
    %544 = arith.mulf %543, %542 : vector<8x128xf32>
    %cst_190 = arith.constant 5.000000e-01 : f32
    %545 = vector.broadcast %cst_190 : f32 to vector<8x128xf32>
    %546 = arith.addf %544, %545 : vector<8x128xf32>
    %547 = vector.extract_strided_slice %530 {offsets = [0, 256], sizes = [8, 128], strides = [1, 1]} : vector<8x512xf32> to vector<8x128xf32>
    %548 = vector.extract_strided_slice %530 {offsets = [0, 384], sizes = [8, 128], strides = [1, 1]} : vector<8x512xf32> to vector<8x128xf32>
    %549 = arith.mulf %538, %548 : vector<8x128xf32>
    %550 = arith.addf %547, %549 : vector<8x128xf32>
    %551 = math.tanh %550 : vector<8x128xf32>
    %cst_191 = arith.constant 1.000000e+00 : f32
    %552 = vector.broadcast %cst_191 : f32 to vector<8x128xf32>
    %553 = arith.subf %552, %546 : vector<8x128xf32>
    %554 = arith.mulf %553, %551 : vector<8x128xf32>
    %555 = arith.mulf %546, %490 : vector<8x128xf32>
    %556 = arith.addf %554, %555 : vector<8x128xf32>
    %557 = arith.truncf %556 : vector<8x128xf32> to vector<8x128xbf16>
    %c0_192 = arith.constant 0 : index
    %c128_193 = arith.constant 128 : index
    %558 = vector.load %arg10[%c0_192, %c128_193] : memref<8x256xbf16, #tpu.memory_space<vmem>>, vector<8x128xbf16>
    tpu.vector_store %arg10[%c0_192, %c128_193], %557 {strides = array<i32>} : memref<8x256xbf16, #tpu.memory_space<vmem>>, vector<8x128xbf16>,
    %559 = arith.addf %493, %556 : vector<8x128xf32>
    %cst_194 = arith.constant 1.250000e-01 : f32
    %560 = vector.broadcast %cst_194 : f32 to vector<8x128xf32>
    %561 = arith.mulf %559, %560 : vector<8x128xf32>
    %562 = arith.truncf %561 : vector<8x128xf32> to vector<8x128xbf16>
    %c0_195 = arith.constant 0 : index
    %c0_196 = arith.constant 0 : index
    %563 = vector.load %arg7[%c0_195, %c0_196] : memref<128x128xbf16, #tpu.memory_space<vmem>>, vector<128x128xbf16>
    %cst_197 = arith.constant dense<0.000000e+00> : vector<8x128xf32>
    %564 = tpu.matmul %562, %563, %cst_197 {dimension_numbers = #tpu.dot_dimension_numbers<[1], [0], [0], [1], [0, 0, 1, 1], [], []>} : vector<8x128xbf16>, vector<128x128xbf16>, vector<8x128xf32> -> vector<8x128xf32>
    %c0_198 = arith.constant 0 : index
    %c0_199 = arith.constant 0 : index
    %565 = vector.load %arg8[%c0_198, %c0_199] : memref<1x128xf32, #tpu.memory_space<vmem>>, vector<1x128xf32>
    %566 = vector.broadcast %565 : vector<1x128xf32> to vector<8x128xf32>
    %567 = arith.addf %564, %566 : vector<8x128xf32>
    %c0_200 = arith.constant 0 : index
    %c0_201 = arith.constant 0 : index
    %568 = vector.load %arg9[%c0_200, %c0_201] : memref<8x128xf32, #tpu.memory_space<vmem>>, vector<8x128xf32>
    tpu.vector_store %arg9[%c0_200, %c0_201], %567 {strides = array<i32>} : memref<8x128xf32, #tpu.memory_space<vmem>>, vector<8x128xf32>,
    return
  }
}

</mosaic_0001>

<llo_original>
// kernel: tpu_custom_call.1
$region0: #{tpu_custom_call.1}
  #allocation0 [shape = 'u32[]', space=smem, size = 0x4, offset = 0x4, fixed_abs, tag = 'smem constant byte address 0x4 - core index']
  #allocation1 [shape = 'u32[72,128]{1,0:T(1,128)}', space=vmem, size = 0x9000, scoped, tag = 'internal scratch']
  #allocation2 [shape = 'bf16[8,256]{1,0:T(8,128)(2,1)}', space=vmem, size = 0x1000, scoped, tag = 'scratch operand']
  %s0 = inlined_call_operand.vmem [shape: s32[64,1], index: 0, kind: input, shape index: {}]
  %s1 = inlined_call_operand.hbm [shape: f32[4,384], index: 1, kind: input, shape index: {}]
  %s2 = inlined_call_operand.vmem [shape: f32[1,384], index: 2, kind: input, shape index: {}]
  %s3 = inlined_call_operand.hbm [shape: bf16[128,384], index: 3, kind: input, shape index: {}]
  %s4 = inlined_call_operand.hbm [shape: f32[1,128], index: 4, kind: input, shape index: {}]
  %s5 = inlined_call_operand.hbm [shape: bf16[256,512], index: 5, kind: input, shape index: {}]
  %s6 = inlined_call_operand.vmem [shape: f32[1,512], index: 6, kind: input, shape index: {}]
  %s7 = inlined_call_operand.vmem [shape: bf16[128,128], index: 7, kind: input, shape index: {}]
  %s8 = inlined_call_operand.vmem [shape: f32[1,128], index: 8, kind: input, shape index: {}]
  %s9 = inlined_call_operand.hbm [shape: f32[8,128], index: 9, kind: output, shape index: {}]
  %s10 = sld [smem:[#allocation0]]
  $region62: #{tpu_custom_call.1} parent=0
    _
  %s12 = ssub.s32 1, %s10
  %s13 = scalar_select 0, %s12, %s10
  $region1: #{tpu_custom_call.1} parent=0
    #allocation3 [shape = 'u8[6144]{0}', space=vmem, size = 0x1800, scoped, tag = 'input window, operand 1, single buffered']
    #allocation4 [shape = 's32[1]{0}', space=sflag, size = 0x4, scoped, tag = 'scoped memory for tpu_custom_call.1']
    #allocation5 [shape = 's32[1]{0}', space=sflag, size = 0x4, scoped, tag = 'scoped memory for tpu_custom_call.1']
    #allocation6 [shape = 'u8[98304]{0}', space=vmem, size = 0x18000, scoped, tag = 'input window, operand 3, single buffered']
    #allocation7 [shape = 's32[1]{0}', space=sflag, size = 0x4, scoped, tag = 'scoped memory for tpu_custom_call.1']
    #allocation8 [shape = 'u8[512]{0}', space=vmem, size = 0x400, scoped, tag = 'input window, operand 4, single buffered']
    #allocation9 [shape = 'u8[262144]{0}', space=vmem, size = 0x40000, scoped, tag = 'input window, operand 5, single buffered']
    #allocation10 [shape = 's32[1]{0}', space=sflag, size = 0x4, scoped, tag = 'scoped memory for tpu_custom_call.1']
    #allocation11 [shape = 'u8[4096]{0}', space=vmem, size = 0x1000, scoped, tag = 'output window, operand 0, single buffered']
    %14 = vsyncpa [#allocation4], 0
    %15 = vsyncpa [#allocation7], 0
    %16 = vsyncpa [#allocation10], 0
    %17 = vsyncpa [#allocation5], 0
    // Predicated region
    $region2: #{tpu_custom_call.1} parent=1 // pred_check
      _
    $region3: #{tpu_custom_call.1} parent=1 // pred_check_branch
      %19 = sbr.rel (0) target = $region5
    $region4: #{tpu_custom_call.1} parent=1 // pred_region
      _
    $region5: #{tpu_custom_call.1} parent=1 // pred_fallthru
      _
    // Predicated region
    $region6: #{tpu_custom_call.1} parent=1 // pred_check
      _
    $region7: #{tpu_custom_call.1} parent=1 // pred_check_branch
      %21 = sbr.rel (0) target = $region9
    $region8: #{tpu_custom_call.1} parent=1 // pred_region
      %23 = vsyncadd [#allocation4], 0
      %s25 = sshll.u32 %s1, 4
      %s26 = int_to_ptr.hbm [resolvable:$true] %s25
      %s27 = sshll.u32 [#allocation3], 4
      %s28 = int_to_ptr.vmem [resolvable:$true] %s27
      %30 = dma.hbm_to_vmem [thread:$0]  %s26, 192, %s28, [#allocation4]
    $region9: #{tpu_custom_call.1} parent=1 // pred_fallthru
      _
    // Predicated region
    $region10: #{tpu_custom_call.1} parent=1 // pred_check
      _
    $region11: #{tpu_custom_call.1} parent=1 // pred_check_branch
      %32 = sbr.rel (0) target = $region13
    $region12: #{tpu_custom_call.1} parent=1 // pred_region
      _
    $region13: #{tpu_custom_call.1} parent=1 // pred_fallthru
      _
    // Predicated region
    $region14: #{tpu_custom_call.1} parent=1 // pred_check
      _
    $region15: #{tpu_custom_call.1} parent=1 // pred_check_branch
      %34 = sbr.rel (0) target = $region17
    $region16: #{tpu_custom_call.1} parent=1 // pred_region
      %36 = vsyncadd [#allocation7], 0
      %s37 = sshll.u32 %s3, 4
      %s38 = int_to_ptr.hbm [resolvable:$true] %s37
      %s39 = sshll.u32 [#allocation6], 4
      %s40 = int_to_ptr.vmem [resolvable:$true] %s39
      %45 = dma.hbm_to_vmem [thread:$0]  %s38, 3072, %s40, [#allocation7], 192, 192, 12
    $region17: #{tpu_custom_call.1} parent=1 // pred_fallthru
      _
    // Predicated region
    $region18: #{tpu_custom_call.1} parent=1 // pred_check
      _
    $region19: #{tpu_custom_call.1} parent=1 // pred_check_branch
      %47 = sbr.rel (0) target = $region21
    $region20: #{tpu_custom_call.1} parent=1 // pred_region
      %49 = vsyncadd [#allocation7], 0
      %s51 = sshll.u32 %s4, 4
      %s52 = int_to_ptr.hbm [resolvable:$true] %s51
      %s53 = sshll.u32 [#allocation8], 4
      %s54 = int_to_ptr.vmem [resolvable:$true] %s53
      %56 = dma.hbm_to_vmem [thread:$0]  %s52, 16, %s54, [#allocation7]
    $region21: #{tpu_custom_call.1} parent=1 // pred_fallthru
      _
    // Predicated region
    $region22: #{tpu_custom_call.1} parent=1 // pred_check
      _
    $region23: #{tpu_custom_call.1} parent=1 // pred_check_branch
      %58 = sbr.rel (0) target = $region25
    $region24: #{tpu_custom_call.1} parent=1 // pred_region
      %60 = vsyncadd [#allocation10], 0
      %s61 = sshll.u32 %s5, 4
      %s62 = int_to_ptr.hbm [resolvable:$true] %s61
      %s63 = sshll.u32 [#allocation9], 4
      %s64 = int_to_ptr.vmem [resolvable:$true] %s63
      %69 = dma.hbm_to_vmem [thread:$0]  %s62, 8192, %s64, [#allocation10], 256, 256, 16
    $region25: #{tpu_custom_call.1} parent=1 // pred_fallthru
      _
    // Predicated region
    $region26: #{tpu_custom_call.1} parent=1 // pred_check
      _
    $region27: #{tpu_custom_call.1} parent=1 // pred_check_branch
      %71 = sbr.rel (0) target = $region29
    $region28: #{tpu_custom_call.1} parent=1 // pred_region
      _
    $region29: #{tpu_custom_call.1} parent=1 // pred_fallthru
      _
    // Predicated region
    $region30: #{tpu_custom_call.1} parent=1 // pred_check
      _
    $region31: #{tpu_custom_call.1} parent=1 // pred_check_branch
      %73 = sbr.rel (0) target = $region33
    $region32: #{tpu_custom_call.1} parent=1 // pred_region
      _
    $region33: #{tpu_custom_call.1} parent=1 // pred_fallthru
      _
    // Predicated region
    $region34: #{tpu_custom_call.1} parent=1 // pred_check
      _
    $region35: #{tpu_custom_call.1} parent=1 // pred_check_branch
      %75 = sbr.rel (0) target = $region37
    $region36: #{tpu_custom_call.1} parent=1 // pred_region
      _
    $region37: #{tpu_custom_call.1} parent=1 // pred_fallthru
      _
    // Predicated region
    $region38: #{tpu_custom_call.1} parent=1 // pred_check
      _
    $region39: #{tpu_custom_call.1} parent=1 // pred_check_branch
      %77 = sbr.rel (0) target = $region41
    $region40: #{tpu_custom_call.1} parent=1 // pred_region
      %79 = dma.done [#allocation4], 192
    $region41: #{tpu_custom_call.1} parent=1 // pred_fallthru
      _
    // Predicated region
    $region42: #{tpu_custom_call.1} parent=1 // pred_check
      _
    $region43: #{tpu_custom_call.1} parent=1 // pred_check_branch
      %81 = sbr.rel (0) target = $region45
    $region44: #{tpu_custom_call.1} parent=1 // pred_region
      %83 = dma.done [#allocation7], 3072
    $region45: #{tpu_custom_call.1} parent=1 // pred_fallthru
      _
    // Predicated region
    $region46: #{tpu_custom_call.1} parent=1 // pred_check
      _
    $region47: #{tpu_custom_call.1} parent=1 // pred_check_branch
      %85 = sbr.rel (0) target = $region49
    $region48: #{tpu_custom_call.1} parent=1 // pred_region
      %87 = dma.done [#allocation7], 16
    $region49: #{tpu_custom_call.1} parent=1 // pred_fallthru
      _
    // Predicated region
    $region50: #{tpu_custom_call.1} parent=1 // pred_check
      _
    $region51: #{tpu_custom_call.1} parent=1 // pred_check_branch
      %89 = sbr.rel (0) target = $region53
    $region52: #{tpu_custom_call.1} parent=1 // pred_region
      %91 = dma.done [#allocation10], 8192
    $region53: #{tpu_custom_call.1} parent=1 // pred_fallthru
      _
    %v93 = vld [vmem:[%s0] sm:$0xff]
    %v94 = vld [vmem:[%s0 + $0x8] sm:$0xff]
    %v95 = vld [vmem:[%s0 + $0x10] sm:$0xff]
    %v96 = vld [vmem:[%s0 + $0x18] sm:$0xff]
    %v97 = vld [vmem:[%s0 + $0x20] sm:$0xff]
    %v98 = vld [vmem:[%s0 + $0x28] sm:$0xff]
    %v99 = vld [vmem:[%s0 + $0x30] sm:$0xff]
    %v100 = vld [vmem:[%s0 + $0x38] sm:$0xff]
    %v101 = vlaneseq
    %v102 = vand.u32 %v101, 127
    %103 = vset.pattern.permute.xlu0 0
    %104 = vperm.xlu0 %103, %v93
    %v105 = vpop.permute.xlu0 %104
    %106 = vset.pattern.permute.xlu0 0
    %107 = vperm.xlu0 %106, %v94
    %v108 = vpop.permute.xlu0 %107
    %109 = vset.pattern.permute.xlu0 0
    %110 = vperm.xlu0 %109, %v95
    %v111 = vpop.permute.xlu0 %110
    %112 = vset.pattern.permute.xlu0 0
    %113 = vperm.xlu0 %112, %v96
    %v114 = vpop.permute.xlu0 %113
    %115 = vset.pattern.permute.xlu0 0
    %116 = vperm.xlu0 %115, %v97
    %v117 = vpop.permute.xlu0 %116
    %118 = vset.pattern.permute.xlu0 0
    %119 = vperm.xlu0 %118, %v98
    %v120 = vpop.permute.xlu0 %119
    %121 = vset.pattern.permute.xlu0 0
    %122 = vperm.xlu0 %121, %v99
    %v123 = vpop.permute.xlu0 %122
    %124 = vset.pattern.permute.xlu0 0
    %125 = vperm.xlu0 %124, %v100
    %v126 = vpop.permute.xlu0 %125
    %vm127 = vcmp.eq.s32.totalorder %v105, %v102
    %vm128 = vcmp.eq.s32.totalorder %v108, %v102
    %vm129 = vcmp.eq.s32.totalorder %v111, %v102
    %vm130 = vcmp.eq.s32.totalorder %v114, %v102
    %vm131 = vcmp.eq.s32.totalorder %v117, %v102
    %vm132 = vcmp.eq.s32.totalorder %v120, %v102
    %vm133 = vcmp.eq.s32.totalorder %v123, %v102
    %vm134 = vcmp.eq.s32.totalorder %v126, %v102
    %v135 = vsel %vm127, 1, 0
    %v136 = vsel %vm128, 1, 0
    %v137 = vsel %vm129, 1, 0
    %v138 = vsel %vm130, 1, 0
    %v139 = vsel %vm131, 1, 0
    %v140 = vsel %vm132, 1, 0
    %v141 = vsel %vm133, 1, 0
    %v142 = vsel %vm134, 1, 0
    %v143 = vcvt.s32.f32 %v135
    %v144 = vcvt.s32.f32 %v136
    %v145 = vcvt.s32.f32 %v137
    %v146 = vcvt.s32.f32 %v138
    %v147 = vcvt.s32.f32 %v139
    %v148 = vcvt.s32.f32 %v140
    %v149 = vcvt.s32.f32 %v141
    %v150 = vcvt.s32.f32 %v142
    %v151 = vld [vmem:[#allocation3] sm:$0xff]
    %v152 = vld [vmem:[#allocation3 + $0x8] sm:$0xf]
    %v153 = vld [vmem:[%s2] sm:$0x7]
    %v155 = vperm.slane %v153, 0
    %v156 = vperm.slane %v153, 1
    %v157 = vperm.slane %v153, 2
    %163 = vst [vmem:[#allocation1] ss:$2 sm:$0xff] %v151
    %s164 = scalar_lea.vmem [#allocation1], 16
    %165 = vst [vmem:[%s164] ss:$2 sm:$0xff] %v152
    %v166 = vld.sshfl [vmem:[#allocation1] sm:$0xff pattern:$0x75316420]
    %v167 = vld.sshfl [vmem:[#allocation1 + $0x8] sm:$0xff pattern:$0x75316420]
    %v168 = vld.sshfl [vmem:[#allocation1 + $0x10] sm:$0xff pattern:$0x75316420]
    %vm169 = vcmask 31744
    %v171 = vsel %vm169, %v143, 0
    %v174 = vsel %vm169, %v144, 0
    %v177 = vsel %vm169, %v145, 0
    %v180 = vsel %vm169, %v146, 0
    %v183 = vsel %vm169, %v147, 0
    %v186 = vsel %vm169, %v148, 0
    %v189 = vsel %vm169, %v149, 0
    %v192 = vsel %vm169, %v150, 0
    %vm194 = vcmask 1043456
    %v195 = vsel %vm194, %v166, 0
    %v197 = vsel %vm194, %v167, 0
    %v199 = vsel %vm194, %v168, 0
    %201 = vmatpush.msra.mxu0 0.0
    %202 = vmatpush.msra.mxu0 0.0
    %203 = vmatpush.msra.mxu0 0.0
    %204 = vmatpush.msra.mxu0 0.0
    %205 = vmatpush.msra.mxu0 0.0
    %206 = vmatpush.msra.mxu0 0.0
    %207 = vmatpush.msra.mxu0 0.0
    %208 = vmatpush.msra.mxu0 0.0
    %209 = vmatpush.msra.mxu0 0.0
    %210 = vmatpush.msra.mxu0 0.0
    %211 = vmatpush.msra.mxu0 0.0
    %212 = vmatpush.msra.mxu0 0.0
    %213 = vmatpush.msra.mxu0 0.0
    %214 = vmatpush.msra.mxu0 0.0
    %215 = vmatpush.msra.mxu0 0.0
    %216 = vmatpush.msra.mxu0 %v195
    %217 = vmatmul.f32.gmra.mxu0 %v171
    %v218 = vpop.f32.mrf.mxu0
    %v219 = vadd.f32 %v155, %v218
    %220 = vmatmul.f32.gmra.mxu0 %v174
    %v221 = vpop.f32.mrf.mxu0
    %v222 = vadd.f32 %v155, %v221
    %223 = vmatmul.f32.gmra.mxu0 %v177
    %v224 = vpop.f32.mrf.mxu0
    %v225 = vadd.f32 %v155, %v224
    %226 = vmatmul.f32.gmra.mxu0 %v180
    %v227 = vpop.f32.mrf.mxu0
    %v228 = vadd.f32 %v155, %v227
    %229 = vmatmul.f32.gmra.mxu0 %v183
    %v230 = vpop.f32.mrf.mxu0
    %v231 = vadd.f32 %v155, %v230
    %232 = vmatmul.f32.gmra.mxu0 %v186
    %v233 = vpop.f32.mrf.mxu0
    %v234 = vadd.f32 %v155, %v233
    %235 = vmatmul.f32.gmra.mxu0 %v189
    %v236 = vpop.f32.mrf.mxu0
    %v237 = vadd.f32 %v155, %v236
    %238 = vmatmul.f32.gmra.mxu0 %v192
    %v239 = vpop.f32.mrf.mxu0
    %v240 = vadd.f32 %v155, %v239
    %241 = vdwg.mxu0
    %242 = vmatpush.msra.mxu0 0.0
    %243 = vmatpush.msra.mxu0 0.0
    %244 = vmatpush.msra.mxu0 0.0
    %245 = vmatpush.msra.mxu0 0.0
    %246 = vmatpush.msra.mxu0 0.0
    %247 = vmatpush.msra.mxu0 0.0
    %248 = vmatpush.msra.mxu0 0.0
    %249 = vmatpush.msra.mxu0 0.0
    %250 = vmatpush.msra.mxu0 0.0
    %251 = vmatpush.msra.mxu0 0.0
    %252 = vmatpush.msra.mxu0 0.0
    %253 = vmatpush.msra.mxu0 0.0
    %254 = vmatpush.msra.mxu0 0.0
    %255 = vmatpush.msra.mxu0 0.0
    %256 = vmatpush.msra.mxu0 0.0
    %257 = vmatpush.msra.mxu0 %v197
    %258 = vmatmul.f32.gmra.mxu0 %v171
    %v259 = vpop.f32.mrf.mxu0
    %v260 = vadd.f32 %v156, %v259
    %261 = vmatmul.f32.gmra.mxu0 %v174
    %v262 = vpop.f32.mrf.mxu0
    %v263 = vadd.f32 %v156, %v262
    %264 = vmatmul.f32.gmra.mxu0 %v177
    %v265 = vpop.f32.mrf.mxu0
    %v266 = vadd.f32 %v156, %v265
    %267 = vmatmul.f32.gmra.mxu0 %v180
    %v268 = vpop.f32.mrf.mxu0
    %v269 = vadd.f32 %v156, %v268
    %270 = vmatmul.f32.gmra.mxu0 %v183
    %v271 = vpop.f32.mrf.mxu0
    %v272 = vadd.f32 %v156, %v271
    %273 = vmatmul.f32.gmra.mxu0 %v186
    %v274 = vpop.f32.mrf.mxu0
    %v275 = vadd.f32 %v156, %v274
    %276 = vmatmul.f32.gmra.mxu0 %v189
    %v277 = vpop.f32.mrf.mxu0
    %v278 = vadd.f32 %v156, %v277
    %279 = vmatmul.f32.gmra.mxu0 %v192
    %v280 = vpop.f32.mrf.mxu0
    %v281 = vadd.f32 %v156, %v280
    %282 = vdwg.mxu0
    %283 = vmatpush.msra.mxu0 0.0
    %284 = vmatpush.msra.mxu0 0.0
    %285 = vmatpush.msra.mxu0 0.0
    %286 = vmatpush.msra.mxu0 0.0
    %287 = vmatpush.msra.mxu0 0.0
    %288 = vmatpush.msra.mxu0 0.0
    %289 = vmatpush.msra.mxu0 0.0
    %290 = vmatpush.msra.mxu0 0.0
    %291 = vmatpush.msra.mxu0 0.0
    %292 = vmatpush.msra.mxu0 0.0
    %293 = vmatpush.msra.mxu0 0.0
    %294 = vmatpush.msra.mxu0 0.0
    %295 = vmatpush.msra.mxu0 0.0
    %296 = vmatpush.msra.mxu0 0.0
    %297 = vmatpush.msra.mxu0 0.0
    %298 = vmatpush.msra.mxu0 %v199
    %299 = vmatmul.f32.gmra.mxu0 %v171
    %v300 = vpop.f32.mrf.mxu0
    %v301 = vadd.f32 %v157, %v300
    %302 = vmatmul.f32.gmra.mxu0 %v174
    %v303 = vpop.f32.mrf.mxu0
    %v304 = vadd.f32 %v157, %v303
    %305 = vmatmul.f32.gmra.mxu0 %v177
    %v306 = vpop.f32.mrf.mxu0
    %v307 = vadd.f32 %v157, %v306
    %308 = vmatmul.f32.gmra.mxu0 %v180
    %v309 = vpop.f32.mrf.mxu0
    %v310 = vadd.f32 %v157, %v309
    %311 = vmatmul.f32.gmra.mxu0 %v183
    %v312 = vpop.f32.mrf.mxu0
    %v313 = vadd.f32 %v157, %v312
    %314 = vmatmul.f32.gmra.mxu0 %v186
    %v315 = vpop.f32.mrf.mxu0
    %v316 = vadd.f32 %v157, %v315
    %317 = vmatmul.f32.gmra.mxu0 %v189
    %v318 = vpop.f32.mrf.mxu0
    %v319 = vadd.f32 %v157, %v318
    %320 = vmatmul.f32.gmra.mxu0 %v192
    %v321 = vpop.f32.mrf.mxu0
    %v322 = vadd.f32 %v157, %v321
    %323 = vdwg.mxu0
    %v324 = vld [vmem:[#allocation6] sm:$0xff]
    %v325 = vld [vmem:[#allocation6 + $0x8] sm:$0xf]
    %v326 = vld [vmem:[#allocation6 + $0xc] sm:$0xff]
    %v327 = vld [vmem:[#allocation6 + $0x14] sm:$0xf]
    %v328 = vld [vmem:[#allocation6 + $0x18] sm:$0xff]
    %v329 = vld [vmem:[#allocation6 + $0x20] sm:$0xf]
    %v330 = vld [vmem:[#allocation6 + $0x24] sm:$0xff]
    %v331 = vld [vmem:[#allocation6 + $0x2c] sm:$0xf]
    %v332 = vld [vmem:[#allocation6 + $0x30] sm:$0xff]
    %v333 = vld [vmem:[#allocation6 + $0x38] sm:$0xf]
    %v334 = vld [vmem:[#allocation6 + $0x3c] sm:$0xff]
    %v335 = vld [vmem:[#allocation6 + $0x44] sm:$0xf]
    %v336 = vld [vmem:[#allocation6 + $0x48] sm:$0xff]
    %v337 = vld [vmem:[#allocation6 + $0x50] sm:$0xf]
    %v338 = vld [vmem:[#allocation6 + $0x54] sm:$0xff]
    %v339 = vld [vmem:[#allocation6 + $0x5c] sm:$0xf]
    %v340 = vld [vmem:[#allocation6 + $0x60] sm:$0xff]
    %v341 = vld [vmem:[#allocation6 + $0x68] sm:$0xf]
    %v342 = vld [vmem:[#allocation6 + $0x6c] sm:$0xff]
    %v343 = vld [vmem:[#allocation6 + $0x74] sm:$0xf]
    %v344 = vld [vmem:[#allocation6 + $0x78] sm:$0xff]
    %v345 = vld [vmem:[#allocation6 + $0x80] sm:$0xf]
    %v346 = vld [vmem:[#allocation6 + $0x84] sm:$0xff]
    %v347 = vld [vmem:[#allocation6 + $0x8c] sm:$0xf]
    %v348 = vld [vmem:[#allocation6 + $0x90] sm:$0xff]
    %v349 = vld [vmem:[#allocation6 + $0x98] sm:$0xf]
    %v350 = vld [vmem:[#allocation6 + $0x9c] sm:$0xff]
    %v351 = vld [vmem:[#allocation6 + $0xa4] sm:$0xf]
    %v352 = vld [vmem:[#allocation6 + $0xa8] sm:$0xff]
    %v353 = vld [vmem:[#allocation6 + $0xb0] sm:$0xf]
    %v354 = vld [vmem:[#allocation6 + $0xb4] sm:$0xff]
    %v355 = vld [vmem:[#allocation6 + $0xbc] sm:$0xf]
    %v356 = vld [vmem:[#allocation9] sm:$0xff]
    %v357 = vld [vmem:[#allocation9 + $0x8] sm:$0xff]
    %v358 = vld [vmem:[#allocation9 + $0x10] sm:$0xff]
    %v359 = vld [vmem:[#allocation9 + $0x18] sm:$0xff]
    %v360 = vld [vmem:[#allocation9 + $0x20] sm:$0xff]
    %v361 = vld [vmem:[#allocation9 + $0x28] sm:$0xff]
    %v362 = vld [vmem:[#allocation9 + $0x30] sm:$0xff]
    %v363 = vld [vmem:[#allocation9 + $0x38] sm:$0xff]
    %v364 = vld [vmem:[#allocation9 + $0x40] sm:$0xff]
    %v365 = vld [vmem:[#allocation9 + $0x48] sm:$0xff]
    %v366 = vld [vmem:[#allocation9 + $0x50] sm:$0xff]
    %v367 = vld [vmem:[#allocation9 + $0x58] sm:$0xff]
    %v368 = vld [vmem:[#allocation9 + $0x60] sm:$0xff]
    %v369 = vld [vmem:[#allocation9 + $0x68] sm:$0xff]
    %v370 = vld [vmem:[#allocation9 + $0x70] sm:$0xff]
    %v371 = vld [vmem:[#allocation9 + $0x78] sm:$0xff]
    %v372 = vld [vmem:[#allocation9 + $0x80] sm:$0xff]
    %v373 = vld [vmem:[#allocation9 + $0x88] sm:$0xff]
    %v374 = vld [vmem:[#allocation9 + $0x90] sm:$0xff]
    %v375 = vld [vmem:[#allocation9 + $0x98] sm:$0xff]
    %v376 = vld [vmem:[#allocation9 + $0xa0] sm:$0xff]
    %v377 = vld [vmem:[#allocation9 + $0xa8] sm:$0xff]
    %v378 = vld [vmem:[#allocation9 + $0xb0] sm:$0xff]
    %v379 = vld [vmem:[#allocation9 + $0xb8] sm:$0xff]
    %v380 = vld [vmem:[#allocation9 + $0xc0] sm:$0xff]
    %v381 = vld [vmem:[#allocation9 + $0xc8] sm:$0xff]
    %v382 = vld [vmem:[#allocation9 + $0xd0] sm:$0xff]
    %v383 = vld [vmem:[#allocation9 + $0xd8] sm:$0xff]
    %v384 = vld [vmem:[#allocation9 + $0xe0] sm:$0xff]
    %v385 = vld [vmem:[#allocation9 + $0xe8] sm:$0xff]
    %v386 = vld [vmem:[#allocation9 + $0xf0] sm:$0xff]
    %v387 = vld [vmem:[#allocation9 + $0xf8] sm:$0xff]
    %v388 = vld [vmem:[#allocation9 + $0x100] sm:$0xff]
    %v389 = vld [vmem:[#allocation9 + $0x108] sm:$0xff]
    %v390 = vld [vmem:[#allocation9 + $0x110] sm:$0xff]
    %v391 = vld [vmem:[#allocation9 + $0x118] sm:$0xff]
    %v392 = vld [vmem:[#allocation9 + $0x120] sm:$0xff]
    %v393 = vld [vmem:[#allocation9 + $0x128] sm:$0xff]
    %v394 = vld [vmem:[#allocation9 + $0x130] sm:$0xff]
    %v395 = vld [vmem:[#allocation9 + $0x138] sm:$0xff]
    %v396 = vld [vmem:[#allocation9 + $0x140] sm:$0xff]
    %v397 = vld [vmem:[#allocation9 + $0x148] sm:$0xff]
    %v398 = vld [vmem:[#allocation9 + $0x150] sm:$0xff]
    %v399 = vld [vmem:[#allocation9 + $0x158] sm:$0xff]
    %v400 = vld [vmem:[#allocation9 + $0x160] sm:$0xff]
    %v401 = vld [vmem:[#allocation9 + $0x168] sm:$0xff]
    %v402 = vld [vmem:[#allocation9 + $0x170] sm:$0xff]
    %v403 = vld [vmem:[#allocation9 + $0x178] sm:$0xff]
    %v404 = vld [vmem:[#allocation9 + $0x180] sm:$0xff]
    %v405 = vld [vmem:[#allocation9 + $0x188] sm:$0xff]
    %v406 = vld [vmem:[#allocation9 + $0x190] sm:$0xff]
    %v407 = vld [vmem:[#allocation9 + $0x198] sm:$0xff]
    %v408 = vld [vmem:[#allocation9 + $0x1a0] sm:$0xff]
    %v409 = vld [vmem:[#allocation9 + $0x1a8] sm:$0xff]
    %v410 = vld [vmem:[#allocation9 + $0x1b0] sm:$0xff]
    %v411 = vld [vmem:[#allocation9 + $0x1b8] sm:$0xff]
    %v412 = vld [vmem:[#allocation9 + $0x1c0] sm:$0xff]
    %v413 = vld [vmem:[#allocation9 + $0x1c8] sm:$0xff]
    %v414 = vld [vmem:[#allocation9 + $0x1d0] sm:$0xff]
    %v415 = vld [vmem:[#allocation9 + $0x1d8] sm:$0xff]
    %v416 = vld [vmem:[#allocation9 + $0x1e0] sm:$0xff]
    %v417 = vld [vmem:[#allocation9 + $0x1e8] sm:$0xff]
    %v418 = vld [vmem:[#allocation9 + $0x1f0] sm:$0xff]
    %v419 = vld [vmem:[#allocation9 + $0x1f8] sm:$0xff]
    %v420 = vld [vmem:[#allocation8] sm:$0x1]
    %v422 = vperm.slane %v420, 0
    %v424 = vld [vmem:[%s6] sm:$0xf]
    %v426 = vperm.slane %v424, 0
    %v427 = vperm.slane %v424, 1
    %v428 = vperm.slane %v424, 2
    %v429 = vperm.slane %v424, 3
    %434 = vst [vmem:[#allocation2] sm:$0xff] 0
    %v435 = vadd.f32 %v219, 0.0
    %v436 = vmul.f32 %v435, 0.5
    %v437 = vtanh.pop %v436
    %v438 = vmul.f32 %v437, 0.5
    %v439 = vadd.f32 %v438, 0.5
    %v440 = vadd.f32 %v260, 0.0
    %v441 = vmul.f32 %v440, 0.5
    %v442 = vtanh.pop %v441
    %v443 = vmul.f32 %v442, 0.5
    %v444 = vadd.f32 %v443, 0.5
    %v445 = vadd.f32 %v422, 0.0
    %v446 = vmul.f32 %v439, %v445
    %v447 = vadd.f32 %v301, %v446
    %v448 = vtanh.pop %v447
    %v449 = vsub.f32 1.0, %v444
    %v450 = vmul.f32 %v449, %v448
    %v451 = vmul.f32 %v444, 0.0
    %v452 = vadd.f32 %v450, %v451
    %v453 = vpack.c.bf16 %v452, %v452
    %454 = vst [vmem:[#allocation2] sm:$0xf] %v453
    %v487 = vunpack.c.l.b16 %v324
    %v488 = vunpack.c.h.b16 %v324
    %v489 = vunpack.c.l.b16 %v325
    %v490 = vunpack.c.l.b16 %v326
    %v491 = vunpack.c.h.b16 %v326
    %v492 = vunpack.c.l.b16 %v327
    %v493 = vunpack.c.l.b16 %v328
    %v494 = vunpack.c.h.b16 %v328
    %v495 = vunpack.c.l.b16 %v329
    %v496 = vunpack.c.l.b16 %v330
    %v497 = vunpack.c.h.b16 %v330
    %v498 = vunpack.c.l.b16 %v331
    %v499 = vunpack.c.l.b16 %v332
    %v500 = vunpack.c.h.b16 %v332
    %v501 = vunpack.c.l.b16 %v333
    %v502 = vunpack.c.l.b16 %v334
    %v503 = vunpack.c.h.b16 %v334
    %v504 = vunpack.c.l.b16 %v335
    %v505 = vunpack.c.l.b16 %v336
    %v506 = vunpack.c.h.b16 %v336
    %v507 = vunpack.c.l.b16 %v337
    %v508 = vunpack.c.l.b16 %v338
    %v509 = vunpack.c.h.b16 %v338
    %v510 = vunpack.c.l.b16 %v339
    %v511 = vunpack.c.l.b16 %v340
    %v512 = vunpack.c.h.b16 %v340
    %v513 = vunpack.c.l.b16 %v341
    %v514 = vunpack.c.l.b16 %v342
    %v515 = vunpack.c.h.b16 %v342
    %v516 = vunpack.c.l.b16 %v343
    %v517 = vunpack.c.l.b16 %v344
    %v518 = vunpack.c.h.b16 %v344
    %v519 = vunpack.c.l.b16 %v345
    %v520 = vunpack.c.l.b16 %v346
    %v521 = vunpack.c.h.b16 %v346
    %v522 = vunpack.c.l.b16 %v347
    %v523 = vunpack.c.l.b16 %v348
    %v524 = vunpack.c.h.b16 %v348
    %v525 = vunpack.c.l.b16 %v349
    %v526 = vunpack.c.l.b16 %v350
    %v527 = vunpack.c.h.b16 %v350
    %v528 = vunpack.c.l.b16 %v351
    %v529 = vunpack.c.l.b16 %v352
    %v530 = vunpack.c.h.b16 %v352
    %v531 = vunpack.c.l.b16 %v353
    %v532 = vunpack.c.l.b16 %v354
    %v533 = vunpack.c.h.b16 %v354
    %v534 = vunpack.c.l.b16 %v355
    %v535 = vpack.c.b16 %v490, %v487
    %v536 = vpack.c.b16 %v491, %v488
    %v537 = vpack.c.b16 %v492, %v489
    %v538 = vpack.c.b16 %v496, %v493
    %v539 = vpack.c.b16 %v497, %v494
    %v540 = vpack.c.b16 %v498, %v495
    %v541 = vpack.c.b16 %v502, %v499
    %v542 = vpack.c.b16 %v503, %v500
    %v543 = vpack.c.b16 %v504, %v501
    %v544 = vpack.c.b16 %v508, %v505
    %v545 = vpack.c.b16 %v509, %v506
    %v546 = vpack.c.b16 %v510, %v507
    %v547 = vpack.c.b16 %v514, %v511
    %v548 = vpack.c.b16 %v515, %v512
    %v549 = vpack.c.b16 %v516, %v513
    %v550 = vpack.c.b16 %v520, %v517
    %v551 = vpack.c.b16 %v521, %v518
    %v552 = vpack.c.b16 %v522, %v519
    %v553 = vpack.c.b16 %v526, %v523
    %v554 = vpack.c.b16 %v527, %v524
    %v555 = vpack.c.b16 %v528, %v525
    %v556 = vpack.c.b16 %v532, %v529
    %v557 = vpack.c.b16 %v533, %v530
    %v558 = vpack.c.b16 %v534, %v531
    %583 = vmatpush.bf16.msra.mxu0 %v556
    %584 = vmatpush.bf16.msra.mxu0 %v553
    %585 = vmatpush.bf16.msra.mxu0 %v550
    %586 = vmatpush.bf16.msra.mxu0 %v547
    %587 = vmatpush.bf16.msra.mxu0 %v544
    %588 = vmatpush.bf16.msra.mxu0 %v541
    %589 = vmatpush.bf16.msra.mxu0 %v538
    %590 = vmatpush.bf16.msra.mxu0 %v535
    %591 = vmatmul.bf16.gmra.mxu0 %v453
    %v592 = vpop.f32.mrf.mxu0
    %v593 = vadd.f32 0.0, %v592
    %v594 = vpop.f32.mrf.mxu0
    %595 = vdwg.mxu0
    %596 = vmatpush.bf16.msra.mxu0 %v557
    %597 = vmatpush.bf16.msra.mxu0 %v554
    %598 = vmatpush.bf16.msra.mxu0 %v551
    %599 = vmatpush.bf16.msra.mxu0 %v548
    %600 = vmatpush.bf16.msra.mxu0 %v545
    %601 = vmatpush.bf16.msra.mxu0 %v542
    %602 = vmatpush.bf16.msra.mxu0 %v539
    %603 = vmatpush.bf16.msra.mxu0 %v536
    %604 = vmatmul.bf16.gmra.mxu0 %v453
    %v605 = vpop.f32.mrf.mxu0
    %v606 = vadd.f32 0.0, %v605
    %v607 = vpop.f32.mrf.mxu0
    %608 = vdwg.mxu0
    %609 = vmatpush.bf16.msra.mxu0 %v558
    %610 = vmatpush.bf16.msra.mxu0 %v555
    %611 = vmatpush.bf16.msra.mxu0 %v552
    %612 = vmatpush.bf16.msra.mxu0 %v549
    %613 = vmatpush.bf16.msra.mxu0 %v546
    %614 = vmatpush.bf16.msra.mxu0 %v543
    %615 = vmatpush.bf16.msra.mxu0 %v540
    %616 = vmatpush.bf16.msra.mxu0 %v537
    %617 = vmatmul.bf16.gmra.mxu0 %v453
    %v618 = vpop.f32.mrf.mxu0
    %v619 = vadd.f32 0.0, %v618
    %v620 = vpop.f32.mrf.mxu0
    %621 = vdwg.mxu0
    %v622 = vld [vmem:[#allocation2] sm:$0xff]
    %v624 = vunpack.c.l.b16 %v622
    %v625 = vunpack.c.h.b16 %v622
    %v626 = vpack.c.b16 %v624, %v624
    %v627 = vpack.c.b16 %v625, %v625
    %v694 = vunpack.c.l.b16 %v356
    %v695 = vunpack.c.h.b16 %v356
    %v696 = vunpack.c.l.b16 %v357
    %v697 = vunpack.c.h.b16 %v357
    %v698 = vunpack.c.l.b16 %v358
    %v699 = vunpack.c.h.b16 %v358
    %v700 = vunpack.c.l.b16 %v359
    %v701 = vunpack.c.h.b16 %v359
    %v702 = vunpack.c.l.b16 %v360
    %v703 = vunpack.c.h.b16 %v360
    %v704 = vunpack.c.l.b16 %v361
    %v705 = vunpack.c.h.b16 %v361
    %v706 = vunpack.c.l.b16 %v362
    %v707 = vunpack.c.h.b16 %v362
    %v708 = vunpack.c.l.b16 %v363
    %v709 = vunpack.c.h.b16 %v363
    %v710 = vunpack.c.l.b16 %v364
    %v711 = vunpack.c.h.b16 %v364
    %v712 = vunpack.c.l.b16 %v365
    %v713 = vunpack.c.h.b16 %v365
    %v714 = vunpack.c.l.b16 %v366
    %v715 = vunpack.c.h.b16 %v366
    %v716 = vunpack.c.l.b16 %v367
    %v717 = vunpack.c.h.b16 %v367
    %v718 = vunpack.c.l.b16 %v368
    %v719 = vunpack.c.h.b16 %v368
    %v720 = vunpack.c.l.b16 %v369
    %v721 = vunpack.c.h.b16 %v369
    %v722 = vunpack.c.l.b16 %v370
    %v723 = vunpack.c.h.b16 %v370
    %v724 = vunpack.c.l.b16 %v371
    %v725 = vunpack.c.h.b16 %v371
    %v726 = vunpack.c.l.b16 %v372
    %v727 = vunpack.c.h.b16 %v372
    %v728 = vunpack.c.l.b16 %v373
    %v729 = vunpack.c.h.b16 %v373
    %v730 = vunpack.c.l.b16 %v374
    %v731 = vunpack.c.h.b16 %v374
    %v732 = vunpack.c.l.b16 %v375
    %v733 = vunpack.c.h.b16 %v375
    %v734 = vunpack.c.l.b16 %v376
    %v735 = vunpack.c.h.b16 %v376
    %v736 = vunpack.c.l.b16 %v377
    %v737 = vunpack.c.h.b16 %v377
    %v738 = vunpack.c.l.b16 %v378
    %v739 = vunpack.c.h.b16 %v378
    %v740 = vunpack.c.l.b16 %v379
    %v741 = vunpack.c.h.b16 %v379
    %v742 = vunpack.c.l.b16 %v380
    %v743 = vunpack.c.h.b16 %v380
    %v744 = vunpack.c.l.b16 %v381
    %v745 = vunpack.c.h.b16 %v381
    %v746 = vunpack.c.l.b16 %v382
    %v747 = vunpack.c.h.b16 %v382
    %v748 = vunpack.c.l.b16 %v383
    %v749 = vunpack.c.h.b16 %v383
    %v750 = vunpack.c.l.b16 %v384
    %v751 = vunpack.c.h.b16 %v384
    %v752 = vunpack.c.l.b16 %v385
    %v753 = vunpack.c.h.b16 %v385
    %v754 = vunpack.c.l.b16 %v386
    %v755 = vunpack.c.h.b16 %v386
    %v756 = vunpack.c.l.b16 %v387
    %v757 = vunpack.c.h.b16 %v387
    %v758 = vunpack.c.l.b16 %v388
    %v759 = vunpack.c.h.b16 %v388
    %v760 = vunpack.c.l.b16 %v389
    %v761 = vunpack.c.h.b16 %v389
    %v762 = vunpack.c.l.b16 %v390
    %v763 = vunpack.c.h.b16 %v390
    %v764 = vunpack.c.l.b16 %v391
    %v765 = vunpack.c.h.b16 %v391
    %v766 = vunpack.c.l.b16 %v392
    %v767 = vunpack.c.h.b16 %v392
    %v768 = vunpack.c.l.b16 %v393
    %v769 = vunpack.c.h.b16 %v393
    %v770 = vunpack.c.l.b16 %v394
    %v771 = vunpack.c.h.b16 %v394
    %v772 = vunpack.c.l.b16 %v395
    %v773 = vunpack.c.h.b16 %v395
    %v774 = vunpack.c.l.b16 %v396
    %v775 = vunpack.c.h.b16 %v396
    %v776 = vunpack.c.l.b16 %v397
    %v777 = vunpack.c.h.b16 %v397
    %v778 = vunpack.c.l.b16 %v398
    %v779 = vunpack.c.h.b16 %v398
    %v780 = vunpack.c.l.b16 %v399
    %v781 = vunpack.c.h.b16 %v399
    %v782 = vunpack.c.l.b16 %v400
    %v783 = vunpack.c.h.b16 %v400
    %v784 = vunpack.c.l.b16 %v401
    %v785 = vunpack.c.h.b16 %v401
    %v786 = vunpack.c.l.b16 %v402
    %v787 = vunpack.c.h.b16 %v402
    %v788 = vunpack.c.l.b16 %v403
    %v789 = vunpack.c.h.b16 %v403
    %v790 = vunpack.c.l.b16 %v404
    %v791 = vunpack.c.h.b16 %v404
    %v792 = vunpack.c.l.b16 %v405
    %v793 = vunpack.c.h.b16 %v405
    %v794 = vunpack.c.l.b16 %v406
    %v795 = vunpack.c.h.b16 %v406
    %v796 = vunpack.c.l.b16 %v407
    %v797 = vunpack.c.h.b16 %v407
    %v798 = vunpack.c.l.b16 %v408
    %v799 = vunpack.c.h.b16 %v408
    %v800 = vunpack.c.l.b16 %v409
    %v801 = vunpack.c.h.b16 %v409
    %v802 = vunpack.c.l.b16 %v410
    %v803 = vunpack.c.h.b16 %v410
    %v804 = vunpack.c.l.b16 %v411
    %v805 = vunpack.c.h.b16 %v411
    %v806 = vunpack.c.l.b16 %v412
    %v807 = vunpack.c.h.b16 %v412
    %v808 = vunpack.c.l.b16 %v413
    %v809 = vunpack.c.h.b16 %v413
    %v810 = vunpack.c.l.b16 %v414
    %v811 = vunpack.c.h.b16 %v414
    %v812 = vunpack.c.l.b16 %v415
    %v813 = vunpack.c.h.b16 %v415
    %v814 = vunpack.c.l.b16 %v416
    %v815 = vunpack.c.h.b16 %v416
    %v816 = vunpack.c.l.b16 %v417
    %v817 = vunpack.c.h.b16 %v417
    %v818 = vunpack.c.l.b16 %v418
    %v819 = vunpack.c.h.b16 %v418
    %v820 = vunpack.c.l.b16 %v419
    %v821 = vunpack.c.h.b16 %v419
    %v822 = vpack.c.b16 %v698, %v694
    %v823 = vpack.c.b16 %v699, %v695
    %v824 = vpack.c.b16 %v700, %v696
    %v825 = vpack.c.b16 %v701, %v697
    %v826 = vpack.c.b16 %v706, %v702
    %v827 = vpack.c.b16 %v707, %v703
    %v828 = vpack.c.b16 %v708, %v704
    %v829 = vpack.c.b16 %v709, %v705
    %v830 = vpack.c.b16 %v714, %v710
    %v831 = vpack.c.b16 %v715, %v711
    %v832 = vpack.c.b16 %v716, %v712
    %v833 = vpack.c.b16 %v717, %v713
    %v834 = vpack.c.b16 %v722, %v718
    %v835 = vpack.c.b16 %v723, %v719
    %v836 = vpack.c.b16 %v724, %v720
    %v837 = vpack.c.b16 %v725, %v721
    %v838 = vpack.c.b16 %v730, %v726
    %v839 = vpack.c.b16 %v731, %v727
    %v840 = vpack.c.b16 %v732, %v728
    %v841 = vpack.c.b16 %v733, %v729
    %v842 = vpack.c.b16 %v738, %v734
    %v843 = vpack.c.b16 %v739, %v735
    %v844 = vpack.c.b16 %v740, %v736
    %v845 = vpack.c.b16 %v741, %v737
    %v846 = vpack.c.b16 %v746, %v742
    %v847 = vpack.c.b16 %v747, %v743
    %v848 = vpack.c.b16 %v748, %v744
    %v849 = vpack.c.b16 %v749, %v745
    %v850 = vpack.c.b16 %v754, %v750
    %v851 = vpack.c.b16 %v755, %v751
    %v852 = vpack.c.b16 %v756, %v752
    %v853 = vpack.c.b16 %v757, %v753
    %v854 = vpack.c.b16 %v762, %v758
    %v855 = vpack.c.b16 %v763, %v759
    %v856 = vpack.c.b16 %v764, %v760
    %v857 = vpack.c.b16 %v765, %v761
    %v858 = vpack.c.b16 %v770, %v766
    %v859 = vpack.c.b16 %v771, %v767
    %v860 = vpack.c.b16 %v772, %v768
    %v861 = vpack.c.b16 %v773, %v769
    %v862 = vpack.c.b16 %v778, %v774
    %v863 = vpack.c.b16 %v779, %v775
    %v864 = vpack.c.b16 %v780, %v776
    %v865 = vpack.c.b16 %v781, %v777
    %v866 = vpack.c.b16 %v786, %v782
    %v867 = vpack.c.b16 %v787, %v783
    %v868 = vpack.c.b16 %v788, %v784
    %v869 = vpack.c.b16 %v789, %v785
    %v870 = vpack.c.b16 %v794, %v790
    %v871 = vpack.c.b16 %v795, %v791
    %v872 = vpack.c.b16 %v796, %v792
    %v873 = vpack.c.b16 %v797, %v793
    %v874 = vpack.c.b16 %v802, %v798
    %v875 = vpack.c.b16 %v803, %v799
    %v876 = vpack.c.b16 %v804, %v800
    %v877 = vpack.c.b16 %v805, %v801
    %v878 = vpack.c.b16 %v810, %v806
    %v879 = vpack.c.b16 %v811, %v807
    %v880 = vpack.c.b16 %v812, %v808
    %v881 = vpack.c.b16 %v813, %v809
    %v882 = vpack.c.b16 %v818, %v814
    %v883 = vpack.c.b16 %v819, %v815
    %v884 = vpack.c.b16 %v820, %v816
    %v885 = vpack.c.b16 %v821, %v817
    %950 = vmatpush.bf16.msra.mxu0 %v850
    %951 = vmatpush.bf16.msra.mxu0 %v846
    %952 = vmatpush.bf16.msra.mxu0 %v842
    %953 = vmatpush.bf16.msra.mxu0 %v838
    %954 = vmatpush.bf16.msra.mxu0 %v834
    %955 = vmatpush.bf16.msra.mxu0 %v830
    %956 = vmatpush.bf16.msra.mxu0 %v826
    %957 = vmatpush.bf16.msra.mxu0 %v822
    %958 = vmatmul.bf16.gmra.mxu0 %v626
    %v959 = vpop.f32.mrf.mxu0
    %v960 = vadd.f32 %v426, %v959
    %v961 = vpop.f32.mrf.mxu0
    %962 = vdwg.mxu0
    %963 = vmatpush.bf16.msra.mxu0 %v882
    %964 = vmatpush.bf16.msra.mxu0 %v878
    %965 = vmatpush.bf16.msra.mxu0 %v874
    %966 = vmatpush.bf16.msra.mxu0 %v870
    %967 = vmatpush.bf16.msra.mxu0 %v866
    %968 = vmatpush.bf16.msra.mxu0 %v862
    %969 = vmatpush.bf16.msra.mxu0 %v858
    %970 = vmatpush.bf16.msra.mxu0 %v854
    %971 = vmatmul.bf16.gmra.mxu0 %v627
    %v972 = vpop.f32.mrf.mxu0
    %v973 = vadd.f32 %v960, %v972
    %v974 = vpop.f32.mrf.mxu0
    %975 = vdwg.mxu0
    %976 = vmatpush.bf16.msra.mxu0 %v851
    %977 = vmatpush.bf16.msra.mxu0 %v847
    %978 = vmatpush.bf16.msra.mxu0 %v843
    %979 = vmatpush.bf16.msra.mxu0 %v839
    %980 = vmatpush.bf16.msra.mxu0 %v835
    %981 = vmatpush.bf16.msra.mxu0 %v831
    %982 = vmatpush.bf16.msra.mxu0 %v827
    %983 = vmatpush.bf16.msra.mxu0 %v823
    %984 = vmatmul.bf16.gmra.mxu0 %v626
    %v985 = vpop.f32.mrf.mxu0
    %v986 = vadd.f32 %v427, %v985
    %v987 = vpop.f32.mrf.mxu0
    %988 = vdwg.mxu0
    %989 = vmatpush.bf16.msra.mxu0 %v883
    %990 = vmatpush.bf16.msra.mxu0 %v879
    %991 = vmatpush.bf16.msra.mxu0 %v875
    %992 = vmatpush.bf16.msra.mxu0 %v871
    %993 = vmatpush.bf16.msra.mxu0 %v867
    %994 = vmatpush.bf16.msra.mxu0 %v863
    %995 = vmatpush.bf16.msra.mxu0 %v859
    %996 = vmatpush.bf16.msra.mxu0 %v855
    %997 = vmatmul.bf16.gmra.mxu0 %v627
    %v998 = vpop.f32.mrf.mxu0
    %v999 = vadd.f32 %v986, %v998
    %v1000 = vpop.f32.mrf.mxu0
    %1001 = vdwg.mxu0
    %1002 = vmatpush.bf16.msra.mxu0 %v852
    %1003 = vmatpush.bf16.msra.mxu0 %v848
    %1004 = vmatpush.bf16.msra.mxu0 %v844
    %1005 = vmatpush.bf16.msra.mxu0 %v840
    %1006 = vmatpush.bf16.msra.mxu0 %v836
    %1007 = vmatpush.bf16.msra.mxu0 %v832
    %1008 = vmatpush.bf16.msra.mxu0 %v828
    %1009 = vmatpush.bf16.msra.mxu0 %v824
    %1010 = vmatmul.bf16.gmra.mxu0 %v626
    %v1011 = vpop.f32.mrf.mxu0
    %v1012 = vadd.f32 %v428, %v1011
    %v1013 = vpop.f32.mrf.mxu0
    %1014 = vdwg.mxu0
    %1015 = vmatpush.bf16.msra.mxu0 %v884
    %1016 = vmatpush.bf16.msra.mxu0 %v880
    %1017 = vmatpush.bf16.msra.mxu0 %v876
    %1018 = vmatpush.bf16.msra.mxu0 %v872
    %1019 = vmatpush.bf16.msra.mxu0 %v868
    %1020 = vmatpush.bf16.msra.mxu0 %v864
    %1021 = vmatpush.bf16.msra.mxu0 %v860
    %1022 = vmatpush.bf16.msra.mxu0 %v856
    %1023 = vmatmul.bf16.gmra.mxu0 %v627
    %v1024 = vpop.f32.mrf.mxu0
    %v1025 = vadd.f32 %v1012, %v1024
    %v1026 = vpop.f32.mrf.mxu0
    %1027 = vdwg.mxu0
    %1028 = vmatpush.bf16.msra.mxu0 %v853
    %1029 = vmatpush.bf16.msra.mxu0 %v849
    %1030 = vmatpush.bf16.msra.mxu0 %v845
    %1031 = vmatpush.bf16.msra.mxu0 %v841
    %1032 = vmatpush.bf16.msra.mxu0 %v837
    %1033 = vmatpush.bf16.msra.mxu0 %v833
    %1034 = vmatpush.bf16.msra.mxu0 %v829
    %1035 = vmatpush.bf16.msra.mxu0 %v825
    %1036 = vmatmul.bf16.gmra.mxu0 %v626
    %v1037 = vpop.f32.mrf.mxu0
    %v1038 = vadd.f32 %v429, %v1037
    %v1039 = vpop.f32.mrf.mxu0
    %1040 = vdwg.mxu0
    %1041 = vmatpush.bf16.msra.mxu0 %v885
    %1042 = vmatpush.bf16.msra.mxu0 %v881
    %1043 = vmatpush.bf16.msra.mxu0 %v877
    %1044 = vmatpush.bf16.msra.mxu0 %v873
    %1045 = vmatpush.bf16.msra.mxu0 %v869
    %1046 = vmatpush.bf16.msra.mxu0 %v865
    %1047 = vmatpush.bf16.msra.mxu0 %v861
    %1048 = vmatpush.bf16.msra.mxu0 %v857
    %1049 = vmatmul.bf16.gmra.mxu0 %v627
    %v1050 = vpop.f32.mrf.mxu0
    %v1051 = vadd.f32 %v1038, %v1050
    %v1052 = vpop.f32.mrf.mxu0
    %1053 = vdwg.mxu0
    %v1054 = vmul.f32 %v973, 0.5
    %v1055 = vtanh.pop %v1054
    %v1056 = vmul.f32 %v1055, 0.5
    %v1057 = vadd.f32 %v1056, 0.5
    %v1058 = vmul.f32 %v999, 0.5
    %v1059 = vtanh.pop %v1058
    %v1060 = vmul.f32 %v1059, 0.5
    %v1061 = vadd.f32 %v1060, 0.5
    %v1062 = vmul.f32 %v1057, %v1051
    %v1063 = vadd.f32 %v1025, %v1062
    %v1064 = vtanh.pop %v1063
    %v1065 = vsub.f32 1.0, %v1061
    %v1066 = vmul.f32 %v1065, %v1064
    %v1067 = vmul.f32 %v1061, 0.0
    %v1068 = vadd.f32 %v1066, %v1067
    %v1069 = vpack.c.bf16 %v1068, %v1068
    %1070 = vst [vmem:[#allocation2 + $0x4] sm:$0xf] %v1069
    %v1071 = vadd.f32 %v1068, 0.0
    %v1072 = vadd.f32 %v222, %v593
    %v1073 = vmul.f32 %v1072, 0.5
    %v1074 = vtanh.pop %v1073
    %v1075 = vmul.f32 %v1074, 0.5
    %v1076 = vadd.f32 %v1075, 0.5
    %v1077 = vadd.f32 %v263, %v606
    %v1078 = vmul.f32 %v1077, 0.5
    %v1079 = vtanh.pop %v1078
    %v1080 = vmul.f32 %v1079, 0.5
    %v1081 = vadd.f32 %v1080, 0.5
    %v1082 = vadd.f32 %v619, %v422
    %v1083 = vmul.f32 %v1076, %v1082
    %v1084 = vadd.f32 %v304, %v1083
    %v1085 = vtanh.pop %v1084
    %v1086 = vsub.f32 1.0, %v1081
    %v1087 = vmul.f32 %v1086, %v1085
    %v1088 = vmul.f32 %v1081, %v452
    %v1089 = vadd.f32 %v1087, %v1088
    %v1090 = vpack.c.bf16 %v1089, %v1089
    %1091 = vst [vmem:[#allocation2] sm:$0xf] %v1090
    %1092 = vmatpush.bf16.msra.mxu0 %v556
    %1093 = vmatpush.bf16.msra.mxu0 %v553
    %1094 = vmatpush.bf16.msra.mxu0 %v550
    %1095 = vmatpush.bf16.msra.mxu0 %v547
    %1096 = vmatpush.bf16.msra.mxu0 %v544
    %1097 = vmatpush.bf16.msra.mxu0 %v541
    %1098 = vmatpush.bf16.msra.mxu0 %v538
    %1099 = vmatpush.bf16.msra.mxu0 %v535
    %1100 = vmatmul.bf16.gmra.mxu0 %v1090
    %v1101 = vpop.f32.mrf.mxu0
    %v1102 = vadd.f32 0.0, %v1101
    %v1103 = vpop.f32.mrf.mxu0
    %1104 = vdwg.mxu0
    %1105 = vmatpush.bf16.msra.mxu0 %v557
    %1106 = vmatpush.bf16.msra.mxu0 %v554
    %1107 = vmatpush.bf16.msra.mxu0 %v551
    %1108 = vmatpush.bf16.msra.mxu0 %v548
    %1109 = vmatpush.bf16.msra.mxu0 %v545
    %1110 = vmatpush.bf16.msra.mxu0 %v542
    %1111 = vmatpush.bf16.msra.mxu0 %v539
    %1112 = vmatpush.bf16.msra.mxu0 %v536
    %1113 = vmatmul.bf16.gmra.mxu0 %v1090
    %v1114 = vpop.f32.mrf.mxu0
    %v1115 = vadd.f32 0.0, %v1114
    %v1116 = vpop.f32.mrf.mxu0
    %1117 = vdwg.mxu0
    %1118 = vmatpush.bf16.msra.mxu0 %v558
    %1119 = vmatpush.bf16.msra.mxu0 %v555
    %1120 = vmatpush.bf16.msra.mxu0 %v552
    %1121 = vmatpush.bf16.msra.mxu0 %v549
    %1122 = vmatpush.bf16.msra.mxu0 %v546
    %1123 = vmatpush.bf16.msra.mxu0 %v543
    %1124 = vmatpush.bf16.msra.mxu0 %v540
    %1125 = vmatpush.bf16.msra.mxu0 %v537
    %1126 = vmatmul.bf16.gmra.mxu0 %v1090
    %v1127 = vpop.f32.mrf.mxu0
    %v1128 = vadd.f32 0.0, %v1127
    %v1129 = vpop.f32.mrf.mxu0
    %1130 = vdwg.mxu0
    %v1131 = vld [vmem:[#allocation2] sm:$0xff]
    %v1133 = vunpack.c.l.b16 %v1131
    %v1134 = vunpack.c.h.b16 %v1131
    %v1135 = vpack.c.b16 %v1133, %v1133
    %v1136 = vpack.c.b16 %v1134, %v1134
    %1139 = vmatpush.bf16.msra.mxu0 %v850
    %1140 = vmatpush.bf16.msra.mxu0 %v846
    %1141 = vmatpush.bf16.msra.mxu0 %v842
    %1142 = vmatpush.bf16.msra.mxu0 %v838
    %1143 = vmatpush.bf16.msra.mxu0 %v834
    %1144 = vmatpush.bf16.msra.mxu0 %v830
    %1145 = vmatpush.bf16.msra.mxu0 %v826
    %1146 = vmatpush.bf16.msra.mxu0 %v822
    %1147 = vmatmul.bf16.gmra.mxu0 %v1135
    %v1148 = vpop.f32.mrf.mxu0
    %v1149 = vadd.f32 %v426, %v1148
    %v1150 = vpop.f32.mrf.mxu0
    %1151 = vdwg.mxu0
    %1152 = vmatpush.bf16.msra.mxu0 %v882
    %1153 = vmatpush.bf16.msra.mxu0 %v878
    %1154 = vmatpush.bf16.msra.mxu0 %v874
    %1155 = vmatpush.bf16.msra.mxu0 %v870
    %1156 = vmatpush.bf16.msra.mxu0 %v866
    %1157 = vmatpush.bf16.msra.mxu0 %v862
    %1158 = vmatpush.bf16.msra.mxu0 %v858
    %1159 = vmatpush.bf16.msra.mxu0 %v854
    %1160 = vmatmul.bf16.gmra.mxu0 %v1136
    %v1161 = vpop.f32.mrf.mxu0
    %v1162 = vadd.f32 %v1149, %v1161
    %v1163 = vpop.f32.mrf.mxu0
    %1164 = vdwg.mxu0
    %1165 = vmatpush.bf16.msra.mxu0 %v851
    %1166 = vmatpush.bf16.msra.mxu0 %v847
    %1167 = vmatpush.bf16.msra.mxu0 %v843
    %1168 = vmatpush.bf16.msra.mxu0 %v839
    %1169 = vmatpush.bf16.msra.mxu0 %v835
    %1170 = vmatpush.bf16.msra.mxu0 %v831
    %1171 = vmatpush.bf16.msra.mxu0 %v827
    %1172 = vmatpush.bf16.msra.mxu0 %v823
    %1173 = vmatmul.bf16.gmra.mxu0 %v1135
    %v1174 = vpop.f32.mrf.mxu0
    %v1175 = vadd.f32 %v427, %v1174
    %v1176 = vpop.f32.mrf.mxu0
    %1177 = vdwg.mxu0
    %1178 = vmatpush.bf16.msra.mxu0 %v883
    %1179 = vmatpush.bf16.msra.mxu0 %v879
    %1180 = vmatpush.bf16.msra.mxu0 %v875
    %1181 = vmatpush.bf16.msra.mxu0 %v871
    %1182 = vmatpush.bf16.msra.mxu0 %v867
    %1183 = vmatpush.bf16.msra.mxu0 %v863
    %1184 = vmatpush.bf16.msra.mxu0 %v859
    %1185 = vmatpush.bf16.msra.mxu0 %v855
    %1186 = vmatmul.bf16.gmra.mxu0 %v1136
    %v1187 = vpop.f32.mrf.mxu0
    %v1188 = vadd.f32 %v1175, %v1187
    %v1189 = vpop.f32.mrf.mxu0
    %1190 = vdwg.mxu0
    %1191 = vmatpush.bf16.msra.mxu0 %v852
    %1192 = vmatpush.bf16.msra.mxu0 %v848
    %1193 = vmatpush.bf16.msra.mxu0 %v844
    %1194 = vmatpush.bf16.msra.mxu0 %v840
    %1195 = vmatpush.bf16.msra.mxu0 %v836
    %1196 = vmatpush.bf16.msra.mxu0 %v832
    %1197 = vmatpush.bf16.msra.mxu0 %v828
    %1198 = vmatpush.bf16.msra.mxu0 %v824
    %1199 = vmatmul.bf16.gmra.mxu0 %v1135
    %v1200 = vpop.f32.mrf.mxu0
    %v1201 = vadd.f32 %v428, %v1200
    %v1202 = vpop.f32.mrf.mxu0
    %1203 = vdwg.mxu0
    %1204 = vmatpush.bf16.msra.mxu0 %v884
    %1205 = vmatpush.bf16.msra.mxu0 %v880
    %1206 = vmatpush.bf16.msra.mxu0 %v876
    %1207 = vmatpush.bf16.msra.mxu0 %v872
    %1208 = vmatpush.bf16.msra.mxu0 %v868
    %1209 = vmatpush.bf16.msra.mxu0 %v864
    %1210 = vmatpush.bf16.msra.mxu0 %v860
    %1211 = vmatpush.bf16.msra.mxu0 %v856
    %1212 = vmatmul.bf16.gmra.mxu0 %v1136
    %v1213 = vpop.f32.mrf.mxu0
    %v1214 = vadd.f32 %v1201, %v1213
    %v1215 = vpop.f32.mrf.mxu0
    %1216 = vdwg.mxu0
    %1217 = vmatpush.bf16.msra.mxu0 %v853
    %1218 = vmatpush.bf16.msra.mxu0 %v849
    %1219 = vmatpush.bf16.msra.mxu0 %v845
    %1220 = vmatpush.bf16.msra.mxu0 %v841
    %1221 = vmatpush.bf16.msra.mxu0 %v837
    %1222 = vmatpush.bf16.msra.mxu0 %v833
    %1223 = vmatpush.bf16.msra.mxu0 %v829
    %1224 = vmatpush.bf16.msra.mxu0 %v825
    %1225 = vmatmul.bf16.gmra.mxu0 %v1135
    %v1226 = vpop.f32.mrf.mxu0
    %v1227 = vadd.f32 %v429, %v1226
    %v1228 = vpop.f32.mrf.mxu0
    %1229 = vdwg.mxu0
    %1230 = vmatpush.bf16.msra.mxu0 %v885
    %1231 = vmatpush.bf16.msra.mxu0 %v881
    %1232 = vmatpush.bf16.msra.mxu0 %v877
    %1233 = vmatpush.bf16.msra.mxu0 %v873
    %1234 = vmatpush.bf16.msra.mxu0 %v869
    %1235 = vmatpush.bf16.msra.mxu0 %v865
    %1236 = vmatpush.bf16.msra.mxu0 %v861
    %1237 = vmatpush.bf16.msra.mxu0 %v857
    %1238 = vmatmul.bf16.gmra.mxu0 %v1136
    %v1239 = vpop.f32.mrf.mxu0
    %v1240 = vadd.f32 %v1227, %v1239
    %v1241 = vpop.f32.mrf.mxu0
    %1242 = vdwg.mxu0
    %v1243 = vmul.f32 %v1162, 0.5
    %v1244 = vtanh.pop %v1243
    %v1245 = vmul.f32 %v1244, 0.5
    %v1246 = vadd.f32 %v1245, 0.5
    %v1247 = vmul.f32 %v1188, 0.5
    %v1248 = vtanh.pop %v1247
    %v1249 = vmul.f32 %v1248, 0.5
    %v1250 = vadd.f32 %v1249, 0.5
    %v1251 = vmul.f32 %v1246, %v1240
    %v1252 = vadd.f32 %v1214, %v1251
    %v1253 = vtanh.pop %v1252
    %v1254 = vsub.f32 1.0, %v1250
    %v1255 = vmul.f32 %v1254, %v1253
    %v1256 = vmul.f32 %v1250, %v1068
    %v1257 = vadd.f32 %v1255, %v1256
    %v1258 = vpack.c.bf16 %v1257, %v1257
    %1259 = vst [vmem:[#allocation2 + $0x4] sm:$0xf] %v1258
    %v1260 = vadd.f32 %v1071, %v1257
    %v1261 = vadd.f32 %v225, %v1102
    %v1262 = vmul.f32 %v1261, 0.5
    %v1263 = vtanh.pop %v1262
    %v1264 = vmul.f32 %v1263, 0.5
    %v1265 = vadd.f32 %v1264, 0.5
    %v1266 = vadd.f32 %v266, %v1115
    %v1267 = vmul.f32 %v1266, 0.5
    %v1268 = vtanh.pop %v1267
    %v1269 = vmul.f32 %v1268, 0.5
    %v1270 = vadd.f32 %v1269, 0.5
    %v1271 = vadd.f32 %v1128, %v422
    %v1272 = vmul.f32 %v1265, %v1271
    %v1273 = vadd.f32 %v307, %v1272
    %v1274 = vtanh.pop %v1273
    %v1275 = vsub.f32 1.0, %v1270
    %v1276 = vmul.f32 %v1275, %v1274
    %v1277 = vmul.f32 %v1270, %v1089
    %v1278 = vadd.f32 %v1276, %v1277
    %v1279 = vpack.c.bf16 %v1278, %v1278
    %1280 = vst [vmem:[#allocation2] sm:$0xf] %v1279
    %1281 = vmatpush.bf16.msra.mxu0 %v556
    %1282 = vmatpush.bf16.msra.mxu0 %v553
    %1283 = vmatpush.bf16.msra.mxu0 %v550
    %1284 = vmatpush.bf16.msra.mxu0 %v547
    %1285 = vmatpush.bf16.msra.mxu0 %v544
    %1286 = vmatpush.bf16.msra.mxu0 %v541
    %1287 = vmatpush.bf16.msra.mxu0 %v538
    %1288 = vmatpush.bf16.msra.mxu0 %v535
    %1289 = vmatmul.bf16.gmra.mxu0 %v1279
    %v1290 = vpop.f32.mrf.mxu0
    %v1291 = vadd.f32 0.0, %v1290
    %v1292 = vpop.f32.mrf.mxu0
    %1293 = vdwg.mxu0
    %1294 = vmatpush.bf16.msra.mxu0 %v557
    %1295 = vmatpush.bf16.msra.mxu0 %v554
    %1296 = vmatpush.bf16.msra.mxu0 %v551
    %1297 = vmatpush.bf16.msra.mxu0 %v548
    %1298 = vmatpush.bf16.msra.mxu0 %v545
    %1299 = vmatpush.bf16.msra.mxu0 %v542
    %1300 = vmatpush.bf16.msra.mxu0 %v539
    %1301 = vmatpush.bf16.msra.mxu0 %v536
    %1302 = vmatmul.bf16.gmra.mxu0 %v1279
    %v1303 = vpop.f32.mrf.mxu0
    %v1304 = vadd.f32 0.0, %v1303
    %v1305 = vpop.f32.mrf.mxu0
    %1306 = vdwg.mxu0
    %1307 = vmatpush.bf16.msra.mxu0 %v558
    %1308 = vmatpush.bf16.msra.mxu0 %v555
    %1309 = vmatpush.bf16.msra.mxu0 %v552
    %1310 = vmatpush.bf16.msra.mxu0 %v549
    %1311 = vmatpush.bf16.msra.mxu0 %v546
    %1312 = vmatpush.bf16.msra.mxu0 %v543
    %1313 = vmatpush.bf16.msra.mxu0 %v540
    %1314 = vmatpush.bf16.msra.mxu0 %v537
    %1315 = vmatmul.bf16.gmra.mxu0 %v1279
    %v1316 = vpop.f32.mrf.mxu0
    %v1317 = vadd.f32 0.0, %v1316
    %v1318 = vpop.f32.mrf.mxu0
    %1319 = vdwg.mxu0
    %v1320 = vld [vmem:[#allocation2] sm:$0xff]
    %v1322 = vunpack.c.l.b16 %v1320
    %v1323 = vunpack.c.h.b16 %v1320
    %v1324 = vpack.c.b16 %v1322, %v1322
    %v1325 = vpack.c.b16 %v1323, %v1323
    %1328 = vmatpush.bf16.msra.mxu0 %v850
    %1329 = vmatpush.bf16.msra.mxu0 %v846
    %1330 = vmatpush.bf16.msra.mxu0 %v842
    %1331 = vmatpush.bf16.msra.mxu0 %v838
    %1332 = vmatpush.bf16.msra.mxu0 %v834
    %1333 = vmatpush.bf16.msra.mxu0 %v830
    %1334 = vmatpush.bf16.msra.mxu0 %v826
    %1335 = vmatpush.bf16.msra.mxu0 %v822
    %1336 = vmatmul.bf16.gmra.mxu0 %v1324
    %v1337 = vpop.f32.mrf.mxu0
    %v1338 = vadd.f32 %v426, %v1337
    %v1339 = vpop.f32.mrf.mxu0
    %1340 = vdwg.mxu0
    %1341 = vmatpush.bf16.msra.mxu0 %v882
    %1342 = vmatpush.bf16.msra.mxu0 %v878
    %1343 = vmatpush.bf16.msra.mxu0 %v874
    %1344 = vmatpush.bf16.msra.mxu0 %v870
    %1345 = vmatpush.bf16.msra.mxu0 %v866
    %1346 = vmatpush.bf16.msra.mxu0 %v862
    %1347 = vmatpush.bf16.msra.mxu0 %v858
    %1348 = vmatpush.bf16.msra.mxu0 %v854
    %1349 = vmatmul.bf16.gmra.mxu0 %v1325
    %v1350 = vpop.f32.mrf.mxu0
    %v1351 = vadd.f32 %v1338, %v1350
    %v1352 = vpop.f32.mrf.mxu0
    %1353 = vdwg.mxu0
    %1354 = vmatpush.bf16.msra.mxu0 %v851
    %1355 = vmatpush.bf16.msra.mxu0 %v847
    %1356 = vmatpush.bf16.msra.mxu0 %v843
    %1357 = vmatpush.bf16.msra.mxu0 %v839
    %1358 = vmatpush.bf16.msra.mxu0 %v835
    %1359 = vmatpush.bf16.msra.mxu0 %v831
    %1360 = vmatpush.bf16.msra.mxu0 %v827
    %1361 = vmatpush.bf16.msra.mxu0 %v823
    %1362 = vmatmul.bf16.gmra.mxu0 %v1324
    %v1363 = vpop.f32.mrf.mxu0
    %v1364 = vadd.f32 %v427, %v1363
    %v1365 = vpop.f32.mrf.mxu0
    %1366 = vdwg.mxu0
    %1367 = vmatpush.bf16.msra.mxu0 %v883
    %1368 = vmatpush.bf16.msra.mxu0 %v879
    %1369 = vmatpush.bf16.msra.mxu0 %v875
    %1370 = vmatpush.bf16.msra.mxu0 %v871
    %1371 = vmatpush.bf16.msra.mxu0 %v867
    %1372 = vmatpush.bf16.msra.mxu0 %v863
    %1373 = vmatpush.bf16.msra.mxu0 %v859
    %1374 = vmatpush.bf16.msra.mxu0 %v855
    %1375 = vmatmul.bf16.gmra.mxu0 %v1325
    %v1376 = vpop.f32.mrf.mxu0
    %v1377 = vadd.f32 %v1364, %v1376
    %v1378 = vpop.f32.mrf.mxu0
    %1379 = vdwg.mxu0
    %1380 = vmatpush.bf16.msra.mxu0 %v852
    %1381 = vmatpush.bf16.msra.mxu0 %v848
    %1382 = vmatpush.bf16.msra.mxu0 %v844
    %1383 = vmatpush.bf16.msra.mxu0 %v840
    %1384 = vmatpush.bf16.msra.mxu0 %v836
    %1385 = vmatpush.bf16.msra.mxu0 %v832
    %1386 = vmatpush.bf16.msra.mxu0 %v828
    %1387 = vmatpush.bf16.msra.mxu0 %v824
    %1388 = vmatmul.bf16.gmra.mxu0 %v1324
    %v1389 = vpop.f32.mrf.mxu0
    %v1390 = vadd.f32 %v428, %v1389
    %v1391 = vpop.f32.mrf.mxu0
    %1392 = vdwg.mxu0
    %1393 = vmatpush.bf16.msra.mxu0 %v884
    %1394 = vmatpush.bf16.msra.mxu0 %v880
    %1395 = vmatpush.bf16.msra.mxu0 %v876
    %1396 = vmatpush.bf16.msra.mxu0 %v872
    %1397 = vmatpush.bf16.msra.mxu0 %v868
    %1398 = vmatpush.bf16.msra.mxu0 %v864
    %1399 = vmatpush.bf16.msra.mxu0 %v860
    %1400 = vmatpush.bf16.msra.mxu0 %v856
    %1401 = vmatmul.bf16.gmra.mxu0 %v1325
    %v1402 = vpop.f32.mrf.mxu0
    %v1403 = vadd.f32 %v1390, %v1402
    %v1404 = vpop.f32.mrf.mxu0
    %1405 = vdwg.mxu0
    %1406 = vmatpush.bf16.msra.mxu0 %v853
    %1407 = vmatpush.bf16.msra.mxu0 %v849
    %1408 = vmatpush.bf16.msra.mxu0 %v845
    %1409 = vmatpush.bf16.msra.mxu0 %v841
    %1410 = vmatpush.bf16.msra.mxu0 %v837
    %1411 = vmatpush.bf16.msra.mxu0 %v833
    %1412 = vmatpush.bf16.msra.mxu0 %v829
    %1413 = vmatpush.bf16.msra.mxu0 %v825
    %1414 = vmatmul.bf16.gmra.mxu0 %v1324
    %v1415 = vpop.f32.mrf.mxu0
    %v1416 = vadd.f32 %v429, %v1415
    %v1417 = vpop.f32.mrf.mxu0
    %1418 = vdwg.mxu0
    %1419 = vmatpush.bf16.msra.mxu0 %v885
    %1420 = vmatpush.bf16.msra.mxu0 %v881
    %1421 = vmatpush.bf16.msra.mxu0 %v877
    %1422 = vmatpush.bf16.msra.mxu0 %v873
    %1423 = vmatpush.bf16.msra.mxu0 %v869
    %1424 = vmatpush.bf16.msra.mxu0 %v865
    %1425 = vmatpush.bf16.msra.mxu0 %v861
    %1426 = vmatpush.bf16.msra.mxu0 %v857
    %1427 = vmatmul.bf16.gmra.mxu0 %v1325
    %v1428 = vpop.f32.mrf.mxu0
    %v1429 = vadd.f32 %v1416, %v1428
    %v1430 = vpop.f32.mrf.mxu0
    %1431 = vdwg.mxu0
    %v1432 = vmul.f32 %v1351, 0.5
    %v1433 = vtanh.pop %v1432
    %v1434 = vmul.f32 %v1433, 0.5
    %v1435 = vadd.f32 %v1434, 0.5
    %v1436 = vmul.f32 %v1377, 0.5
    %v1437 = vtanh.pop %v1436
    %v1438 = vmul.f32 %v1437, 0.5
    %v1439 = vadd.f32 %v1438, 0.5
    %v1440 = vmul.f32 %v1435, %v1429
    %v1441 = vadd.f32 %v1403, %v1440
    %v1442 = vtanh.pop %v1441
    %v1443 = vsub.f32 1.0, %v1439
    %v1444 = vmul.f32 %v1443, %v1442
    %v1445 = vmul.f32 %v1439, %v1257
    %v1446 = vadd.f32 %v1444, %v1445
    %v1447 = vpack.c.bf16 %v1446, %v1446
    %1448 = vst [vmem:[#allocation2 + $0x4] sm:$0xf] %v1447
    %v1449 = vadd.f32 %v1260, %v1446
    %v1450 = vadd.f32 %v228, %v1291
    %v1451 = vmul.f32 %v1450, 0.5
    %v1452 = vtanh.pop %v1451
    %v1453 = vmul.f32 %v1452, 0.5
    %v1454 = vadd.f32 %v1453, 0.5
    %v1455 = vadd.f32 %v269, %v1304
    %v1456 = vmul.f32 %v1455, 0.5
    %v1457 = vtanh.pop %v1456
    %v1458 = vmul.f32 %v1457, 0.5
    %v1459 = vadd.f32 %v1458, 0.5
    %v1460 = vadd.f32 %v1317, %v422
    %v1461 = vmul.f32 %v1454, %v1460
    %v1462 = vadd.f32 %v310, %v1461
    %v1463 = vtanh.pop %v1462
    %v1464 = vsub.f32 1.0, %v1459
    %v1465 = vmul.f32 %v1464, %v1463
    %v1466 = vmul.f32 %v1459, %v1278
    %v1467 = vadd.f32 %v1465, %v1466
    %v1468 = vpack.c.bf16 %v1467, %v1467
    %1469 = vst [vmem:[#allocation2] sm:$0xf] %v1468
    %1470 = vmatpush.bf16.msra.mxu0 %v556
    %1471 = vmatpush.bf16.msra.mxu0 %v553
    %1472 = vmatpush.bf16.msra.mxu0 %v550
    %1473 = vmatpush.bf16.msra.mxu0 %v547
    %1474 = vmatpush.bf16.msra.mxu0 %v544
    %1475 = vmatpush.bf16.msra.mxu0 %v541
    %1476 = vmatpush.bf16.msra.mxu0 %v538
    %1477 = vmatpush.bf16.msra.mxu0 %v535
    %1478 = vmatmul.bf16.gmra.mxu0 %v1468
    %v1479 = vpop.f32.mrf.mxu0
    %v1480 = vadd.f32 0.0, %v1479
    %v1481 = vpop.f32.mrf.mxu0
    %1482 = vdwg.mxu0
    %1483 = vmatpush.bf16.msra.mxu0 %v557
    %1484 = vmatpush.bf16.msra.mxu0 %v554
    %1485 = vmatpush.bf16.msra.mxu0 %v551
    %1486 = vmatpush.bf16.msra.mxu0 %v548
    %1487 = vmatpush.bf16.msra.mxu0 %v545
    %1488 = vmatpush.bf16.msra.mxu0 %v542
    %1489 = vmatpush.bf16.msra.mxu0 %v539
    %1490 = vmatpush.bf16.msra.mxu0 %v536
    %1491 = vmatmul.bf16.gmra.mxu0 %v1468
    %v1492 = vpop.f32.mrf.mxu0
    %v1493 = vadd.f32 0.0, %v1492
    %v1494 = vpop.f32.mrf.mxu0
    %1495 = vdwg.mxu0
    %1496 = vmatpush.bf16.msra.mxu0 %v558
    %1497 = vmatpush.bf16.msra.mxu0 %v555
    %1498 = vmatpush.bf16.msra.mxu0 %v552
    %1499 = vmatpush.bf16.msra.mxu0 %v549
    %1500 = vmatpush.bf16.msra.mxu0 %v546
    %1501 = vmatpush.bf16.msra.mxu0 %v543
    %1502 = vmatpush.bf16.msra.mxu0 %v540
    %1503 = vmatpush.bf16.msra.mxu0 %v537
    %1504 = vmatmul.bf16.gmra.mxu0 %v1468
    %v1505 = vpop.f32.mrf.mxu0
    %v1506 = vadd.f32 0.0, %v1505
    %v1507 = vpop.f32.mrf.mxu0
    %1508 = vdwg.mxu0
    %v1509 = vld [vmem:[#allocation2] sm:$0xff]
    %v1511 = vunpack.c.l.b16 %v1509
    %v1512 = vunpack.c.h.b16 %v1509
    %v1513 = vpack.c.b16 %v1511, %v1511
    %v1514 = vpack.c.b16 %v1512, %v1512
    %1517 = vmatpush.bf16.msra.mxu0 %v850
    %1518 = vmatpush.bf16.msra.mxu0 %v846
    %1519 = vmatpush.bf16.msra.mxu0 %v842
    %1520 = vmatpush.bf16.msra.mxu0 %v838
    %1521 = vmatpush.bf16.msra.mxu0 %v834
    %1522 = vmatpush.bf16.msra.mxu0 %v830
    %1523 = vmatpush.bf16.msra.mxu0 %v826
    %1524 = vmatpush.bf16.msra.mxu0 %v822
    %1525 = vmatmul.bf16.gmra.mxu0 %v1513
    %v1526 = vpop.f32.mrf.mxu0
    %v1527 = vadd.f32 %v426, %v1526
    %v1528 = vpop.f32.mrf.mxu0
    %1529 = vdwg.mxu0
    %1530 = vmatpush.bf16.msra.mxu0 %v882
    %1531 = vmatpush.bf16.msra.mxu0 %v878
    %1532 = vmatpush.bf16.msra.mxu0 %v874
    %1533 = vmatpush.bf16.msra.mxu0 %v870
    %1534 = vmatpush.bf16.msra.mxu0 %v866
    %1535 = vmatpush.bf16.msra.mxu0 %v862
    %1536 = vmatpush.bf16.msra.mxu0 %v858
    %1537 = vmatpush.bf16.msra.mxu0 %v854
    %1538 = vmatmul.bf16.gmra.mxu0 %v1514
    %v1539 = vpop.f32.mrf.mxu0
    %v1540 = vadd.f32 %v1527, %v1539
    %v1541 = vpop.f32.mrf.mxu0
    %1542 = vdwg.mxu0
    %1543 = vmatpush.bf16.msra.mxu0 %v851
    %1544 = vmatpush.bf16.msra.mxu0 %v847
    %1545 = vmatpush.bf16.msra.mxu0 %v843
    %1546 = vmatpush.bf16.msra.mxu0 %v839
    %1547 = vmatpush.bf16.msra.mxu0 %v835
    %1548 = vmatpush.bf16.msra.mxu0 %v831
    %1549 = vmatpush.bf16.msra.mxu0 %v827
    %1550 = vmatpush.bf16.msra.mxu0 %v823
    %1551 = vmatmul.bf16.gmra.mxu0 %v1513
    %v1552 = vpop.f32.mrf.mxu0
    %v1553 = vadd.f32 %v427, %v1552
    %v1554 = vpop.f32.mrf.mxu0
    %1555 = vdwg.mxu0
    %1556 = vmatpush.bf16.msra.mxu0 %v883
    %1557 = vmatpush.bf16.msra.mxu0 %v879
    %1558 = vmatpush.bf16.msra.mxu0 %v875
    %1559 = vmatpush.bf16.msra.mxu0 %v871
    %1560 = vmatpush.bf16.msra.mxu0 %v867
    %1561 = vmatpush.bf16.msra.mxu0 %v863
    %1562 = vmatpush.bf16.msra.mxu0 %v859
    %1563 = vmatpush.bf16.msra.mxu0 %v855
    %1564 = vmatmul.bf16.gmra.mxu0 %v1514
    %v1565 = vpop.f32.mrf.mxu0
    %v1566 = vadd.f32 %v1553, %v1565
    %v1567 = vpop.f32.mrf.mxu0
    %1568 = vdwg.mxu0
    %1569 = vmatpush.bf16.msra.mxu0 %v852
    %1570 = vmatpush.bf16.msra.mxu0 %v848
    %1571 = vmatpush.bf16.msra.mxu0 %v844
    %1572 = vmatpush.bf16.msra.mxu0 %v840
    %1573 = vmatpush.bf16.msra.mxu0 %v836
    %1574 = vmatpush.bf16.msra.mxu0 %v832
    %1575 = vmatpush.bf16.msra.mxu0 %v828
    %1576 = vmatpush.bf16.msra.mxu0 %v824
    %1577 = vmatmul.bf16.gmra.mxu0 %v1513
    %v1578 = vpop.f32.mrf.mxu0
    %v1579 = vadd.f32 %v428, %v1578
    %v1580 = vpop.f32.mrf.mxu0
    %1581 = vdwg.mxu0
    %1582 = vmatpush.bf16.msra.mxu0 %v884
    %1583 = vmatpush.bf16.msra.mxu0 %v880
    %1584 = vmatpush.bf16.msra.mxu0 %v876
    %1585 = vmatpush.bf16.msra.mxu0 %v872
    %1586 = vmatpush.bf16.msra.mxu0 %v868
    %1587 = vmatpush.bf16.msra.mxu0 %v864
    %1588 = vmatpush.bf16.msra.mxu0 %v860
    %1589 = vmatpush.bf16.msra.mxu0 %v856
    %1590 = vmatmul.bf16.gmra.mxu0 %v1514
    %v1591 = vpop.f32.mrf.mxu0
    %v1592 = vadd.f32 %v1579, %v1591
    %v1593 = vpop.f32.mrf.mxu0
    %1594 = vdwg.mxu0
    %1595 = vmatpush.bf16.msra.mxu0 %v853
    %1596 = vmatpush.bf16.msra.mxu0 %v849
    %1597 = vmatpush.bf16.msra.mxu0 %v845
    %1598 = vmatpush.bf16.msra.mxu0 %v841
    %1599 = vmatpush.bf16.msra.mxu0 %v837
    %1600 = vmatpush.bf16.msra.mxu0 %v833
    %1601 = vmatpush.bf16.msra.mxu0 %v829
    %1602 = vmatpush.bf16.msra.mxu0 %v825
    %1603 = vmatmul.bf16.gmra.mxu0 %v1513
    %v1604 = vpop.f32.mrf.mxu0
    %v1605 = vadd.f32 %v429, %v1604
    %v1606 = vpop.f32.mrf.mxu0
    %1607 = vdwg.mxu0
    %1608 = vmatpush.bf16.msra.mxu0 %v885
    %1609 = vmatpush.bf16.msra.mxu0 %v881
    %1610 = vmatpush.bf16.msra.mxu0 %v877
    %1611 = vmatpush.bf16.msra.mxu0 %v873
    %1612 = vmatpush.bf16.msra.mxu0 %v869
    %1613 = vmatpush.bf16.msra.mxu0 %v865
    %1614 = vmatpush.bf16.msra.mxu0 %v861
    %1615 = vmatpush.bf16.msra.mxu0 %v857
    %1616 = vmatmul.bf16.gmra.mxu0 %v1514
    %v1617 = vpop.f32.mrf.mxu0
    %v1618 = vadd.f32 %v1605, %v1617
    %v1619 = vpop.f32.mrf.mxu0
    %1620 = vdwg.mxu0
    %v1621 = vmul.f32 %v1540, 0.5
    %v1622 = vtanh.pop %v1621
    %v1623 = vmul.f32 %v1622, 0.5
    %v1624 = vadd.f32 %v1623, 0.5
    %v1625 = vmul.f32 %v1566, 0.5
    %v1626 = vtanh.pop %v1625
    %v1627 = vmul.f32 %v1626, 0.5
    %v1628 = vadd.f32 %v1627, 0.5
    %v1629 = vmul.f32 %v1624, %v1618
    %v1630 = vadd.f32 %v1592, %v1629
    %v1631 = vtanh.pop %v1630
    %v1632 = vsub.f32 1.0, %v1628
    %v1633 = vmul.f32 %v1632, %v1631
    %v1634 = vmul.f32 %v1628, %v1446
    %v1635 = vadd.f32 %v1633, %v1634
    %v1636 = vpack.c.bf16 %v1635, %v1635
    %1637 = vst [vmem:[#allocation2 + $0x4] sm:$0xf] %v1636
    %v1638 = vadd.f32 %v1449, %v1635
    %v1639 = vadd.f32 %v231, %v1480
    %v1640 = vmul.f32 %v1639, 0.5
    %v1641 = vtanh.pop %v1640
    %v1642 = vmul.f32 %v1641, 0.5
    %v1643 = vadd.f32 %v1642, 0.5
    %v1644 = vadd.f32 %v272, %v1493
    %v1645 = vmul.f32 %v1644, 0.5
    %v1646 = vtanh.pop %v1645
    %v1647 = vmul.f32 %v1646, 0.5
    %v1648 = vadd.f32 %v1647, 0.5
    %v1649 = vadd.f32 %v1506, %v422
    %v1650 = vmul.f32 %v1643, %v1649
    %v1651 = vadd.f32 %v313, %v1650
    %v1652 = vtanh.pop %v1651
    %v1653 = vsub.f32 1.0, %v1648
    %v1654 = vmul.f32 %v1653, %v1652
    %v1655 = vmul.f32 %v1648, %v1467
    %v1656 = vadd.f32 %v1654, %v1655
    %v1657 = vpack.c.bf16 %v1656, %v1656
    %1658 = vst [vmem:[#allocation2] sm:$0xf] %v1657
    %1659 = vmatpush.bf16.msra.mxu0 %v556
    %1660 = vmatpush.bf16.msra.mxu0 %v553
    %1661 = vmatpush.bf16.msra.mxu0 %v550
    %1662 = vmatpush.bf16.msra.mxu0 %v547
    %1663 = vmatpush.bf16.msra.mxu0 %v544
    %1664 = vmatpush.bf16.msra.mxu0 %v541
    %1665 = vmatpush.bf16.msra.mxu0 %v538
    %1666 = vmatpush.bf16.msra.mxu0 %v535
    %1667 = vmatmul.bf16.gmra.mxu0 %v1657
    %v1668 = vpop.f32.mrf.mxu0
    %v1669 = vadd.f32 0.0, %v1668
    %v1670 = vpop.f32.mrf.mxu0
    %1671 = vdwg.mxu0
    %1672 = vmatpush.bf16.msra.mxu0 %v557
    %1673 = vmatpush.bf16.msra.mxu0 %v554
    %1674 = vmatpush.bf16.msra.mxu0 %v551
    %1675 = vmatpush.bf16.msra.mxu0 %v548
    %1676 = vmatpush.bf16.msra.mxu0 %v545
    %1677 = vmatpush.bf16.msra.mxu0 %v542
    %1678 = vmatpush.bf16.msra.mxu0 %v539
    %1679 = vmatpush.bf16.msra.mxu0 %v536
    %1680 = vmatmul.bf16.gmra.mxu0 %v1657
    %v1681 = vpop.f32.mrf.mxu0
    %v1682 = vadd.f32 0.0, %v1681
    %v1683 = vpop.f32.mrf.mxu0
    %1684 = vdwg.mxu0
    %1685 = vmatpush.bf16.msra.mxu0 %v558
    %1686 = vmatpush.bf16.msra.mxu0 %v555
    %1687 = vmatpush.bf16.msra.mxu0 %v552
    %1688 = vmatpush.bf16.msra.mxu0 %v549
    %1689 = vmatpush.bf16.msra.mxu0 %v546
    %1690 = vmatpush.bf16.msra.mxu0 %v543
    %1691 = vmatpush.bf16.msra.mxu0 %v540
    %1692 = vmatpush.bf16.msra.mxu0 %v537
    %1693 = vmatmul.bf16.gmra.mxu0 %v1657
    %v1694 = vpop.f32.mrf.mxu0
    %v1695 = vadd.f32 0.0, %v1694
    %v1696 = vpop.f32.mrf.mxu0
    %1697 = vdwg.mxu0
    %v1698 = vld [vmem:[#allocation2] sm:$0xff]
    %v1700 = vunpack.c.l.b16 %v1698
    %v1701 = vunpack.c.h.b16 %v1698
    %v1702 = vpack.c.b16 %v1700, %v1700
    %v1703 = vpack.c.b16 %v1701, %v1701
    %1706 = vmatpush.bf16.msra.mxu0 %v850
    %1707 = vmatpush.bf16.msra.mxu0 %v846
    %1708 = vmatpush.bf16.msra.mxu0 %v842
    %1709 = vmatpush.bf16.msra.mxu0 %v838
    %1710 = vmatpush.bf16.msra.mxu0 %v834
    %1711 = vmatpush.bf16.msra.mxu0 %v830
    %1712 = vmatpush.bf16.msra.mxu0 %v826
    %1713 = vmatpush.bf16.msra.mxu0 %v822
    %1714 = vmatmul.bf16.gmra.mxu0 %v1702
    %v1715 = vpop.f32.mrf.mxu0
    %v1716 = vadd.f32 %v426, %v1715
    %v1717 = vpop.f32.mrf.mxu0
    %1718 = vdwg.mxu0
    %1719 = vmatpush.bf16.msra.mxu0 %v882
    %1720 = vmatpush.bf16.msra.mxu0 %v878
    %1721 = vmatpush.bf16.msra.mxu0 %v874
    %1722 = vmatpush.bf16.msra.mxu0 %v870
    %1723 = vmatpush.bf16.msra.mxu0 %v866
    %1724 = vmatpush.bf16.msra.mxu0 %v862
    %1725 = vmatpush.bf16.msra.mxu0 %v858
    %1726 = vmatpush.bf16.msra.mxu0 %v854
    %1727 = vmatmul.bf16.gmra.mxu0 %v1703
    %v1728 = vpop.f32.mrf.mxu0
    %v1729 = vadd.f32 %v1716, %v1728
    %v1730 = vpop.f32.mrf.mxu0
    %1731 = vdwg.mxu0
    %1732 = vmatpush.bf16.msra.mxu0 %v851
    %1733 = vmatpush.bf16.msra.mxu0 %v847
    %1734 = vmatpush.bf16.msra.mxu0 %v843
    %1735 = vmatpush.bf16.msra.mxu0 %v839
    %1736 = vmatpush.bf16.msra.mxu0 %v835
    %1737 = vmatpush.bf16.msra.mxu0 %v831
    %1738 = vmatpush.bf16.msra.mxu0 %v827
    %1739 = vmatpush.bf16.msra.mxu0 %v823
    %1740 = vmatmul.bf16.gmra.mxu0 %v1702
    %v1741 = vpop.f32.mrf.mxu0
    %v1742 = vadd.f32 %v427, %v1741
    %v1743 = vpop.f32.mrf.mxu0
    %1744 = vdwg.mxu0
    %1745 = vmatpush.bf16.msra.mxu0 %v883
    %1746 = vmatpush.bf16.msra.mxu0 %v879
    %1747 = vmatpush.bf16.msra.mxu0 %v875
    %1748 = vmatpush.bf16.msra.mxu0 %v871
    %1749 = vmatpush.bf16.msra.mxu0 %v867
    %1750 = vmatpush.bf16.msra.mxu0 %v863
    %1751 = vmatpush.bf16.msra.mxu0 %v859
    %1752 = vmatpush.bf16.msra.mxu0 %v855
    %1753 = vmatmul.bf16.gmra.mxu0 %v1703
    %v1754 = vpop.f32.mrf.mxu0
    %v1755 = vadd.f32 %v1742, %v1754
    %v1756 = vpop.f32.mrf.mxu0
    %1757 = vdwg.mxu0
    %1758 = vmatpush.bf16.msra.mxu0 %v852
    %1759 = vmatpush.bf16.msra.mxu0 %v848
    %1760 = vmatpush.bf16.msra.mxu0 %v844
    %1761 = vmatpush.bf16.msra.mxu0 %v840
    %1762 = vmatpush.bf16.msra.mxu0 %v836
    %1763 = vmatpush.bf16.msra.mxu0 %v832
    %1764 = vmatpush.bf16.msra.mxu0 %v828
    %1765 = vmatpush.bf16.msra.mxu0 %v824
    %1766 = vmatmul.bf16.gmra.mxu0 %v1702
    %v1767 = vpop.f32.mrf.mxu0
    %v1768 = vadd.f32 %v428, %v1767
    %v1769 = vpop.f32.mrf.mxu0
    %1770 = vdwg.mxu0
    %1771 = vmatpush.bf16.msra.mxu0 %v884
    %1772 = vmatpush.bf16.msra.mxu0 %v880
    %1773 = vmatpush.bf16.msra.mxu0 %v876
    %1774 = vmatpush.bf16.msra.mxu0 %v872
    %1775 = vmatpush.bf16.msra.mxu0 %v868
    %1776 = vmatpush.bf16.msra.mxu0 %v864
    %1777 = vmatpush.bf16.msra.mxu0 %v860
    %1778 = vmatpush.bf16.msra.mxu0 %v856
    %1779 = vmatmul.bf16.gmra.mxu0 %v1703
    %v1780 = vpop.f32.mrf.mxu0
    %v1781 = vadd.f32 %v1768, %v1780
    %v1782 = vpop.f32.mrf.mxu0
    %1783 = vdwg.mxu0
    %1784 = vmatpush.bf16.msra.mxu0 %v853
    %1785 = vmatpush.bf16.msra.mxu0 %v849
    %1786 = vmatpush.bf16.msra.mxu0 %v845
    %1787 = vmatpush.bf16.msra.mxu0 %v841
    %1788 = vmatpush.bf16.msra.mxu0 %v837
    %1789 = vmatpush.bf16.msra.mxu0 %v833
    %1790 = vmatpush.bf16.msra.mxu0 %v829
    %1791 = vmatpush.bf16.msra.mxu0 %v825
    %1792 = vmatmul.bf16.gmra.mxu0 %v1702
    %v1793 = vpop.f32.mrf.mxu0
    %v1794 = vadd.f32 %v429, %v1793
    %v1795 = vpop.f32.mrf.mxu0
    %1796 = vdwg.mxu0
    %1797 = vmatpush.bf16.msra.mxu0 %v885
    %1798 = vmatpush.bf16.msra.mxu0 %v881
    %1799 = vmatpush.bf16.msra.mxu0 %v877
    %1800 = vmatpush.bf16.msra.mxu0 %v873
    %1801 = vmatpush.bf16.msra.mxu0 %v869
    %1802 = vmatpush.bf16.msra.mxu0 %v865
    %1803 = vmatpush.bf16.msra.mxu0 %v861
    %1804 = vmatpush.bf16.msra.mxu0 %v857
    %1805 = vmatmul.bf16.gmra.mxu0 %v1703
    %v1806 = vpop.f32.mrf.mxu0
    %v1807 = vadd.f32 %v1794, %v1806
    %v1808 = vpop.f32.mrf.mxu0
    %1809 = vdwg.mxu0
    %v1810 = vmul.f32 %v1729, 0.5
    %v1811 = vtanh.pop %v1810
    %v1812 = vmul.f32 %v1811, 0.5
    %v1813 = vadd.f32 %v1812, 0.5
    %v1814 = vmul.f32 %v1755, 0.5
    %v1815 = vtanh.pop %v1814
    %v1816 = vmul.f32 %v1815, 0.5
    %v1817 = vadd.f32 %v1816, 0.5
    %v1818 = vmul.f32 %v1813, %v1807
    %v1819 = vadd.f32 %v1781, %v1818
    %v1820 = vtanh.pop %v1819
    %v1821 = vsub.f32 1.0, %v1817
    %v1822 = vmul.f32 %v1821, %v1820
    %v1823 = vmul.f32 %v1817, %v1635
    %v1824 = vadd.f32 %v1822, %v1823
    %v1825 = vpack.c.bf16 %v1824, %v1824
    %1826 = vst [vmem:[#allocation2 + $0x4] sm:$0xf] %v1825
    %v1827 = vadd.f32 %v1638, %v1824
    %v1828 = vadd.f32 %v234, %v1669
    %v1829 = vmul.f32 %v1828, 0.5
    %v1830 = vtanh.pop %v1829
    %v1831 = vmul.f32 %v1830, 0.5
    %v1832 = vadd.f32 %v1831, 0.5
    %v1833 = vadd.f32 %v275, %v1682
    %v1834 = vmul.f32 %v1833, 0.5
    %v1835 = vtanh.pop %v1834
    %v1836 = vmul.f32 %v1835, 0.5
    %v1837 = vadd.f32 %v1836, 0.5
    %v1838 = vadd.f32 %v1695, %v422
    %v1839 = vmul.f32 %v1832, %v1838
    %v1840 = vadd.f32 %v316, %v1839
    %v1841 = vtanh.pop %v1840
    %v1842 = vsub.f32 1.0, %v1837
    %v1843 = vmul.f32 %v1842, %v1841
    %v1844 = vmul.f32 %v1837, %v1656
    %v1845 = vadd.f32 %v1843, %v1844
    %v1846 = vpack.c.bf16 %v1845, %v1845
    %1847 = vst [vmem:[#allocation2] sm:$0xf] %v1846
    %1848 = vmatpush.bf16.msra.mxu0 %v556
    %1849 = vmatpush.bf16.msra.mxu0 %v553
    %1850 = vmatpush.bf16.msra.mxu0 %v550
    %1851 = vmatpush.bf16.msra.mxu0 %v547
    %1852 = vmatpush.bf16.msra.mxu0 %v544
    %1853 = vmatpush.bf16.msra.mxu0 %v541
    %1854 = vmatpush.bf16.msra.mxu0 %v538
    %1855 = vmatpush.bf16.msra.mxu0 %v535
    %1856 = vmatmul.bf16.gmra.mxu0 %v1846
    %v1857 = vpop.f32.mrf.mxu0
    %v1858 = vadd.f32 0.0, %v1857
    %v1859 = vpop.f32.mrf.mxu0
    %1860 = vdwg.mxu0
    %1861 = vmatpush.bf16.msra.mxu0 %v557
    %1862 = vmatpush.bf16.msra.mxu0 %v554
    %1863 = vmatpush.bf16.msra.mxu0 %v551
    %1864 = vmatpush.bf16.msra.mxu0 %v548
    %1865 = vmatpush.bf16.msra.mxu0 %v545
    %1866 = vmatpush.bf16.msra.mxu0 %v542
    %1867 = vmatpush.bf16.msra.mxu0 %v539
    %1868 = vmatpush.bf16.msra.mxu0 %v536
    %1869 = vmatmul.bf16.gmra.mxu0 %v1846
    %v1870 = vpop.f32.mrf.mxu0
    %v1871 = vadd.f32 0.0, %v1870
    %v1872 = vpop.f32.mrf.mxu0
    %1873 = vdwg.mxu0
    %1874 = vmatpush.bf16.msra.mxu0 %v558
    %1875 = vmatpush.bf16.msra.mxu0 %v555
    %1876 = vmatpush.bf16.msra.mxu0 %v552
    %1877 = vmatpush.bf16.msra.mxu0 %v549
    %1878 = vmatpush.bf16.msra.mxu0 %v546
    %1879 = vmatpush.bf16.msra.mxu0 %v543
    %1880 = vmatpush.bf16.msra.mxu0 %v540
    %1881 = vmatpush.bf16.msra.mxu0 %v537
    %1882 = vmatmul.bf16.gmra.mxu0 %v1846
    %v1883 = vpop.f32.mrf.mxu0
    %v1884 = vadd.f32 0.0, %v1883
    %v1885 = vpop.f32.mrf.mxu0
    %1886 = vdwg.mxu0
    %v1887 = vld [vmem:[#allocation2] sm:$0xff]
    %v1889 = vunpack.c.l.b16 %v1887
    %v1890 = vunpack.c.h.b16 %v1887
    %v1891 = vpack.c.b16 %v1889, %v1889
    %v1892 = vpack.c.b16 %v1890, %v1890
    %1895 = vmatpush.bf16.msra.mxu0 %v850
    %1896 = vmatpush.bf16.msra.mxu0 %v846
    %1897 = vmatpush.bf16.msra.mxu0 %v842
    %1898 = vmatpush.bf16.msra.mxu0 %v838
    %1899 = vmatpush.bf16.msra.mxu0 %v834
    %1900 = vmatpush.bf16.msra.mxu0 %v830
    %1901 = vmatpush.bf16.msra.mxu0 %v826
    %1902 = vmatpush.bf16.msra.mxu0 %v822
    %1903 = vmatmul.bf16.gmra.mxu0 %v1891
    %v1904 = vpop.f32.mrf.mxu0
    %v1905 = vadd.f32 %v426, %v1904
    %v1906 = vpop.f32.mrf.mxu0
    %1907 = vdwg.mxu0
    %1908 = vmatpush.bf16.msra.mxu0 %v882
    %1909 = vmatpush.bf16.msra.mxu0 %v878
    %1910 = vmatpush.bf16.msra.mxu0 %v874
    %1911 = vmatpush.bf16.msra.mxu0 %v870
    %1912 = vmatpush.bf16.msra.mxu0 %v866
    %1913 = vmatpush.bf16.msra.mxu0 %v862
    %1914 = vmatpush.bf16.msra.mxu0 %v858
    %1915 = vmatpush.bf16.msra.mxu0 %v854
    %1916 = vmatmul.bf16.gmra.mxu0 %v1892
    %v1917 = vpop.f32.mrf.mxu0
    %v1918 = vadd.f32 %v1905, %v1917
    %v1919 = vpop.f32.mrf.mxu0
    %1920 = vdwg.mxu0
    %1921 = vmatpush.bf16.msra.mxu0 %v851
    %1922 = vmatpush.bf16.msra.mxu0 %v847
    %1923 = vmatpush.bf16.msra.mxu0 %v843
    %1924 = vmatpush.bf16.msra.mxu0 %v839
    %1925 = vmatpush.bf16.msra.mxu0 %v835
    %1926 = vmatpush.bf16.msra.mxu0 %v831
    %1927 = vmatpush.bf16.msra.mxu0 %v827
    %1928 = vmatpush.bf16.msra.mxu0 %v823
    %1929 = vmatmul.bf16.gmra.mxu0 %v1891
    %v1930 = vpop.f32.mrf.mxu0
    %v1931 = vadd.f32 %v427, %v1930
    %v1932 = vpop.f32.mrf.mxu0
    %1933 = vdwg.mxu0
    %1934 = vmatpush.bf16.msra.mxu0 %v883
    %1935 = vmatpush.bf16.msra.mxu0 %v879
    %1936 = vmatpush.bf16.msra.mxu0 %v875
    %1937 = vmatpush.bf16.msra.mxu0 %v871
    %1938 = vmatpush.bf16.msra.mxu0 %v867
    %1939 = vmatpush.bf16.msra.mxu0 %v863
    %1940 = vmatpush.bf16.msra.mxu0 %v859
    %1941 = vmatpush.bf16.msra.mxu0 %v855
    %1942 = vmatmul.bf16.gmra.mxu0 %v1892
    %v1943 = vpop.f32.mrf.mxu0
    %v1944 = vadd.f32 %v1931, %v1943
    %v1945 = vpop.f32.mrf.mxu0
    %1946 = vdwg.mxu0
    %1947 = vmatpush.bf16.msra.mxu0 %v852
    %1948 = vmatpush.bf16.msra.mxu0 %v848
    %1949 = vmatpush.bf16.msra.mxu0 %v844
    %1950 = vmatpush.bf16.msra.mxu0 %v840
    %1951 = vmatpush.bf16.msra.mxu0 %v836
    %1952 = vmatpush.bf16.msra.mxu0 %v832
    %1953 = vmatpush.bf16.msra.mxu0 %v828
    %1954 = vmatpush.bf16.msra.mxu0 %v824
    %1955 = vmatmul.bf16.gmra.mxu0 %v1891
    %v1956 = vpop.f32.mrf.mxu0
    %v1957 = vadd.f32 %v428, %v1956
    %v1958 = vpop.f32.mrf.mxu0
    %1959 = vdwg.mxu0
    %1960 = vmatpush.bf16.msra.mxu0 %v884
    %1961 = vmatpush.bf16.msra.mxu0 %v880
    %1962 = vmatpush.bf16.msra.mxu0 %v876
    %1963 = vmatpush.bf16.msra.mxu0 %v872
    %1964 = vmatpush.bf16.msra.mxu0 %v868
    %1965 = vmatpush.bf16.msra.mxu0 %v864
    %1966 = vmatpush.bf16.msra.mxu0 %v860
    %1967 = vmatpush.bf16.msra.mxu0 %v856
    %1968 = vmatmul.bf16.gmra.mxu0 %v1892
    %v1969 = vpop.f32.mrf.mxu0
    %v1970 = vadd.f32 %v1957, %v1969
    %v1971 = vpop.f32.mrf.mxu0
    %1972 = vdwg.mxu0
    %1973 = vmatpush.bf16.msra.mxu0 %v853
    %1974 = vmatpush.bf16.msra.mxu0 %v849
    %1975 = vmatpush.bf16.msra.mxu0 %v845
    %1976 = vmatpush.bf16.msra.mxu0 %v841
    %1977 = vmatpush.bf16.msra.mxu0 %v837
    %1978 = vmatpush.bf16.msra.mxu0 %v833
    %1979 = vmatpush.bf16.msra.mxu0 %v829
    %1980 = vmatpush.bf16.msra.mxu0 %v825
    %1981 = vmatmul.bf16.gmra.mxu0 %v1891
    %v1982 = vpop.f32.mrf.mxu0
    %v1983 = vadd.f32 %v429, %v1982
    %v1984 = vpop.f32.mrf.mxu0
    %1985 = vdwg.mxu0
    %1986 = vmatpush.bf16.msra.mxu0 %v885
    %1987 = vmatpush.bf16.msra.mxu0 %v881
    %1988 = vmatpush.bf16.msra.mxu0 %v877
    %1989 = vmatpush.bf16.msra.mxu0 %v873
    %1990 = vmatpush.bf16.msra.mxu0 %v869
    %1991 = vmatpush.bf16.msra.mxu0 %v865
    %1992 = vmatpush.bf16.msra.mxu0 %v861
    %1993 = vmatpush.bf16.msra.mxu0 %v857
    %1994 = vmatmul.bf16.gmra.mxu0 %v1892
    %v1995 = vpop.f32.mrf.mxu0
    %v1996 = vadd.f32 %v1983, %v1995
    %v1997 = vpop.f32.mrf.mxu0
    %1998 = vdwg.mxu0
    %v1999 = vmul.f32 %v1918, 0.5
    %v2000 = vtanh.pop %v1999
    %v2001 = vmul.f32 %v2000, 0.5
    %v2002 = vadd.f32 %v2001, 0.5
    %v2003 = vmul.f32 %v1944, 0.5
    %v2004 = vtanh.pop %v2003
    %v2005 = vmul.f32 %v2004, 0.5
    %v2006 = vadd.f32 %v2005, 0.5
    %v2007 = vmul.f32 %v2002, %v1996
    %v2008 = vadd.f32 %v1970, %v2007
    %v2009 = vtanh.pop %v2008
    %v2010 = vsub.f32 1.0, %v2006
    %v2011 = vmul.f32 %v2010, %v2009
    %v2012 = vmul.f32 %v2006, %v1824
    %v2013 = vadd.f32 %v2011, %v2012
    %v2014 = vpack.c.bf16 %v2013, %v2013
    %2015 = vst [vmem:[#allocation2 + $0x4] sm:$0xf] %v2014
    %v2016 = vadd.f32 %v1827, %v2013
    %v2017 = vadd.f32 %v237, %v1858
    %v2018 = vmul.f32 %v2017, 0.5
    %v2019 = vtanh.pop %v2018
    %v2020 = vmul.f32 %v2019, 0.5
    %v2021 = vadd.f32 %v2020, 0.5
    %v2022 = vadd.f32 %v278, %v1871
    %v2023 = vmul.f32 %v2022, 0.5
    %v2024 = vtanh.pop %v2023
    %v2025 = vmul.f32 %v2024, 0.5
    %v2026 = vadd.f32 %v2025, 0.5
    %v2027 = vadd.f32 %v1884, %v422
    %v2028 = vmul.f32 %v2021, %v2027
    %v2029 = vadd.f32 %v319, %v2028
    %v2030 = vtanh.pop %v2029
    %v2031 = vsub.f32 1.0, %v2026
    %v2032 = vmul.f32 %v2031, %v2030
    %v2033 = vmul.f32 %v2026, %v1845
    %v2034 = vadd.f32 %v2032, %v2033
    %v2035 = vpack.c.bf16 %v2034, %v2034
    %2036 = vst [vmem:[#allocation2] sm:$0xf] %v2035
    %2037 = vmatpush.bf16.msra.mxu0 %v556
    %2038 = vmatpush.bf16.msra.mxu0 %v553
    %2039 = vmatpush.bf16.msra.mxu0 %v550
    %2040 = vmatpush.bf16.msra.mxu0 %v547
    %2041 = vmatpush.bf16.msra.mxu0 %v544
    %2042 = vmatpush.bf16.msra.mxu0 %v541
    %2043 = vmatpush.bf16.msra.mxu0 %v538
    %2044 = vmatpush.bf16.msra.mxu0 %v535
    %2045 = vmatmul.bf16.gmra.mxu0 %v2035
    %v2046 = vpop.f32.mrf.mxu0
    %v2047 = vadd.f32 0.0, %v2046
    %v2048 = vpop.f32.mrf.mxu0
    %2049 = vdwg.mxu0
    %2050 = vmatpush.bf16.msra.mxu0 %v557
    %2051 = vmatpush.bf16.msra.mxu0 %v554
    %2052 = vmatpush.bf16.msra.mxu0 %v551
    %2053 = vmatpush.bf16.msra.mxu0 %v548
    %2054 = vmatpush.bf16.msra.mxu0 %v545
    %2055 = vmatpush.bf16.msra.mxu0 %v542
    %2056 = vmatpush.bf16.msra.mxu0 %v539
    %2057 = vmatpush.bf16.msra.mxu0 %v536
    %2058 = vmatmul.bf16.gmra.mxu0 %v2035
    %v2059 = vpop.f32.mrf.mxu0
    %v2060 = vadd.f32 0.0, %v2059
    %v2061 = vpop.f32.mrf.mxu0
    %2062 = vdwg.mxu0
    %2063 = vmatpush.bf16.msra.mxu0 %v558
    %2064 = vmatpush.bf16.msra.mxu0 %v555
    %2065 = vmatpush.bf16.msra.mxu0 %v552
    %2066 = vmatpush.bf16.msra.mxu0 %v549
    %2067 = vmatpush.bf16.msra.mxu0 %v546
    %2068 = vmatpush.bf16.msra.mxu0 %v543
    %2069 = vmatpush.bf16.msra.mxu0 %v540
    %2070 = vmatpush.bf16.msra.mxu0 %v537
    %2071 = vmatmul.bf16.gmra.mxu0 %v2035
    %v2072 = vpop.f32.mrf.mxu0
    %v2073 = vadd.f32 0.0, %v2072
    %v2074 = vpop.f32.mrf.mxu0
    %2075 = vdwg.mxu0
    %v2076 = vld [vmem:[#allocation2] sm:$0xff]
    %v2078 = vunpack.c.l.b16 %v2076
    %v2079 = vunpack.c.h.b16 %v2076
    %v2080 = vpack.c.b16 %v2078, %v2078
    %v2081 = vpack.c.b16 %v2079, %v2079
    %2084 = vmatpush.bf16.msra.mxu0 %v850
    %2085 = vmatpush.bf16.msra.mxu0 %v846
    %2086 = vmatpush.bf16.msra.mxu0 %v842
    %2087 = vmatpush.bf16.msra.mxu0 %v838
    %2088 = vmatpush.bf16.msra.mxu0 %v834
    %2089 = vmatpush.bf16.msra.mxu0 %v830
    %2090 = vmatpush.bf16.msra.mxu0 %v826
    %2091 = vmatpush.bf16.msra.mxu0 %v822
    %2092 = vmatmul.bf16.gmra.mxu0 %v2080
    %v2093 = vpop.f32.mrf.mxu0
    %v2094 = vadd.f32 %v426, %v2093
    %v2095 = vpop.f32.mrf.mxu0
    %2096 = vdwg.mxu0
    %2097 = vmatpush.bf16.msra.mxu0 %v882
    %2098 = vmatpush.bf16.msra.mxu0 %v878
    %2099 = vmatpush.bf16.msra.mxu0 %v874
    %2100 = vmatpush.bf16.msra.mxu0 %v870
    %2101 = vmatpush.bf16.msra.mxu0 %v866
    %2102 = vmatpush.bf16.msra.mxu0 %v862
    %2103 = vmatpush.bf16.msra.mxu0 %v858
    %2104 = vmatpush.bf16.msra.mxu0 %v854
    %2105 = vmatmul.bf16.gmra.mxu0 %v2081
    %v2106 = vpop.f32.mrf.mxu0
    %v2107 = vadd.f32 %v2094, %v2106
    %v2108 = vpop.f32.mrf.mxu0
    %2109 = vdwg.mxu0
    %2110 = vmatpush.bf16.msra.mxu0 %v851
    %2111 = vmatpush.bf16.msra.mxu0 %v847
    %2112 = vmatpush.bf16.msra.mxu0 %v843
    %2113 = vmatpush.bf16.msra.mxu0 %v839
    %2114 = vmatpush.bf16.msra.mxu0 %v835
    %2115 = vmatpush.bf16.msra.mxu0 %v831
    %2116 = vmatpush.bf16.msra.mxu0 %v827
    %2117 = vmatpush.bf16.msra.mxu0 %v823
    %2118 = vmatmul.bf16.gmra.mxu0 %v2080
    %v2119 = vpop.f32.mrf.mxu0
    %v2120 = vadd.f32 %v427, %v2119
    %v2121 = vpop.f32.mrf.mxu0
    %2122 = vdwg.mxu0
    %2123 = vmatpush.bf16.msra.mxu0 %v883
    %2124 = vmatpush.bf16.msra.mxu0 %v879
    %2125 = vmatpush.bf16.msra.mxu0 %v875
    %2126 = vmatpush.bf16.msra.mxu0 %v871
    %2127 = vmatpush.bf16.msra.mxu0 %v867
    %2128 = vmatpush.bf16.msra.mxu0 %v863
    %2129 = vmatpush.bf16.msra.mxu0 %v859
    %2130 = vmatpush.bf16.msra.mxu0 %v855
    %2131 = vmatmul.bf16.gmra.mxu0 %v2081
    %v2132 = vpop.f32.mrf.mxu0
    %v2133 = vadd.f32 %v2120, %v2132
    %v2134 = vpop.f32.mrf.mxu0
    %2135 = vdwg.mxu0
    %2136 = vmatpush.bf16.msra.mxu0 %v852
    %2137 = vmatpush.bf16.msra.mxu0 %v848
    %2138 = vmatpush.bf16.msra.mxu0 %v844
    %2139 = vmatpush.bf16.msra.mxu0 %v840
    %2140 = vmatpush.bf16.msra.mxu0 %v836
    %2141 = vmatpush.bf16.msra.mxu0 %v832
    %2142 = vmatpush.bf16.msra.mxu0 %v828
    %2143 = vmatpush.bf16.msra.mxu0 %v824
    %2144 = vmatmul.bf16.gmra.mxu0 %v2080
    %v2145 = vpop.f32.mrf.mxu0
    %v2146 = vadd.f32 %v428, %v2145
    %v2147 = vpop.f32.mrf.mxu0
    %2148 = vdwg.mxu0
    %2149 = vmatpush.bf16.msra.mxu0 %v884
    %2150 = vmatpush.bf16.msra.mxu0 %v880
    %2151 = vmatpush.bf16.msra.mxu0 %v876
    %2152 = vmatpush.bf16.msra.mxu0 %v872
    %2153 = vmatpush.bf16.msra.mxu0 %v868
    %2154 = vmatpush.bf16.msra.mxu0 %v864
    %2155 = vmatpush.bf16.msra.mxu0 %v860
    %2156 = vmatpush.bf16.msra.mxu0 %v856
    %2157 = vmatmul.bf16.gmra.mxu0 %v2081
    %v2158 = vpop.f32.mrf.mxu0
    %v2159 = vadd.f32 %v2146, %v2158
    %v2160 = vpop.f32.mrf.mxu0
    %2161 = vdwg.mxu0
    %2162 = vmatpush.bf16.msra.mxu0 %v853
    %2163 = vmatpush.bf16.msra.mxu0 %v849
    %2164 = vmatpush.bf16.msra.mxu0 %v845
    %2165 = vmatpush.bf16.msra.mxu0 %v841
    %2166 = vmatpush.bf16.msra.mxu0 %v837
    %2167 = vmatpush.bf16.msra.mxu0 %v833
    %2168 = vmatpush.bf16.msra.mxu0 %v829
    %2169 = vmatpush.bf16.msra.mxu0 %v825
    %2170 = vmatmul.bf16.gmra.mxu0 %v2080
    %v2171 = vpop.f32.mrf.mxu0
    %v2172 = vadd.f32 %v429, %v2171
    %v2173 = vpop.f32.mrf.mxu0
    %2174 = vdwg.mxu0
    %2175 = vmatpush.bf16.msra.mxu0 %v885
    %2176 = vmatpush.bf16.msra.mxu0 %v881
    %2177 = vmatpush.bf16.msra.mxu0 %v877
    %2178 = vmatpush.bf16.msra.mxu0 %v873
    %2179 = vmatpush.bf16.msra.mxu0 %v869
    %2180 = vmatpush.bf16.msra.mxu0 %v865
    %2181 = vmatpush.bf16.msra.mxu0 %v861
    %2182 = vmatpush.bf16.msra.mxu0 %v857
    %2183 = vmatmul.bf16.gmra.mxu0 %v2081
    %v2184 = vpop.f32.mrf.mxu0
    %v2185 = vadd.f32 %v2172, %v2184
    %v2186 = vpop.f32.mrf.mxu0
    %2187 = vdwg.mxu0
    %v2188 = vmul.f32 %v2107, 0.5
    %v2189 = vtanh.pop %v2188
    %v2190 = vmul.f32 %v2189, 0.5
    %v2191 = vadd.f32 %v2190, 0.5
    %v2192 = vmul.f32 %v2133, 0.5
    %v2193 = vtanh.pop %v2192
    %v2194 = vmul.f32 %v2193, 0.5
    %v2195 = vadd.f32 %v2194, 0.5
    %v2196 = vmul.f32 %v2191, %v2185
    %v2197 = vadd.f32 %v2159, %v2196
    %v2198 = vtanh.pop %v2197
    %v2199 = vsub.f32 1.0, %v2195
    %v2200 = vmul.f32 %v2199, %v2198
    %v2201 = vmul.f32 %v2195, %v2013
    %v2202 = vadd.f32 %v2200, %v2201
    %v2203 = vpack.c.bf16 %v2202, %v2202
    %2204 = vst [vmem:[#allocation2 + $0x4] sm:$0xf] %v2203
    %v2205 = vadd.f32 %v2016, %v2202
    %v2206 = vadd.f32 %v240, %v2047
    %v2207 = vmul.f32 %v2206, 0.5
    %v2208 = vtanh.pop %v2207
    %v2209 = vmul.f32 %v2208, 0.5
    %v2210 = vadd.f32 %v2209, 0.5
    %v2211 = vadd.f32 %v281, %v2060
    %v2212 = vmul.f32 %v2211, 0.5
    %v2213 = vtanh.pop %v2212
    %v2214 = vmul.f32 %v2213, 0.5
    %v2215 = vadd.f32 %v2214, 0.5
    %v2216 = vadd.f32 %v2073, %v422
    %v2217 = vmul.f32 %v2210, %v2216
    %v2218 = vadd.f32 %v322, %v2217
    %v2219 = vtanh.pop %v2218
    %v2220 = vsub.f32 1.0, %v2215
    %v2221 = vmul.f32 %v2220, %v2219
    %v2222 = vmul.f32 %v2215, %v2034
    %v2223 = vadd.f32 %v2221, %v2222
    %v2224 = vpack.c.bf16 %v2223, %v2223
    %2225 = vst [vmem:[#allocation2] sm:$0xf] %v2224
    %v2226 = vld [vmem:[#allocation2] sm:$0xff]
    %v2228 = vunpack.c.l.b16 %v2226
    %v2229 = vunpack.c.h.b16 %v2226
    %v2230 = vpack.c.b16 %v2228, %v2228
    %v2231 = vpack.c.b16 %v2229, %v2229
    %2234 = vmatpush.bf16.msra.mxu0 %v850
    %2235 = vmatpush.bf16.msra.mxu0 %v846
    %2236 = vmatpush.bf16.msra.mxu0 %v842
    %2237 = vmatpush.bf16.msra.mxu0 %v838
    %2238 = vmatpush.bf16.msra.mxu0 %v834
    %2239 = vmatpush.bf16.msra.mxu0 %v830
    %2240 = vmatpush.bf16.msra.mxu0 %v826
    %2241 = vmatpush.bf16.msra.mxu0 %v822
    %2242 = vmatmul.bf16.gmra.mxu0 %v2230
    %v2243 = vpop.f32.mrf.mxu0
    %v2244 = vadd.f32 %v426, %v2243
    %v2245 = vpop.f32.mrf.mxu0
    %2246 = vdwg.mxu0
    %2247 = vmatpush.bf16.msra.mxu0 %v882
    %2248 = vmatpush.bf16.msra.mxu0 %v878
    %2249 = vmatpush.bf16.msra.mxu0 %v874
    %2250 = vmatpush.bf16.msra.mxu0 %v870
    %2251 = vmatpush.bf16.msra.mxu0 %v866
    %2252 = vmatpush.bf16.msra.mxu0 %v862
    %2253 = vmatpush.bf16.msra.mxu0 %v858
    %2254 = vmatpush.bf16.msra.mxu0 %v854
    %2255 = vmatmul.bf16.gmra.mxu0 %v2231
    %v2256 = vpop.f32.mrf.mxu0
    %v2257 = vadd.f32 %v2244, %v2256
    %v2258 = vpop.f32.mrf.mxu0
    %2259 = vdwg.mxu0
    %2260 = vmatpush.bf16.msra.mxu0 %v851
    %2261 = vmatpush.bf16.msra.mxu0 %v847
    %2262 = vmatpush.bf16.msra.mxu0 %v843
    %2263 = vmatpush.bf16.msra.mxu0 %v839
    %2264 = vmatpush.bf16.msra.mxu0 %v835
    %2265 = vmatpush.bf16.msra.mxu0 %v831
    %2266 = vmatpush.bf16.msra.mxu0 %v827
    %2267 = vmatpush.bf16.msra.mxu0 %v823
    %2268 = vmatmul.bf16.gmra.mxu0 %v2230
    %v2269 = vpop.f32.mrf.mxu0
    %v2270 = vadd.f32 %v427, %v2269
    %v2271 = vpop.f32.mrf.mxu0
    %2272 = vdwg.mxu0
    %2273 = vmatpush.bf16.msra.mxu0 %v883
    %2274 = vmatpush.bf16.msra.mxu0 %v879
    %2275 = vmatpush.bf16.msra.mxu0 %v875
    %2276 = vmatpush.bf16.msra.mxu0 %v871
    %2277 = vmatpush.bf16.msra.mxu0 %v867
    %2278 = vmatpush.bf16.msra.mxu0 %v863
    %2279 = vmatpush.bf16.msra.mxu0 %v859
    %2280 = vmatpush.bf16.msra.mxu0 %v855
    %2281 = vmatmul.bf16.gmra.mxu0 %v2231
    %v2282 = vpop.f32.mrf.mxu0
    %v2283 = vadd.f32 %v2270, %v2282
    %v2284 = vpop.f32.mrf.mxu0
    %2285 = vdwg.mxu0
    %2286 = vmatpush.bf16.msra.mxu0 %v852
    %2287 = vmatpush.bf16.msra.mxu0 %v848
    %2288 = vmatpush.bf16.msra.mxu0 %v844
    %2289 = vmatpush.bf16.msra.mxu0 %v840
    %2290 = vmatpush.bf16.msra.mxu0 %v836
    %2291 = vmatpush.bf16.msra.mxu0 %v832
    %2292 = vmatpush.bf16.msra.mxu0 %v828
    %2293 = vmatpush.bf16.msra.mxu0 %v824
    %2294 = vmatmul.bf16.gmra.mxu0 %v2230
    %v2295 = vpop.f32.mrf.mxu0
    %v2296 = vadd.f32 %v428, %v2295
    %v2297 = vpop.f32.mrf.mxu0
    %2298 = vdwg.mxu0
    %2299 = vmatpush.bf16.msra.mxu0 %v884
    %2300 = vmatpush.bf16.msra.mxu0 %v880
    %2301 = vmatpush.bf16.msra.mxu0 %v876
    %2302 = vmatpush.bf16.msra.mxu0 %v872
    %2303 = vmatpush.bf16.msra.mxu0 %v868
    %2304 = vmatpush.bf16.msra.mxu0 %v864
    %2305 = vmatpush.bf16.msra.mxu0 %v860
    %2306 = vmatpush.bf16.msra.mxu0 %v856
    %2307 = vmatmul.bf16.gmra.mxu0 %v2231
    %v2308 = vpop.f32.mrf.mxu0
    %v2309 = vadd.f32 %v2296, %v2308
    %v2310 = vpop.f32.mrf.mxu0
    %2311 = vdwg.mxu0
    %2312 = vmatpush.bf16.msra.mxu0 %v853
    %2313 = vmatpush.bf16.msra.mxu0 %v849
    %2314 = vmatpush.bf16.msra.mxu0 %v845
    %2315 = vmatpush.bf16.msra.mxu0 %v841
    %2316 = vmatpush.bf16.msra.mxu0 %v837
    %2317 = vmatpush.bf16.msra.mxu0 %v833
    %2318 = vmatpush.bf16.msra.mxu0 %v829
    %2319 = vmatpush.bf16.msra.mxu0 %v825
    %2320 = vmatmul.bf16.gmra.mxu0 %v2230
    %v2321 = vpop.f32.mrf.mxu0
    %v2322 = vadd.f32 %v429, %v2321
    %v2323 = vpop.f32.mrf.mxu0
    %2324 = vdwg.mxu0
    %2325 = vmatpush.bf16.msra.mxu0 %v885
    %2326 = vmatpush.bf16.msra.mxu0 %v881
    %2327 = vmatpush.bf16.msra.mxu0 %v877
    %2328 = vmatpush.bf16.msra.mxu0 %v873
    %2329 = vmatpush.bf16.msra.mxu0 %v869
    %2330 = vmatpush.bf16.msra.mxu0 %v865
    %2331 = vmatpush.bf16.msra.mxu0 %v861
    %2332 = vmatpush.bf16.msra.mxu0 %v857
    %2333 = vmatmul.bf16.gmra.mxu0 %v2231
    %v2334 = vpop.f32.mrf.mxu0
    %v2335 = vadd.f32 %v2322, %v2334
    %v2336 = vpop.f32.mrf.mxu0
    %2337 = vdwg.mxu0
    %v2338 = vmul.f32 %v2257, 0.5
    %v2339 = vtanh.pop %v2338
    %v2340 = vmul.f32 %v2339, 0.5
    %v2341 = vadd.f32 %v2340, 0.5
    %v2342 = vmul.f32 %v2283, 0.5
    %v2343 = vtanh.pop %v2342
    %v2344 = vmul.f32 %v2343, 0.5
    %v2345 = vadd.f32 %v2344, 0.5
    %v2346 = vmul.f32 %v2341, %v2335
    %v2347 = vadd.f32 %v2309, %v2346
    %v2348 = vtanh.pop %v2347
    %v2349 = vsub.f32 1.0, %v2345
    %v2350 = vmul.f32 %v2349, %v2348
    %v2351 = vmul.f32 %v2345, %v2202
    %v2352 = vadd.f32 %v2350, %v2351
    %v2353 = vpack.c.bf16 %v2352, %v2352
    %2354 = vst [vmem:[#allocation2 + $0x4] sm:$0xf] %v2353
    %v2355 = vadd.f32 %v2205, %v2352
    %v2356 = vmul.f32 %v2355, 0.125
    %v2357 = vpack.c.bf16 %v2356, %v2356
    %v2358 = vld [vmem:[%s7] sm:$0xf]
    %v2359 = vld [vmem:[%s7 + $0x4] sm:$0xf]
    %v2360 = vld [vmem:[%s7 + $0x8] sm:$0xf]
    %v2361 = vld [vmem:[%s7 + $0xc] sm:$0xf]
    %v2362 = vld [vmem:[%s7 + $0x10] sm:$0xf]
    %v2363 = vld [vmem:[%s7 + $0x14] sm:$0xf]
    %v2364 = vld [vmem:[%s7 + $0x18] sm:$0xf]
    %v2365 = vld [vmem:[%s7 + $0x1c] sm:$0xf]
    %v2366 = vld [vmem:[%s7 + $0x20] sm:$0xf]
    %v2367 = vld [vmem:[%s7 + $0x24] sm:$0xf]
    %v2368 = vld [vmem:[%s7 + $0x28] sm:$0xf]
    %v2369 = vld [vmem:[%s7 + $0x2c] sm:$0xf]
    %v2370 = vld [vmem:[%s7 + $0x30] sm:$0xf]
    %v2371 = vld [vmem:[%s7 + $0x34] sm:$0xf]
    %v2372 = vld [vmem:[%s7 + $0x38] sm:$0xf]
    %v2373 = vld [vmem:[%s7 + $0x3c] sm:$0xf]
    %v2374 = vld [vmem:[%s8] sm:$0x1]
    %v2376 = vperm.slane %v2374, 0
    %v2394 = vunpack.c.l.b16 %v2358
    %v2395 = vunpack.c.l.b16 %v2359
    %v2396 = vunpack.c.l.b16 %v2360
    %v2397 = vunpack.c.l.b16 %v2361
    %v2398 = vunpack.c.l.b16 %v2362
    %v2399 = vunpack.c.l.b16 %v2363
    %v2400 = vunpack.c.l.b16 %v2364
    %v2401 = vunpack.c.l.b16 %v2365
    %v2402 = vunpack.c.l.b16 %v2366
    %v2403 = vunpack.c.l.b16 %v2367
    %v2404 = vunpack.c.l.b16 %v2368
    %v2405 = vunpack.c.l.b16 %v2369
    %v2406 = vunpack.c.l.b16 %v2370
    %v2407 = vunpack.c.l.b16 %v2371
    %v2408 = vunpack.c.l.b16 %v2372
    %v2409 = vunpack.c.l.b16 %v2373
    %v2410 = vpack.c.b16 %v2395, %v2394
    %v2411 = vpack.c.b16 %v2397, %v2396
    %v2412 = vpack.c.b16 %v2399, %v2398
    %v2413 = vpack.c.b16 %v2401, %v2400
    %v2414 = vpack.c.b16 %v2403, %v2402
    %v2415 = vpack.c.b16 %v2405, %v2404
    %v2416 = vpack.c.b16 %v2407, %v2406
    %v2417 = vpack.c.b16 %v2409, %v2408
    %2426 = vmatpush.bf16.msra.mxu0 %v2417
    %2427 = vmatpush.bf16.msra.mxu0 %v2416
    %2428 = vmatpush.bf16.msra.mxu0 %v2415
    %2429 = vmatpush.bf16.msra.mxu0 %v2414
    %2430 = vmatpush.bf16.msra.mxu0 %v2413
    %2431 = vmatpush.bf16.msra.mxu0 %v2412
    %2432 = vmatpush.bf16.msra.mxu0 %v2411
    %2433 = vmatpush.bf16.msra.mxu0 %v2410
    %2434 = vmatmul.bf16.gmra.mxu0 %v2357
    %v2435 = vpop.f32.mrf.mxu0
    %v2436 = vadd.f32 %v2376, %v2435
    %v2437 = vpop.f32.mrf.mxu0
    %2438 = vdwg.mxu0
    %2439 = vst [vmem:[#allocation11] sm:$0xff] %v2436
    // Predicated region
    $region54: #{tpu_custom_call.1} parent=1 // pred_check
      _
    $region55: #{tpu_custom_call.1} parent=1 // pred_check_branch
      %2441 = sbr.rel (0) target = $region57
    $region56: #{tpu_custom_call.1} parent=1 // pred_region
      %2443 = vsyncadd [#allocation5], 0
      %s2445 = sshll.u32 [#allocation11], 4
      %s2446 = int_to_ptr.vmem [resolvable:$true] %s2445
      %s2447 = sshll.u32 %s9, 4
      %s2448 = int_to_ptr.hbm [resolvable:$true] %s2447
      %2450 = dma.vmem_to_hbm [thread:$0]  %s2446, 128, %s2448, [#allocation5]
    $region57: #{tpu_custom_call.1} parent=1 // pred_fallthru
      _
    // Predicated region
    $region58: #{tpu_custom_call.1} parent=1 // pred_check
      _
    $region59: #{tpu_custom_call.1} parent=1 // pred_check_branch
      %2452 = sbr.rel (0) target = $region61
    $region60: #{tpu_custom_call.1} parent=1 // pred_region
      %2454 = dma.done [#allocation5], 128
    $region61: #{tpu_custom_call.1} parent=1 // pred_fallthru
      _
    %2455 = vsyncpa [#allocation4], 1
    %2456 = vsyncpa [#allocation7], 1
    %2457 = vsyncpa [#allocation10], 1
    %2458 = vsyncpa [#allocation5], 1

</llo_original>
